<compile_context>
chip_gen: v7x
topology: tpu7x:2x2x1
jax: 0.10.0
libtpu: 0.0.40
codegen_flags: <defaults>
</compile_context>

<pallas_src>
import functools

import jax
import jax.numpy as jnp
import numpy as np
from jax import lax
from jax.experimental import pallas as pl
from jax.experimental.pallas import tpu as pltpu

LEAKY_SLOPE = 0.2
BN_EPS = 1e-5


def _leaky(x):
    # LeakyReLU(0.2) as a single max (slope < 1).
    return jnp.maximum(x, LEAKY_SLOPE * x)


@functools.lru_cache(maxsize=1)
def _vmem_caps():
    """(per-step working-set budget, base scoped limit, physical VMEM) bytes."""
    phys = 64 * 1024 * 1024                      # conservative default (v7x)
    try:
        info = pltpu.get_tpu_info()
        for name in ("vmem_capacity_bytes", "vmem_size_bytes"):
            v = getattr(info, name, None)
            if v:
                phys = int(v)
                break
    except Exception:
        pass
    budget = max(8 * 1024 * 1024, phys // 8)     # 8 MiB (v7x) / 16 MiB (v5e/v6e)
    limit = max(32 * 1024 * 1024, phys // 2)     # 32 MiB (v7x) / 64 MiB (v5e/v6e)
    return budget, limit, phys


def _choose_tile_out(L_out, per_row, fixed, budget, max_tile_out):
    """Largest output-tile length (divisor of L_out) within the VMEM budget,
    preferring 128-aligned tiles (unmasked stores / MXU-friendly M), then 16."""
    cap = max(128, int((budget - fixed) // max(per_row, 1)))
    if max_tile_out is not None:
        cap = min(cap, max_tile_out)
    cap = min(cap, L_out)
    best128 = best16 = None
    for t in range(cap, 0, -1):
        if L_out % t:
            continue
        if best128 is None and t % 128 == 0:
            best128 = t
        if best16 is None and t % 16 == 0:
            best16 = t
        if best128 is not None and best16 is not None:
            break
    if best128 is not None and (best16 is None or 4 * best128 >= best16):
        return best128
    if best16 is not None:
        return best16
    return L_out      # full-dim block is always legal


# ----------------------------------------------------------------------------
# Pallas kernel: fused (affine(BN) -> LeakyReLU -> zero-pad -> conv1d) as one
# im2col matmul per (batch, L-tile) grid cell, with an optional fused
# batch-statistics epilogue for the *next* layer's BatchNorm.
# ----------------------------------------------------------------------------
def _make_conv_kernel(*, TL_out, TL_in, Cin, Cout, K, stride, pad, L_valid,
                      apply_affine, do_leaky, mask_center, with_stats,
                      out_dtype):
    W = TL_in + 2 * pad  # rows of the local (pre-op'ed, padded) window

    def kernel(x_ref, halo_ref, w_ref, scale_ref, shift_ref, *rest):
        if with_stats:
            o_ref, sum_ref, sq_ref, xp_ref = rest
        else:
            o_ref, xp_ref = rest

        j = pl.program_id(1)
        base = j * TL_in - pad          # global (unpadded) row of window row 0

        scale = scale_ref[...]          # (1, Cin) f32
        shift = shift_ref[...]

        def preop(piece, row0, mask):
            # piece: (n, Cin) f32 value; row0: global row index of piece[0].
            v = piece
            if apply_affine:
                v = v * scale + shift               # BatchNorm folded to affine
            if do_leaky:
                v = _leaky(v)
            if mask:
                n = piece.shape[0]
                rows = row0 + lax.broadcasted_iota(jnp.int32, (n, 1), 0)
                # Rows outside [0, L_valid) are the conv's zero padding, applied
                # AFTER BN/LeakyReLU (PyTorch: the conv pads its own input).
                v = jnp.where((rows >= 0) & (rows < L_valid), v, 0.0)
            return v

        halo = halo_ref[0, 0].astype(jnp.float32)        # (2*pad, Cin)
        center = x_ref[0].astype(jnp.float32)            # (TL_in, Cin)

        # Write only the exact window (no full memset of the scratch); the big
        # center piece skips the padding mask when it is provably in range.
        xp_ref[pl.ds(0, pad), :] = preop(halo[:pad], base, True)
        xp_ref[pl.ds(pad, TL_in), :] = preop(center, base + pad, mask_center)
        xp_ref[pl.ds(pad + TL_in, pad), :] = preop(halo[pad:], base + pad + TL_in,
                                                   True)

        # im2col: pack the K taps into the contraction dim -> ONE MXU matmul.
        # Columns are cast to bf16 at the load so the concatenate runs on
        # half-width vregs (the MXU consumes bf16 anyway).
        if stride == 1:
            cols = [xp_ref[pl.ds(k, TL_out), :].astype(jnp.bfloat16)
                    for k in range(K)]
        else:
            cols = [xp_ref[pl.ds(k, TL_out, stride), :].astype(jnp.bfloat16)
                    for k in range(K)]
        patches = jnp.concatenate(cols, axis=-1)

        acc = jnp.dot(patches, w_ref[...], preferred_element_type=jnp.float32)
        o_ref[0] = acc.astype(out_dtype)

        if with_stats:
            # Stats of exactly what the next layer will read back (bf16 h).
            yf = acc.astype(jnp.bfloat16).astype(jnp.float32)
            sum_ref[0, 0] = jnp.sum(yf, axis=0, keepdims=True)
            sq_ref[0, 0] = jnp.sum(yf * yf, axis=0, keepdims=True)

    return kernel, W


def conv1d_layer(x_blc, w_packed, scale_c, shift_c, *, K, stride, pad,
                 apply_affine, do_leaky, with_stats, out_dtype,
                 max_tile_out=None):
    """Fused pre-op + conv1d.

    x_blc:    (B, L_in, Cin) channels-last, f32 or bf16.
    w_packed: (K*Cin, Cout) bf16, tap-major im2col layout.
    Returns out (B, L_out, Cout) and, if with_stats, per-tile (sum, sumsq).
    """
    assert pad >= 1
    B, L_in, Cin = x_blc.shape
    KC, Cout = w_packed.shape
    assert KC == K * Cin
    L_out = (L_in + 2 * pad - K) // stride + 1

    in_bytes = jnp.dtype(x_blc.dtype).itemsize
    out_bytes = jnp.dtype(out_dtype).itemsize
    budget, base_limit, phys = _vmem_caps()

    # VMEM working-set accounting (per output row + fixed blocks).  The
    # grid-invariant weight block is still double-buffered by the auto
    # pipeliner, so it is charged at 2x here instead of forcing Buffered(1).
    per_row = (2 * stride * Cin * in_bytes    # double-buffered input block
               + stride * Cin * 4             # f32 padded-window scratch
               + K * Cin * 2                  # bf16 im2col patches
               + Cout * 4                     # f32 accumulator
               + 2 * Cout * out_bytes)        # double-buffered output block
    fixed = (2 * K * Cin * Cout * 2           # double-buffered bf16 weight
             + 2 * 2 * pad * Cin * in_bytes   # double-buffered halo block
             + 4 * Cin * 4 + 8 * Cout * 4     # scale/shift + stats blocks
             + (128 << 10))                   # misc margin
    TL_out = _choose_tile_out(L_out, per_row, fixed, budget, max_tile_out)
    NJ = L_out // TL_out
    TL_in = TL_out * stride

    need = NJ * TL_in
    if need > L_in:
        # Only reachable on the strided fallback path (L_in not a multiple of
        # stride); pads < stride rows.  The stride-1 / space-to-depth main path
        # always tiles exactly, so no full-activation copy happens there.
        x_blc = jnp.pad(x_blc, ((0, 0), (0, need - L_in), (0, 0)))
    Lp = x_blc.shape[1]
    mask_center = need > L_in

    # Tiny gathered side array holding each tile's (2*pad)-row halo, so every
    # Pallas block stays rectangular and auto-pipelined (no manual DMA).
    rel = np.concatenate([np.arange(-pad, 0), np.arange(TL_in, TL_in + pad)])
    halo_rows = np.clip(np.arange(NJ)[:, None] * TL_in + rel[None, :], 0, Lp - 1)
    halos = jnp.take(x_blc, jnp.asarray(halo_rows, dtype=np.int32), axis=1)

    scale2 = jnp.reshape(scale_c, (1, Cin)).astype(jnp.float32)
    shift2 = jnp.reshape(shift_c, (1, Cin)).astype(jnp.float32)

    kernel, W = _make_conv_kernel(
        TL_out=TL_out, TL_in=TL_in, Cin=Cin, Cout=Cout, K=K, stride=stride,
        pad=pad, L_valid=L_in, apply_affine=apply_affine, do_leaky=do_leaky,
        mask_center=mask_center, with_stats=with_stats, out_dtype=out_dtype)

    vmem_need = fixed + TL_out * per_row + (1 << 20)
    vmem_limit = int(min(int(phys * 0.9), max(base_limit, vmem_need)))

    out_sds = jax.ShapeDtypeStruct((B, L_out, Cout), out_dtype)
    out_spec = pl.BlockSpec((1, TL_out, Cout), lambda b, j: (b, j, 0))
    if with_stats:
        stat_sds = jax.ShapeDtypeStruct((B, NJ, 1, Cout), jnp.float32)
        stat_spec = pl.BlockSpec((1, 1, 1, Cout), lambda b, j: (b, j, 0, 0))
        out_shape = (out_sds, stat_sds, stat_sds)
        out_specs = (out_spec, stat_spec, stat_spec)
    else:
        out_shape = out_sds
        out_specs = out_spec

    return pl.pallas_call(
        kernel,
        out_shape=out_shape,
        grid_spec=pltpu.PrefetchScalarGridSpec(
            num_scalar_prefetch=0,
            grid=(B, NJ),
            in_specs=[
                pl.BlockSpec((1, TL_in, Cin), lambda b, j: (b, j, 0)),
                pl.BlockSpec((1, 1, 2 * pad, Cin), lambda b, j: (b, j, 0, 0)),
                pl.BlockSpec((K * Cin, Cout), lambda b, j: (0, 0)),
                pl.BlockSpec((1, Cin), lambda b, j: (0, 0)),
                pl.BlockSpec((1, Cin), lambda b, j: (0, 0)),
            ],
            out_specs=out_specs,
            scratch_shapes=[pltpu.VMEM((W, Cin), jnp.float32)],
        ),
        compiler_params=pltpu.CompilerParams(
            dimension_semantics=("parallel", "parallel"),
            vmem_limit_bytes=vmem_limit),
    )(x_blc, halos, w_packed, scale2, shift2)


# ----------------------------------------------------------------------------
# Parameter init (deterministic, synthetic; mirrors the module's shapes)
# ----------------------------------------------------------------------------
def init_encoder_params(key, data_size, capacity, latent_size, ratios):
    def conv_w(k, cout, cin, ksize):
        bound = 1.0 / np.sqrt(cin * ksize)
        return jax.random.uniform(k, (cout, cin, ksize), jnp.float32, -bound, bound)

    keys = jax.random.split(key, len(ratios) + 2)
    params = {"convs": [], "bn": []}
    params["convs"].append(dict(w=conv_w(keys[0], capacity, data_size, 7)))
    for i, r in enumerate(ratios):
        in_dim = 2 ** i * capacity
        out_dim = 2 ** (i + 1) * capacity
        params["bn"].append(dict(gamma=jnp.ones((in_dim,), jnp.float32),
                                 beta=jnp.zeros((in_dim,), jnp.float32)))
        params["convs"].append(dict(w=conv_w(keys[1 + i], out_dim, in_dim, 2 * r + 1)))
    out_dim = 2 ** len(ratios) * capacity
    # final grouped conv (groups=2): torch weight shape (2*latent, out_dim//2, 5)
    params["w_out"] = conv_w(keys[-1], 2 * latent_size, out_dim // 2, 5)
    return params


def _kio(w_torch):  # (Cout, Cin, K) -> (K, Cin, Cout)
    return jnp.transpose(w_torch, (2, 1, 0))


def _pack_weight(w_torch):  # -> (K*Cin, Cout) bf16, tap-major im2col layout
    w = _kio(w_torch)
    K, Cin, Cout = w.shape
    return w.reshape(K * Cin, Cout).astype(jnp.bfloat16)


def _pack_weight_s2d(w_torch, stride):
    """Space-to-depth repack: a stride-r conv with K=2r+1 taps over Cin channels
    becomes a stride-1, 3-tap conv over r*Cin channels (taps 2r+1..3r-1 zero).
    Row order matches the kernel's im2col column order: (tap3, pos, cin)."""
    w = _kio(w_torch)                              # (K, Cin, Cout)
    K, Cin, Cout = w.shape
    assert K == 2 * stride + 1
    wp = jnp.zeros((3 * stride, Cin, Cout), w.dtype).at[:K].set(w)
    return wp.reshape(3 * stride * Cin, Cout).astype(jnp.bfloat16)


def prepare_encoder_params(params, ratios, latent_size):
    """One-time prep: im2col-packed bf16 weights + static per-layer config."""
    prep = {
        "w_in": _pack_weight(params["convs"][0]["w"]),
        "w_ratio": [],
        "w_ratio_s2d": [],
        "gamma": [params["bn"][i]["gamma"] for i in range(len(ratios))],
        "beta": [params["bn"][i]["beta"] for i in range(len(ratios))],
    }
    for i, r in enumerate(ratios):
        w = params["convs"][i + 1]["w"]
        prep["w_ratio"].append(_pack_weight(w))                 # strided fallback
        prep["w_ratio_s2d"].append(
            _pack_weight_s2d(w, r) if r > 1 else _pack_weight(w))
    # groups=2 output conv as a block-diagonal weight -> single lane-dense slab.
    w_out = params["w_out"]                     # (2*latent, out_dim//2, 5)
    half = w_out.shape[1]
    Kf = w_out.shape[2]
    wf = jnp.zeros((Kf, 2 * half, 2 * latent_size), jnp.float32)
    wf = wf.at[:, :half, :latent_size].set(_kio(w_out[:latent_size]))
    wf = wf.at[:, half:, latent_size:].set(_kio(w_out[latent_size:]))
    prep["w_out"] = wf.reshape(Kf * 2 * half, 2 * latent_size).astype(jnp.bfloat16)

    cfg = ((7, 1, 3),) + tuple((2 * r + 1, r, r) for r in ratios) + ((5, 1, 2),)
    return prep, cfg


# ----------------------------------------------------------------------------
# Encoder forward (Pallas) and pure-JAX reference of the same (bf16) math
# ----------------------------------------------------------------------------
@functools.partial(jax.jit, static_argnames=("cfg", "max_tile_out"))
def encoder_forward(prep, x_ncl, *, cfg, max_tile_out=None):
    n_ratio = len(cfg) - 2
    B = x_ncl.shape[0]
    h = jnp.transpose(x_ncl, (0, 2, 1)).astype(jnp.float32)     # NCL -> NLC

    K, s, p = cfg[0]
    Cin = h.shape[-1]
    h, ssum, ssq = conv1d_layer(
        h, prep["w_in"],
        jnp.ones((Cin,), jnp.float32), jnp.zeros((Cin,), jnp.float32),
        K=K, stride=s, pad=p, apply_affine=False, do_leaky=False,
        with_stats=True, out_dtype=jnp.bfloat16, max_tile_out=max_tile_out)

    for i in range(n_ratio):
        K, s, p = cfg[1 + i]
        L, C = h.shape[1], h.shape[-1]
        count = B * L
        # NOTE: BN batch stats come from the bf16-rounded producer output (what
        # the next layer actually reads); matches the bf16 reference below.
        mean = jnp.sum(ssum, axis=(0, 1, 2)) / count
        msq = jnp.sum(ssq, axis=(0, 1, 2)) / count
        var = msq - mean * mean
        scale = prep["gamma"][i] / jnp.sqrt(var + BN_EPS)
        shift = prep["beta"][i] - mean * scale
        last = i == n_ratio - 1

        if s > 1 and L % s == 0:
            # Space-to-depth: strided conv -> stride-1 3-tap conv over s*C
            # channels (free reinterpretation of contiguous channels-last h).
            x_in = jnp.reshape(h, (B, L // s, s * C))
            w_i = prep["w_ratio_s2d"][i]
            scale_i, shift_i = jnp.tile(scale, s), jnp.tile(shift, s)
            Ki, si, pi = 3, 1, 1
        else:
            x_in, w_i, scale_i, shift_i = h, prep["w_ratio"][i], scale, shift
            Ki, si, pi = K, s, p

        res = conv1d_layer(
            x_in, w_i, scale_i, shift_i, K=Ki, stride=si, pad=pi,
            apply_affine=True, do_leaky=True, with_stats=not last,
            out_dtype=jnp.bfloat16, max_tile_out=max_tile_out)
        if last:
            h = res
        else:
            h, ssum, ssq = res

    K, s, p = cfg[-1]
    Cf = h.shape[-1]
    z = conv1d_layer(
        h, prep["w_out"],
        jnp.ones((Cf,), jnp.float32), jnp.zeros((Cf,), jnp.float32),
        K=K, stride=s, pad=p, apply_affine=False, do_leaky=True,
        with_stats=False, out_dtype=jnp.float32, max_tile_out=max_tile_out)
    # TODO(synk): emit mean/scale directly from the last kernel (two lane-dense
    # NCL outputs) to skip this small transpose/split HBM round trip.
    z_ncl = jnp.transpose(z, (0, 2, 1))                         # back to NCL
    mean_z, scale_z = jnp.split(z_ncl, 2, axis=1)
    return mean_z, scale_z


def _conv_ref_bf16(h, w_kio, stride, pad, groups=1):
    return lax.conv_general_dilated(
        h.astype(jnp.bfloat16), w_kio.astype(jnp.bfloat16),
        window_strides=(stride,), padding=[(pad, pad)],
        dimension_numbers=("NWC", "WIO", "NWC"),
        feature_group_count=groups,
        preferred_element_type=jnp.float32)


def encoder_ref(params, x_ncl, latent_size, ratios):
    h = jnp.transpose(x_ncl, (0, 2, 1)).astype(jnp.float32)
    h = _conv_ref_bf16(h, _kio(params["convs"][0]["w"]), 1, 3)
    h = h.astype(jnp.bfloat16).astype(jnp.float32)
    for i, r in enumerate(ratios):
        bn = params["bn"][i]
        mean = jnp.mean(h, axis=(0, 1))
        var = jnp.mean(h * h, axis=(0, 1)) - mean * mean
        scale = bn["gamma"] / jnp.sqrt(var + BN_EPS)
        shift = bn["beta"] - mean * scale
        h = _leaky(h * scale + shift)
        h = _conv_ref_bf16(h, _kio(params["convs"][i + 1]["w"]), r, r)
        h = h.astype(jnp.bfloat16).astype(jnp.float32)
    h = _leaky(h)
    z = _conv_ref_bf16(h, _kio(params["w_out"]), 1, 2, groups=2)
    z_ncl = jnp.transpose(z, (0, 2, 1))
    return tuple(jnp.split(z_ncl, 2, axis=1))


# ----------------------------------------------------------------------------
if __name__ == "__main__":
    key = jax.random.PRNGKey(0)
    data_size, capacity, latent_size = 4, 8, 8
    ratios = (2, 2)
    B, L = 2, 64

    kp, kx = jax.random.split(key)
    params = init_encoder_params(kp, data_size, capacity, latent_size, ratios)
    prep, cfg = prepare_encoder_params(params, ratios, latent_size)
    x = jax.random.normal(kx, (B, data_size, L), jnp.float32)   # PyTorch NCL

    # max_tile_out=16 keeps several L-tiles per sequence even at this tiny test
    # length so the halo / masking / multi-tile path is exercised; at realistic
    # lengths the per-generation VMEM budget picks the tile size automatically.
    mean, scale = encoder_forward(prep, x, cfg=cfg, max_tile_out=16)
    jax.block_until_ready((mean, scale))

    # sanity-check against a pure-JAX reference of the same (bf16-MXU) math
    mean_r, scale_r = encoder_ref(params, x, latent_size, ratios)
    np.testing.assert_allclose(np.asarray(mean), np.asarray(mean_r),
                               rtol=2e-2, atol=2e-2)
    np.testing.assert_allclose(np.asarray(scale), np.asarray(scale_r),
                               rtol=2e-2, atol=2e-2)

    L_out = L // int(np.prod(ratios))
    assert mean.shape == (B, latent_size, L_out)
    assert scale.shape == (B, latent_size, L_out)
    print("KERNEL_OK")
</pallas_src>

<mosaic_0001>
module attributes {stable_mosaic.version = 11 : i64} {
  func.func @kernel(%arg0: i32, %arg1: i32, %arg2: memref<1x16x4xf32, #tpu.memory_space<vmem>>, %arg3: memref<1x1x6x4xf32, #tpu.memory_space<vmem>>, %arg4: memref<28x8xbf16, #tpu.memory_space<vmem>>, %arg5: memref<1x4xf32, #tpu.memory_space<vmem>>, %arg6: memref<1x4xf32, #tpu.memory_space<vmem>>, %arg7: memref<1x16x8xbf16, #tpu.memory_space<vmem>>, %arg8: memref<1x1x1x8xf32, #tpu.memory_space<vmem>>, %arg9: memref<1x1x1x8xf32, #tpu.memory_space<vmem>>, %arg10: memref<22x4xf32, #tpu.memory_space<vmem>>) attributes {dimension_semantics = [#tpu.dimension_semantics<parallel>, #tpu.dimension_semantics<parallel>], iteration_bounds = array<i64: 2, 4>, scalar_prefetch = 0 : i64, scratch_operands = 1 : i64, tpu.core_type = #tpu.core_type<tc>, window_params = [{transform_indices = @transform_0, window_bounds = array<i64: 1, 16, 4>}, {transform_indices = @transform_1, window_bounds = array<i64: 1, 1, 6, 4>}, {pipeline_mode = #tpu.pipeline_mode<synchronous>, transform_indices = @transform_2, window_bounds = array<i64: 28, 8>}, {pipeline_mode = #tpu.pipeline_mode<synchronous>, transform_indices = @transform_3, window_bounds = array<i64: 1, 4>}, {pipeline_mode = #tpu.pipeline_mode<synchronous>, transform_indices = @transform_4, window_bounds = array<i64: 1, 4>}, {transform_indices = @transform_5, window_bounds = array<i64: 1, 16, 8>}, {transform_indices = @transform_6, window_bounds = array<i64: 1, 1, 1, 8>}, {transform_indices = @transform_7, window_bounds = array<i64: 1, 1, 1, 8>}]} {
    %c16_i32 = arith.constant 16 : i32
    %0 = arith.muli %arg1, %c16_i32 : i32
    %c3_i32 = arith.constant 3 : i32
    %1 = arith.subi %0, %c3_i32 : i32
    %c0 = arith.constant 0 : index
    %c0_0 = arith.constant 0 : index
    %c0_1 = arith.constant 0 : index
    %c0_2 = arith.constant 0 : index
    %2 = vector.load %arg3[%c0, %c0_0, %c0_1, %c0_2] : memref<1x1x6x4xf32, #tpu.memory_space<vmem>>, vector<1x1x6x4xf32>
    %3 = vector.shape_cast %2 : vector<1x1x6x4xf32> to vector<6x4xf32>
    %c0_3 = arith.constant 0 : index
    %c0_4 = arith.constant 0 : index
    %c0_5 = arith.constant 0 : index
    %4 = vector.load %arg2[%c0_3, %c0_4, %c0_5] : memref<1x16x4xf32, #tpu.memory_space<vmem>>, vector<1x16x4xf32>
    %5 = vector.shape_cast %4 : vector<1x16x4xf32> to vector<16x4xf32>
    %6 = vector.extract_strided_slice %3 {offsets = [0, 0], sizes = [3, 4], strides = [1, 1]} : vector<6x4xf32> to vector<3x4xf32>
    %7 = tpu.iota {dimensions = array<i32: 0>} : vector<3x1xi32>
    %8 = vector.broadcast %1 : i32 to vector<3x1xi32>
    %9 = arith.addi %8, %7 : vector<3x1xi32>
    %c0_i32 = arith.constant 0 : i32
    %10 = vector.broadcast %c0_i32 : i32 to vector<3x1xi32>
    %11 = arith.cmpi sge, %9, %10 : vector<3x1xi32>
    %c64_i32 = arith.constant 64 : i32
    %12 = vector.broadcast %c64_i32 : i32 to vector<3x1xi32>
    %13 = arith.cmpi slt, %9, %12 : vector<3x1xi32>
    %14 = arith.andi %11, %13 : vector<3x1xi1>
    %cst = arith.constant 0.000000e+00 : f32
    %15 = vector.shape_cast %14 : vector<3x1xi1> to vector<3x1xi1>
    %16 = vector.broadcast %15 : vector<3x1xi1> to vector<3x4xi1>
    %17 = vector.broadcast %cst : f32 to vector<3x4xf32>
    %18 = arith.select %16, %6, %17 : vector<3x4xi1>, vector<3x4xf32>
    %c0_6 = arith.constant 0 : index
    %c0_7 = arith.constant 0 : index
    %19 = vector.load %arg10[%c0_6, %c0_7] : memref<22x4xf32, #tpu.memory_space<vmem>>, vector<3x4xf32>
    tpu.vector_store %arg10[%c0_6, %c0_7], %18 {strides = array<i32>} : memref<22x4xf32, #tpu.memory_space<vmem>>, vector<3x4xf32>,
    %c3 = arith.constant 3 : index
    %c0_8 = arith.constant 0 : index
    %20 = vector.load %arg10[%c3, %c0_8] : memref<22x4xf32, #tpu.memory_space<vmem>>, vector<16x4xf32>
    tpu.vector_store %arg10[%c3, %c0_8], %5 {strides = array<i32>} : memref<22x4xf32, #tpu.memory_space<vmem>>, vector<16x4xf32>,
    %21 = vector.extract_strided_slice %3 {offsets = [3, 0], sizes = [3, 4], strides = [1, 1]} : vector<6x4xf32> to vector<3x4xf32>
    %c3_i32_9 = arith.constant 3 : i32
    %22 = arith.addi %1, %c3_i32_9 : i32
    %c16_i32_10 = arith.constant 16 : i32
    %23 = arith.addi %22, %c16_i32_10 : i32
    %24 = tpu.iota {dimensions = array<i32: 0>} : vector<3x1xi32>
    %25 = vector.broadcast %23 : i32 to vector<3x1xi32>
    %26 = arith.addi %25, %24 : vector<3x1xi32>
    %c0_i32_11 = arith.constant 0 : i32
    %27 = vector.broadcast %c0_i32_11 : i32 to vector<3x1xi32>
    %28 = arith.cmpi sge, %26, %27 : vector<3x1xi32>
    %c64_i32_12 = arith.constant 64 : i32
    %29 = vector.broadcast %c64_i32_12 : i32 to vector<3x1xi32>
    %30 = arith.cmpi slt, %26, %29 : vector<3x1xi32>
    %31 = arith.andi %28, %30 : vector<3x1xi1>
    %cst_13 = arith.constant 0.000000e+00 : f32
    %32 = vector.shape_cast %31 : vector<3x1xi1> to vector<3x1xi1>
    %33 = vector.broadcast %32 : vector<3x1xi1> to vector<3x4xi1>
    %34 = vector.broadcast %cst_13 : f32 to vector<3x4xf32>
    %35 = arith.select %33, %21, %34 : vector<3x4xi1>, vector<3x4xf32>
    %c19 = arith.constant 19 : index
    %c0_14 = arith.constant 0 : index
    %36 = vector.load %arg10[%c19, %c0_14] : memref<22x4xf32, #tpu.memory_space<vmem>>, vector<3x4xf32>
    tpu.vector_store %arg10[%c19, %c0_14], %35 {strides = array<i32>} : memref<22x4xf32, #tpu.memory_space<vmem>>, vector<3x4xf32>,
    %c0_15 = arith.constant 0 : index
    %c0_16 = arith.constant 0 : index
    %37 = vector.load %arg10[%c0_15, %c0_16] : memref<22x4xf32, #tpu.memory_space<vmem>>, vector<16x4xf32>
    %38 = arith.truncf %37 : vector<16x4xf32> to vector<16x4xbf16>
    %c1 = arith.constant 1 : index
    %c0_17 = arith.constant 0 : index
    %39 = vector.load %arg10[%c1, %c0_17] : memref<22x4xf32, #tpu.memory_space<vmem>>, vector<16x4xf32>
    %40 = arith.truncf %39 : vector<16x4xf32> to vector<16x4xbf16>
    %c2 = arith.constant 2 : index
    %c0_18 = arith.constant 0 : index
    %41 = vector.load %arg10[%c2, %c0_18] : memref<22x4xf32, #tpu.memory_space<vmem>>, vector<16x4xf32>
    %42 = arith.truncf %41 : vector<16x4xf32> to vector<16x4xbf16>
    %c3_19 = arith.constant 3 : index
    %c0_20 = arith.constant 0 : index
    %43 = vector.load %arg10[%c3_19, %c0_20] : memref<22x4xf32, #tpu.memory_space<vmem>>, vector<16x4xf32>
    %44 = arith.truncf %43 : vector<16x4xf32> to vector<16x4xbf16>
    %c4 = arith.constant 4 : index
    %c0_21 = arith.constant 0 : index
    %45 = vector.load %arg10[%c4, %c0_21] : memref<22x4xf32, #tpu.memory_space<vmem>>, vector<16x4xf32>
    %46 = arith.truncf %45 : vector<16x4xf32> to vector<16x4xbf16>
    %c5 = arith.constant 5 : index
    %c0_22 = arith.constant 0 : index
    %47 = vector.load %arg10[%c5, %c0_22] : memref<22x4xf32, #tpu.memory_space<vmem>>, vector<16x4xf32>
    %48 = arith.truncf %47 : vector<16x4xf32> to vector<16x4xbf16>
    %c6 = arith.constant 6 : index
    %c0_23 = arith.constant 0 : index
    %49 = vector.load %arg10[%c6, %c0_23] : memref<22x4xf32, #tpu.memory_space<vmem>>, vector<16x4xf32>
    %50 = arith.truncf %49 : vector<16x4xf32> to vector<16x4xbf16>
    %51 = tpu.concatenate %38, %40, %42, %44, %46, %48, %50 in 1 : vector<16x4xbf16>, vector<16x4xbf16>, vector<16x4xbf16>, vector<16x4xbf16>, vector<16x4xbf16>, vector<16x4xbf16>, vector<16x4xbf16> -> vector<16x28xbf16>
    %c0_24 = arith.constant 0 : index
    %c0_25 = arith.constant 0 : index
    %52 = vector.load %arg4[%c0_24, %c0_25] : memref<28x8xbf16, #tpu.memory_space<vmem>>, vector<28x8xbf16>
    %cst_26 = arith.constant dense<0.000000e+00> : vector<16x8xf32>
    %53 = tpu.matmul %51, %52, %cst_26 {dimension_numbers = #tpu.dot_dimension_numbers<[1], [0], [0], [1], [0, 0, 1, 1], [], []>} : vector<16x28xbf16>, vector<28x8xbf16>, vector<16x8xf32> -> vector<16x8xf32>
    %54 = arith.truncf %53 : vector<16x8xf32> to vector<16x8xbf16>
    %c0_27 = arith.constant 0 : index
    %c0_28 = arith.constant 0 : index
    %c0_29 = arith.constant 0 : index
    %55 = vector.load %arg7[%c0_27, %c0_28, %c0_29] : memref<1x16x8xbf16, #tpu.memory_space<vmem>>, vector<1x16x8xbf16>
    %56 = vector.shape_cast %55 : vector<1x16x8xbf16> to vector<16x8xbf16>
    %57 = vector.shape_cast %54 : vector<16x8xbf16> to vector<1x16x8xbf16>
    tpu.vector_store %arg7[%c0_27, %c0_28, %c0_29], %57 {strides = array<i32>} : memref<1x16x8xbf16, #tpu.memory_space<vmem>>, vector<1x16x8xbf16>,
    %58 = arith.truncf %53 : vector<16x8xf32> to vector<16x8xbf16>
    %59 = arith.extf %58 : vector<16x8xbf16> to vector<16x8xf32>
    %cst_30 = arith.constant dense<0.000000e+00> : vector<8xf32>
    %60 = vector.multi_reduction <add>, %59, %cst_30 [0] : vector<16x8xf32> to vector<8xf32>
    %61 = vector.shape_cast %60 : vector<8xf32> to vector<1x8xf32>
    %c0_31 = arith.constant 0 : index
    %c0_32 = arith.constant 0 : index
    %c0_33 = arith.constant 0 : index
    %c0_34 = arith.constant 0 : index
    %62 = vector.load %arg8[%c0_31, %c0_32, %c0_33, %c0_34] : memref<1x1x1x8xf32, #tpu.memory_space<vmem>>, vector<1x1x1x8xf32>
    %63 = vector.shape_cast %62 : vector<1x1x1x8xf32> to vector<1x8xf32>
    %64 = vector.shape_cast %61 : vector<1x8xf32> to vector<1x1x1x8xf32>
    tpu.vector_store %arg8[%c0_31, %c0_32, %c0_33, %c0_34], %64 {strides = array<i32>} : memref<1x1x1x8xf32, #tpu.memory_space<vmem>>, vector<1x1x1x8xf32>,
    %65 = arith.mulf %59, %59 : vector<16x8xf32>
    %cst_35 = arith.constant dense<0.000000e+00> : vector<8xf32>
    %66 = vector.multi_reduction <add>, %65, %cst_35 [0] : vector<16x8xf32> to vector<8xf32>
    %67 = vector.shape_cast %66 : vector<8xf32> to vector<1x8xf32>
    %c0_36 = arith.constant 0 : index
    %c0_37 = arith.constant 0 : index
    %c0_38 = arith.constant 0 : index
    %c0_39 = arith.constant 0 : index
    %68 = vector.load %arg9[%c0_36, %c0_37, %c0_38, %c0_39] : memref<1x1x1x8xf32, #tpu.memory_space<vmem>>, vector<1x1x1x8xf32>
    %69 = vector.shape_cast %68 : vector<1x1x1x8xf32> to vector<1x8xf32>
    %70 = vector.shape_cast %67 : vector<1x8xf32> to vector<1x1x1x8xf32>
    tpu.vector_store %arg9[%c0_36, %c0_37, %c0_38, %c0_39], %70 {strides = array<i32>} : memref<1x1x1x8xf32, #tpu.memory_space<vmem>>, vector<1x1x1x8xf32>,
    return
  }
  func.func @transform_0(%arg0: i32, %arg1: i32) -> (i32, i32, i32) {
    %c0_i32 = arith.constant 0 : i32
    %c0_i32_0 = arith.constant 0 : i32
    return %arg0, %arg1, %c0_i32 : i32, i32, i32
  }
  func.func @transform_1(%arg0: i32, %arg1: i32) -> (i32, i32, i32, i32) {
    %c0_i32 = arith.constant 0 : i32
    %c0_i32_0 = arith.constant 0 : i32
    %c0_i32_1 = arith.constant 0 : i32
    return %arg0, %arg1, %c0_i32, %c0_i32_0 : i32, i32, i32, i32
  }
  func.func @transform_2(%arg0: i32, %arg1: i32) -> (i32, i32) {
    %c0_i32 = arith.constant 0 : i32
    %c0_i32_0 = arith.constant 0 : i32
    %c0_i32_1 = arith.constant 0 : i32
    return %c0_i32, %c0_i32_0 : i32, i32
  }
  func.func @transform_3(%arg0: i32, %arg1: i32) -> (i32, i32) {
    %c0_i32 = arith.constant 0 : i32
    %c0_i32_0 = arith.constant 0 : i32
    %c0_i32_1 = arith.constant 0 : i32
    return %c0_i32, %c0_i32_0 : i32, i32
  }
  func.func @transform_4(%arg0: i32, %arg1: i32) -> (i32, i32) {
    %c0_i32 = arith.constant 0 : i32
    %c0_i32_0 = arith.constant 0 : i32
    %c0_i32_1 = arith.constant 0 : i32
    return %c0_i32, %c0_i32_0 : i32, i32
  }
  func.func @transform_5(%arg0: i32, %arg1: i32) -> (i32, i32, i32) {
    %c0_i32 = arith.constant 0 : i32
    %c0_i32_0 = arith.constant 0 : i32
    return %arg0, %arg1, %c0_i32 : i32, i32, i32
  }
  func.func @transform_6(%arg0: i32, %arg1: i32) -> (i32, i32, i32, i32) {
    %c0_i32 = arith.constant 0 : i32
    %c0_i32_0 = arith.constant 0 : i32
    %c0_i32_1 = arith.constant 0 : i32
    return %arg0, %arg1, %c0_i32, %c0_i32_0 : i32, i32, i32, i32
  }
  func.func @transform_7(%arg0: i32, %arg1: i32) -> (i32, i32, i32, i32) {
    %c0_i32 = arith.constant 0 : i32
    %c0_i32_0 = arith.constant 0 : i32
    %c0_i32_1 = arith.constant 0 : i32
    return %arg0, %arg1, %c0_i32, %c0_i32_0 : i32, i32, i32, i32
  }
}

module attributes {stable_mosaic.version = 11 : i64} {
  func.func @kernel(%arg0: i32, %arg1: i32, %arg2: memref<1x16x16xbf16, #tpu.memory_space<vmem>>, %arg3: memref<1x1x2x16xbf16, #tpu.memory_space<vmem>>, %arg4: memref<48x16xbf16, #tpu.memory_space<vmem>>, %arg5: memref<1x16xf32, #tpu.memory_space<vmem>>, %arg6: memref<1x16xf32, #tpu.memory_space<vmem>>, %arg7: memref<1x16x16xbf16, #tpu.memory_space<vmem>>, %arg8: memref<1x1x1x16xf32, #tpu.memory_space<vmem>>, %arg9: memref<1x1x1x16xf32, #tpu.memory_space<vmem>>, %arg10: memref<18x16xf32, #tpu.memory_space<vmem>>) attributes {dimension_semantics = [#tpu.dimension_semantics<parallel>, #tpu.dimension_semantics<parallel>], iteration_bounds = array<i64: 2, 2>, scalar_prefetch = 0 : i64, scratch_operands = 1 : i64, tpu.core_type = #tpu.core_type<tc>, window_params = [{transform_indices = @transform_0, window_bounds = array<i64: 1, 16, 16>}, {transform_indices = @transform_1, window_bounds = array<i64: 1, 1, 2, 16>}, {pipeline_mode = #tpu.pipeline_mode<synchronous>, transform_indices = @transform_2, window_bounds = array<i64: 48, 16>}, {pipeline_mode = #tpu.pipeline_mode<synchronous>, transform_indices = @transform_3, window_bounds = array<i64: 1, 16>}, {pipeline_mode = #tpu.pipeline_mode<synchronous>, transform_indices = @transform_4, window_bounds = array<i64: 1, 16>}, {transform_indices = @transform_5, window_bounds = array<i64: 1, 16, 16>}, {transform_indices = @transform_6, window_bounds = array<i64: 1, 1, 1, 16>}, {transform_indices = @transform_7, window_bounds = array<i64: 1, 1, 1, 16>}]} {
    %c16_i32 = arith.constant 16 : i32
    %0 = arith.muli %arg1, %c16_i32 : i32
    %c1_i32 = arith.constant 1 : i32
    %1 = arith.subi %0, %c1_i32 : i32
    %c0 = arith.constant 0 : index
    %c0_0 = arith.constant 0 : index
    %2 = vector.load %arg5[%c0, %c0_0] : memref<1x16xf32, #tpu.memory_space<vmem>>, vector<1x16xf32>
    %c0_1 = arith.constant 0 : index
    %c0_2 = arith.constant 0 : index
    %3 = vector.load %arg6[%c0_1, %c0_2] : memref<1x16xf32, #tpu.memory_space<vmem>>, vector<1x16xf32>
    %c0_3 = arith.constant 0 : index
    %c0_4 = arith.constant 0 : index
    %c0_5 = arith.constant 0 : index
    %c0_6 = arith.constant 0 : index
    %4 = vector.load %arg3[%c0_3, %c0_4, %c0_5, %c0_6] : memref<1x1x2x16xbf16, #tpu.memory_space<vmem>>, vector<1x1x2x16xbf16>
    %5 = vector.shape_cast %4 : vector<1x1x2x16xbf16> to vector<2x16xbf16>
    %6 = arith.extf %5 : vector<2x16xbf16> to vector<2x16xf32>
    %c0_7 = arith.constant 0 : index
    %c0_8 = arith.constant 0 : index
    %c0_9 = arith.constant 0 : index
    %7 = vector.load %arg2[%c0_7, %c0_8, %c0_9] : memref<1x16x16xbf16, #tpu.memory_space<vmem>>, vector<1x16x16xbf16>
    %8 = vector.shape_cast %7 : vector<1x16x16xbf16> to vector<16x16xbf16>
    %9 = arith.extf %8 : vector<16x16xbf16> to vector<16x16xf32>
    %10 = vector.extract_strided_slice %6 {offsets = [0, 0], sizes = [1, 16], strides = [1, 1]} : vector<2x16xf32> to vector<1x16xf32>
    %11 = arith.mulf %10, %2 : vector<1x16xf32>
    %12 = arith.addf %11, %3 : vector<1x16xf32>
    %cst = arith.constant 2.000000e-01 : f32
    %13 = vector.broadcast %cst : f32 to vector<1x16xf32>
    %14 = arith.mulf %13, %12 : vector<1x16xf32>
    %15 = arith.maximumf %12, %14 : vector<1x16xf32>
    %16 = tpu.iota {dimensions = array<i32: 0>} : vector<1x1xi32>
    %17 = vector.broadcast %1 : i32 to vector<1x1xi32>
    %18 = arith.addi %17, %16 : vector<1x1xi32>
    %c0_i32 = arith.constant 0 : i32
    %19 = vector.broadcast %c0_i32 : i32 to vector<1x1xi32>
    %20 = arith.cmpi sge, %18, %19 : vector<1x1xi32>
    %c32_i32 = arith.constant 32 : i32
    %21 = vector.broadcast %c32_i32 : i32 to vector<1x1xi32>
    %22 = arith.cmpi slt, %18, %21 : vector<1x1xi32>
    %23 = arith.andi %20, %22 : vector<1x1xi1>
    %cst_10 = arith.constant 0.000000e+00 : f32
    %24 = vector.shape_cast %23 : vector<1x1xi1> to vector<1x1xi1>
    %25 = vector.broadcast %24 : vector<1x1xi1> to vector<1x16xi1>
    %26 = vector.broadcast %cst_10 : f32 to vector<1x16xf32>
    %27 = arith.select %25, %15, %26 : vector<1x16xi1>, vector<1x16xf32>
    %c0_11 = arith.constant 0 : index
    %c0_12 = arith.constant 0 : index
    %28 = vector.load %arg10[%c0_11, %c0_12] : memref<18x16xf32, #tpu.memory_space<vmem>>, vector<1x16xf32>
    tpu.vector_store %arg10[%c0_11, %c0_12], %27 {strides = array<i32>} : memref<18x16xf32, #tpu.memory_space<vmem>>, vector<1x16xf32>,
    %29 = vector.broadcast %2 : vector<1x16xf32> to vector<16x16xf32>
    %30 = arith.mulf %9, %29 : vector<16x16xf32>
    %31 = vector.broadcast %3 : vector<1x16xf32> to vector<16x16xf32>
    %32 = arith.addf %30, %31 : vector<16x16xf32>
    %cst_13 = arith.constant 2.000000e-01 : f32
    %33 = vector.broadcast %cst_13 : f32 to vector<16x16xf32>
    %34 = arith.mulf %33, %32 : vector<16x16xf32>
    %35 = arith.maximumf %32, %34 : vector<16x16xf32>
    %c1 = arith.constant 1 : index
    %c0_14 = arith.constant 0 : index
    %36 = vector.load %arg10[%c1, %c0_14] : memref<18x16xf32, #tpu.memory_space<vmem>>, vector<16x16xf32>
    tpu.vector_store %arg10[%c1, %c0_14], %35 {strides = array<i32>} : memref<18x16xf32, #tpu.memory_space<vmem>>, vector<16x16xf32>,
    %37 = vector.extract_strided_slice %6 {offsets = [1, 0], sizes = [1, 16], strides = [1, 1]} : vector<2x16xf32> to vector<1x16xf32>
    %c1_i32_15 = arith.constant 1 : i32
    %38 = arith.addi %1, %c1_i32_15 : i32
    %c16_i32_16 = arith.constant 16 : i32
    %39 = arith.addi %38, %c16_i32_16 : i32
    %40 = arith.mulf %37, %2 : vector<1x16xf32>
    %41 = arith.addf %40, %3 : vector<1x16xf32>
    %cst_17 = arith.constant 2.000000e-01 : f32
    %42 = vector.broadcast %cst_17 : f32 to vector<1x16xf32>
    %43 = arith.mulf %42, %41 : vector<1x16xf32>
    %44 = arith.maximumf %41, %43 : vector<1x16xf32>
    %45 = tpu.iota {dimensions = array<i32: 0>} : vector<1x1xi32>
    %46 = vector.broadcast %39 : i32 to vector<1x1xi32>
    %47 = arith.addi %46, %45 : vector<1x1xi32>
    %c0_i32_18 = arith.constant 0 : i32
    %48 = vector.broadcast %c0_i32_18 : i32 to vector<1x1xi32>
    %49 = arith.cmpi sge, %47, %48 : vector<1x1xi32>
    %c32_i32_19 = arith.constant 32 : i32
    %50 = vector.broadcast %c32_i32_19 : i32 to vector<1x1xi32>
    %51 = arith.cmpi slt, %47, %50 : vector<1x1xi32>
    %52 = arith.andi %49, %51 : vector<1x1xi1>
    %cst_20 = arith.constant 0.000000e+00 : f32
    %53 = vector.shape_cast %52 : vector<1x1xi1> to vector<1x1xi1>
    %54 = vector.broadcast %53 : vector<1x1xi1> to vector<1x16xi1>
    %55 = vector.broadcast %cst_20 : f32 to vector<1x16xf32>
    %56 = arith.select %54, %44, %55 : vector<1x16xi1>, vector<1x16xf32>
    %c17 = arith.constant 17 : index
    %c0_21 = arith.constant 0 : index
    %57 = vector.load %arg10[%c17, %c0_21] : memref<18x16xf32, #tpu.memory_space<vmem>>, vector<1x16xf32>
    tpu.vector_store %arg10[%c17, %c0_21], %56 {strides = array<i32>} : memref<18x16xf32, #tpu.memory_space<vmem>>, vector<1x16xf32>,
    %c0_22 = arith.constant 0 : index
    %c0_23 = arith.constant 0 : index
    %58 = vector.load %arg10[%c0_22, %c0_23] : memref<18x16xf32, #tpu.memory_space<vmem>>, vector<16x16xf32>
    %59 = arith.truncf %58 : vector<16x16xf32> to vector<16x16xbf16>
    %c1_24 = arith.constant 1 : index
    %c0_25 = arith.constant 0 : index
    %60 = vector.load %arg10[%c1_24, %c0_25] : memref<18x16xf32, #tpu.memory_space<vmem>>, vector<16x16xf32>
    %61 = arith.truncf %60 : vector<16x16xf32> to vector<16x16xbf16>
    %c2 = arith.constant 2 : index
    %c0_26 = arith.constant 0 : index
    %62 = vector.load %arg10[%c2, %c0_26] : memref<18x16xf32, #tpu.memory_space<vmem>>, vector<16x16xf32>
    %63 = arith.truncf %62 : vector<16x16xf32> to vector<16x16xbf16>
    %64 = tpu.concatenate %59, %61, %63 in 1 : vector<16x16xbf16>, vector<16x16xbf16>, vector<16x16xbf16> -> vector<16x48xbf16>
    %c0_27 = arith.constant 0 : index
    %c0_28 = arith.constant 0 : index
    %65 = vector.load %arg4[%c0_27, %c0_28] : memref<48x16xbf16, #tpu.memory_space<vmem>>, vector<48x16xbf16>
    %cst_29 = arith.constant dense<0.000000e+00> : vector<16x16xf32>
    %66 = tpu.matmul %64, %65, %cst_29 {dimension_numbers = #tpu.dot_dimension_numbers<[1], [0], [0], [1], [0, 0, 1, 1], [], []>} : vector<16x48xbf16>, vector<48x16xbf16>, vector<16x16xf32> -> vector<16x16xf32>
    %67 = arith.truncf %66 : vector<16x16xf32> to vector<16x16xbf16>
    %c0_30 = arith.constant 0 : index
    %c0_31 = arith.constant 0 : index
    %c0_32 = arith.constant 0 : index
    %68 = vector.load %arg7[%c0_30, %c0_31, %c0_32] : memref<1x16x16xbf16, #tpu.memory_space<vmem>>, vector<1x16x16xbf16>
    %69 = vector.shape_cast %68 : vector<1x16x16xbf16> to vector<16x16xbf16>
    %70 = vector.shape_cast %67 : vector<16x16xbf16> to vector<1x16x16xbf16>
    tpu.vector_store %arg7[%c0_30, %c0_31, %c0_32], %70 {strides = array<i32>} : memref<1x16x16xbf16, #tpu.memory_space<vmem>>, vector<1x16x16xbf16>,
    %71 = arith.truncf %66 : vector<16x16xf32> to vector<16x16xbf16>
    %72 = arith.extf %71 : vector<16x16xbf16> to vector<16x16xf32>
    %cst_33 = arith.constant dense<0.000000e+00> : vector<16xf32>
    %73 = vector.multi_reduction <add>, %72, %cst_33 [0] : vector<16x16xf32> to vector<16xf32>
    %74 = vector.shape_cast %73 : vector<16xf32> to vector<1x16xf32>
    %c0_34 = arith.constant 0 : index
    %c0_35 = arith.constant 0 : index
    %c0_36 = arith.constant 0 : index
    %c0_37 = arith.constant 0 : index
    %75 = vector.load %arg8[%c0_34, %c0_35, %c0_36, %c0_37] : memref<1x1x1x16xf32, #tpu.memory_space<vmem>>, vector<1x1x1x16xf32>
    %76 = vector.shape_cast %75 : vector<1x1x1x16xf32> to vector<1x16xf32>
    %77 = vector.shape_cast %74 : vector<1x16xf32> to vector<1x1x1x16xf32>
    tpu.vector_store %arg8[%c0_34, %c0_35, %c0_36, %c0_37], %77 {strides = array<i32>} : memref<1x1x1x16xf32, #tpu.memory_space<vmem>>, vector<1x1x1x16xf32>,
    %78 = arith.mulf %72, %72 : vector<16x16xf32>
    %cst_38 = arith.constant dense<0.000000e+00> : vector<16xf32>
    %79 = vector.multi_reduction <add>, %78, %cst_38 [0] : vector<16x16xf32> to vector<16xf32>
    %80 = vector.shape_cast %79 : vector<16xf32> to vector<1x16xf32>
    %c0_39 = arith.constant 0 : index
    %c0_40 = arith.constant 0 : index
    %c0_41 = arith.constant 0 : index
    %c0_42 = arith.constant 0 : index
    %81 = vector.load %arg9[%c0_39, %c0_40, %c0_41, %c0_42] : memref<1x1x1x16xf32, #tpu.memory_space<vmem>>, vector<1x1x1x16xf32>
    %82 = vector.shape_cast %81 : vector<1x1x1x16xf32> to vector<1x16xf32>
    %83 = vector.shape_cast %80 : vector<1x16xf32> to vector<1x1x1x16xf32>
    tpu.vector_store %arg9[%c0_39, %c0_40, %c0_41, %c0_42], %83 {strides = array<i32>} : memref<1x1x1x16xf32, #tpu.memory_space<vmem>>, vector<1x1x1x16xf32>,
    return
  }
  func.func @transform_0(%arg0: i32, %arg1: i32) -> (i32, i32, i32) {
    %c0_i32 = arith.constant 0 : i32
    %c0_i32_0 = arith.constant 0 : i32
    return %arg0, %arg1, %c0_i32 : i32, i32, i32
  }
  func.func @transform_1(%arg0: i32, %arg1: i32) -> (i32, i32, i32, i32) {
    %c0_i32 = arith.constant 0 : i32
    %c0_i32_0 = arith.constant 0 : i32
    %c0_i32_1 = arith.constant 0 : i32
    return %arg0, %arg1, %c0_i32, %c0_i32_0 : i32, i32, i32, i32
  }
  func.func @transform_2(%arg0: i32, %arg1: i32) -> (i32, i32) {
    %c0_i32 = arith.constant 0 : i32
    %c0_i32_0 = arith.constant 0 : i32
    %c0_i32_1 = arith.constant 0 : i32
    return %c0_i32, %c0_i32_0 : i32, i32
  }
  func.func @transform_3(%arg0: i32, %arg1: i32) -> (i32, i32) {
    %c0_i32 = arith.constant 0 : i32
    %c0_i32_0 = arith.constant 0 : i32
    %c0_i32_1 = arith.constant 0 : i32
    return %c0_i32, %c0_i32_0 : i32, i32
  }
  func.func @transform_4(%arg0: i32, %arg1: i32) -> (i32, i32) {
    %c0_i32 = arith.constant 0 : i32
    %c0_i32_0 = arith.constant 0 : i32
    %c0_i32_1 = arith.constant 0 : i32
    return %c0_i32, %c0_i32_0 : i32, i32
  }
  func.func @transform_5(%arg0: i32, %arg1: i32) -> (i32, i32, i32) {
    %c0_i32 = arith.constant 0 : i32
    %c0_i32_0 = arith.constant 0 : i32
    return %arg0, %arg1, %c0_i32 : i32, i32, i32
  }
  func.func @transform_6(%arg0: i32, %arg1: i32) -> (i32, i32, i32, i32) {
    %c0_i32 = arith.constant 0 : i32
    %c0_i32_0 = arith.constant 0 : i32
    %c0_i32_1 = arith.constant 0 : i32
    return %arg0, %arg1, %c0_i32, %c0_i32_0 : i32, i32, i32, i32
  }
  func.func @transform_7(%arg0: i32, %arg1: i32) -> (i32, i32, i32, i32) {
    %c0_i32 = arith.constant 0 : i32
    %c0_i32_0 = arith.constant 0 : i32
    %c0_i32_1 = arith.constant 0 : i32
    return %arg0, %arg1, %c0_i32, %c0_i32_0 : i32, i32, i32, i32
  }
}

module attributes {stable_mosaic.version = 11 : i64} {
  func.func @kernel(%arg0: i32, %arg1: i32, %arg2: memref<1x16x32xbf16, #tpu.memory_space<vmem>>, %arg3: memref<1x1x2x32xbf16, #tpu.memory_space<vmem>>, %arg4: memref<96x32xbf16, #tpu.memory_space<vmem>>, %arg5: memref<1x32xf32, #tpu.memory_space<vmem>>, %arg6: memref<1x32xf32, #tpu.memory_space<vmem>>, %arg7: memref<1x16x32xbf16, #tpu.memory_space<vmem>>, %arg8: memref<18x32xf32, #tpu.memory_space<vmem>>) attributes {dimension_semantics = [#tpu.dimension_semantics<parallel>, #tpu.dimension_semantics<parallel>], iteration_bounds = array<i64: 2, 1>, scalar_prefetch = 0 : i64, scratch_operands = 1 : i64, tpu.core_type = #tpu.core_type<tc>, window_params = [{transform_indices = @transform_0, window_bounds = array<i64: 1, 16, 32>}, {transform_indices = @transform_1, window_bounds = array<i64: 1, 1, 2, 32>}, {pipeline_mode = #tpu.pipeline_mode<synchronous>, transform_indices = @transform_2, window_bounds = array<i64: 96, 32>}, {pipeline_mode = #tpu.pipeline_mode<synchronous>, transform_indices = @transform_3, window_bounds = array<i64: 1, 32>}, {pipeline_mode = #tpu.pipeline_mode<synchronous>, transform_indices = @transform_4, window_bounds = array<i64: 1, 32>}, {transform_indices = @transform_5, window_bounds = array<i64: 1, 16, 32>}]} {
    %c16_i32 = arith.constant 16 : i32
    %0 = arith.muli %arg1, %c16_i32 : i32
    %c1_i32 = arith.constant 1 : i32
    %1 = arith.subi %0, %c1_i32 : i32
    %c0 = arith.constant 0 : index
    %c0_0 = arith.constant 0 : index
    %2 = vector.load %arg5[%c0, %c0_0] : memref<1x32xf32, #tpu.memory_space<vmem>>, vector<1x32xf32>
    %c0_1 = arith.constant 0 : index
    %c0_2 = arith.constant 0 : index
    %3 = vector.load %arg6[%c0_1, %c0_2] : memref<1x32xf32, #tpu.memory_space<vmem>>, vector<1x32xf32>
    %c0_3 = arith.constant 0 : index
    %c0_4 = arith.constant 0 : index
    %c0_5 = arith.constant 0 : index
    %c0_6 = arith.constant 0 : index
    %4 = vector.load %arg3[%c0_3, %c0_4, %c0_5, %c0_6] : memref<1x1x2x32xbf16, #tpu.memory_space<vmem>>, vector<1x1x2x32xbf16>
    %5 = vector.shape_cast %4 : vector<1x1x2x32xbf16> to vector<2x32xbf16>
    %6 = arith.extf %5 : vector<2x32xbf16> to vector<2x32xf32>
    %c0_7 = arith.constant 0 : index
    %c0_8 = arith.constant 0 : index
    %c0_9 = arith.constant 0 : index
    %7 = vector.load %arg2[%c0_7, %c0_8, %c0_9] : memref<1x16x32xbf16, #tpu.memory_space<vmem>>, vector<1x16x32xbf16>
    %8 = vector.shape_cast %7 : vector<1x16x32xbf16> to vector<16x32xbf16>
    %9 = arith.extf %8 : vector<16x32xbf16> to vector<16x32xf32>
    %10 = vector.extract_strided_slice %6 {offsets = [0, 0], sizes = [1, 32], strides = [1, 1]} : vector<2x32xf32> to vector<1x32xf32>
    %11 = arith.mulf %10, %2 : vector<1x32xf32>
    %12 = arith.addf %11, %3 : vector<1x32xf32>
    %cst = arith.constant 2.000000e-01 : f32
    %13 = vector.broadcast %cst : f32 to vector<1x32xf32>
    %14 = arith.mulf %13, %12 : vector<1x32xf32>
    %15 = arith.maximumf %12, %14 : vector<1x32xf32>
    %16 = tpu.iota {dimensions = array<i32: 0>} : vector<1x1xi32>
    %17 = vector.broadcast %1 : i32 to vector<1x1xi32>
    %18 = arith.addi %17, %16 : vector<1x1xi32>
    %c0_i32 = arith.constant 0 : i32
    %19 = vector.broadcast %c0_i32 : i32 to vector<1x1xi32>
    %20 = arith.cmpi sge, %18, %19 : vector<1x1xi32>
    %c16_i32_10 = arith.constant 16 : i32
    %21 = vector.broadcast %c16_i32_10 : i32 to vector<1x1xi32>
    %22 = arith.cmpi slt, %18, %21 : vector<1x1xi32>
    %23 = arith.andi %20, %22 : vector<1x1xi1>
    %cst_11 = arith.constant 0.000000e+00 : f32
    %24 = vector.shape_cast %23 : vector<1x1xi1> to vector<1x1xi1>
    %25 = vector.broadcast %24 : vector<1x1xi1> to vector<1x32xi1>
    %26 = vector.broadcast %cst_11 : f32 to vector<1x32xf32>
    %27 = arith.select %25, %15, %26 : vector<1x32xi1>, vector<1x32xf32>
    %c0_12 = arith.constant 0 : index
    %c0_13 = arith.constant 0 : index
    %28 = vector.load %arg8[%c0_12, %c0_13] : memref<18x32xf32, #tpu.memory_space<vmem>>, vector<1x32xf32>
    tpu.vector_store %arg8[%c0_12, %c0_13], %27 {strides = array<i32>} : memref<18x32xf32, #tpu.memory_space<vmem>>, vector<1x32xf32>,
    %29 = vector.broadcast %2 : vector<1x32xf32> to vector<16x32xf32>
    %30 = arith.mulf %9, %29 : vector<16x32xf32>
    %31 = vector.broadcast %3 : vector<1x32xf32> to vector<16x32xf32>
    %32 = arith.addf %30, %31 : vector<16x32xf32>
    %cst_14 = arith.constant 2.000000e-01 : f32
    %33 = vector.broadcast %cst_14 : f32 to vector<16x32xf32>
    %34 = arith.mulf %33, %32 : vector<16x32xf32>
    %35 = arith.maximumf %32, %34 : vector<16x32xf32>
    %c1 = arith.constant 1 : index
    %c0_15 = arith.constant 0 : index
    %36 = vector.load %arg8[%c1, %c0_15] : memref<18x32xf32, #tpu.memory_space<vmem>>, vector<16x32xf32>
    tpu.vector_store %arg8[%c1, %c0_15], %35 {strides = array<i32>} : memref<18x32xf32, #tpu.memory_space<vmem>>, vector<16x32xf32>,
    %37 = vector.extract_strided_slice %6 {offsets = [1, 0], sizes = [1, 32], strides = [1, 1]} : vector<2x32xf32> to vector<1x32xf32>
    %c1_i32_16 = arith.constant 1 : i32
    %38 = arith.addi %1, %c1_i32_16 : i32
    %c16_i32_17 = arith.constant 16 : i32
    %39 = arith.addi %38, %c16_i32_17 : i32
    %40 = arith.mulf %37, %2 : vector<1x32xf32>
    %41 = arith.addf %40, %3 : vector<1x32xf32>
    %cst_18 = arith.constant 2.000000e-01 : f32
    %42 = vector.broadcast %cst_18 : f32 to vector<1x32xf32>
    %43 = arith.mulf %42, %41 : vector<1x32xf32>
    %44 = arith.maximumf %41, %43 : vector<1x32xf32>
    %45 = tpu.iota {dimensions = array<i32: 0>} : vector<1x1xi32>
    %46 = vector.broadcast %39 : i32 to vector<1x1xi32>
    %47 = arith.addi %46, %45 : vector<1x1xi32>
    %c0_i32_19 = arith.constant 0 : i32
    %48 = vector.broadcast %c0_i32_19 : i32 to vector<1x1xi32>
    %49 = arith.cmpi sge, %47, %48 : vector<1x1xi32>
    %c16_i32_20 = arith.constant 16 : i32
    %50 = vector.broadcast %c16_i32_20 : i32 to vector<1x1xi32>
    %51 = arith.cmpi slt, %47, %50 : vector<1x1xi32>
    %52 = arith.andi %49, %51 : vector<1x1xi1>
    %cst_21 = arith.constant 0.000000e+00 : f32
    %53 = vector.shape_cast %52 : vector<1x1xi1> to vector<1x1xi1>
    %54 = vector.broadcast %53 : vector<1x1xi1> to vector<1x32xi1>
    %55 = vector.broadcast %cst_21 : f32 to vector<1x32xf32>
    %56 = arith.select %54, %44, %55 : vector<1x32xi1>, vector<1x32xf32>
    %c17 = arith.constant 17 : index
    %c0_22 = arith.constant 0 : index
    %57 = vector.load %arg8[%c17, %c0_22] : memref<18x32xf32, #tpu.memory_space<vmem>>, vector<1x32xf32>
    tpu.vector_store %arg8[%c17, %c0_22], %56 {strides = array<i32>} : memref<18x32xf32, #tpu.memory_space<vmem>>, vector<1x32xf32>,
    %c0_23 = arith.constant 0 : index
    %c0_24 = arith.constant 0 : index
    %58 = vector.load %arg8[%c0_23, %c0_24] : memref<18x32xf32, #tpu.memory_space<vmem>>, vector<16x32xf32>
    %59 = arith.truncf %58 : vector<16x32xf32> to vector<16x32xbf16>
    %c1_25 = arith.constant 1 : index
    %c0_26 = arith.constant 0 : index
    %60 = vector.load %arg8[%c1_25, %c0_26] : memref<18x32xf32, #tpu.memory_space<vmem>>, vector<16x32xf32>
    %61 = arith.truncf %60 : vector<16x32xf32> to vector<16x32xbf16>
    %c2 = arith.constant 2 : index
    %c0_27 = arith.constant 0 : index
    %62 = vector.load %arg8[%c2, %c0_27] : memref<18x32xf32, #tpu.memory_space<vmem>>, vector<16x32xf32>
    %63 = arith.truncf %62 : vector<16x32xf32> to vector<16x32xbf16>
    %64 = tpu.concatenate %59, %61, %63 in 1 : vector<16x32xbf16>, vector<16x32xbf16>, vector<16x32xbf16> -> vector<16x96xbf16>
    %c0_28 = arith.constant 0 : index
    %c0_29 = arith.constant 0 : index
    %65 = vector.load %arg4[%c0_28, %c0_29] : memref<96x32xbf16, #tpu.memory_space<vmem>>, vector<96x32xbf16>
    %cst_30 = arith.constant dense<0.000000e+00> : vector<16x32xf32>
    %66 = tpu.matmul %64, %65, %cst_30 {dimension_numbers = #tpu.dot_dimension_numbers<[1], [0], [0], [1], [0, 0, 1, 1], [], []>} : vector<16x96xbf16>, vector<96x32xbf16>, vector<16x32xf32> -> vector<16x32xf32>
    %67 = arith.truncf %66 : vector<16x32xf32> to vector<16x32xbf16>
    %c0_31 = arith.constant 0 : index
    %c0_32 = arith.constant 0 : index
    %c0_33 = arith.constant 0 : index
    %68 = vector.load %arg7[%c0_31, %c0_32, %c0_33] : memref<1x16x32xbf16, #tpu.memory_space<vmem>>, vector<1x16x32xbf16>
    %69 = vector.shape_cast %68 : vector<1x16x32xbf16> to vector<16x32xbf16>
    %70 = vector.shape_cast %67 : vector<16x32xbf16> to vector<1x16x32xbf16>
    tpu.vector_store %arg7[%c0_31, %c0_32, %c0_33], %70 {strides = array<i32>} : memref<1x16x32xbf16, #tpu.memory_space<vmem>>, vector<1x16x32xbf16>,
    return
  }
  func.func @transform_0(%arg0: i32, %arg1: i32) -> (i32, i32, i32) {
    %c0_i32 = arith.constant 0 : i32
    %c0_i32_0 = arith.constant 0 : i32
    return %arg0, %arg1, %c0_i32 : i32, i32, i32
  }
  func.func @transform_1(%arg0: i32, %arg1: i32) -> (i32, i32, i32, i32) {
    %c0_i32 = arith.constant 0 : i32
    %c0_i32_0 = arith.constant 0 : i32
    %c0_i32_1 = arith.constant 0 : i32
    return %arg0, %arg1, %c0_i32, %c0_i32_0 : i32, i32, i32, i32
  }
  func.func @transform_2(%arg0: i32, %arg1: i32) -> (i32, i32) {
    %c0_i32 = arith.constant 0 : i32
    %c0_i32_0 = arith.constant 0 : i32
    %c0_i32_1 = arith.constant 0 : i32
    return %c0_i32, %c0_i32_0 : i32, i32
  }
  func.func @transform_3(%arg0: i32, %arg1: i32) -> (i32, i32) {
    %c0_i32 = arith.constant 0 : i32
    %c0_i32_0 = arith.constant 0 : i32
    %c0_i32_1 = arith.constant 0 : i32
    return %c0_i32, %c0_i32_0 : i32, i32
  }
  func.func @transform_4(%arg0: i32, %arg1: i32) -> (i32, i32) {
    %c0_i32 = arith.constant 0 : i32
    %c0_i32_0 = arith.constant 0 : i32
    %c0_i32_1 = arith.constant 0 : i32
    return %c0_i32, %c0_i32_0 : i32, i32
  }
  func.func @transform_5(%arg0: i32, %arg1: i32) -> (i32, i32, i32) {
    %c0_i32 = arith.constant 0 : i32
    %c0_i32_0 = arith.constant 0 : i32
    return %arg0, %arg1, %c0_i32 : i32, i32, i32
  }
}

module attributes {stable_mosaic.version = 11 : i64} {
  func.func @kernel(%arg0: i32, %arg1: i32, %arg2: memref<1x16x32xbf16, #tpu.memory_space<vmem>>, %arg3: memref<1x1x4x32xbf16, #tpu.memory_space<vmem>>, %arg4: memref<160x16xbf16, #tpu.memory_space<vmem>>, %arg5: memref<1x32xf32, #tpu.memory_space<vmem>>, %arg6: memref<1x32xf32, #tpu.memory_space<vmem>>, %arg7: memref<1x16x16xf32, #tpu.memory_space<vmem>>, %arg8: memref<20x32xf32, #tpu.memory_space<vmem>>) attributes {dimension_semantics = [#tpu.dimension_semantics<parallel>, #tpu.dimension_semantics<parallel>], iteration_bounds = array<i64: 2, 1>, scalar_prefetch = 0 : i64, scratch_operands = 1 : i64, tpu.core_type = #tpu.core_type<tc>, window_params = [{transform_indices = @transform_0, window_bounds = array<i64: 1, 16, 32>}, {transform_indices = @transform_1, window_bounds = array<i64: 1, 1, 4, 32>}, {pipeline_mode = #tpu.pipeline_mode<synchronous>, transform_indices = @transform_2, window_bounds = array<i64: 160, 16>}, {pipeline_mode = #tpu.pipeline_mode<synchronous>, transform_indices = @transform_3, window_bounds = array<i64: 1, 32>}, {pipeline_mode = #tpu.pipeline_mode<synchronous>, transform_indices = @transform_4, window_bounds = array<i64: 1, 32>}, {transform_indices = @transform_5, window_bounds = array<i64: 1, 16, 16>}]} {
    %c16_i32 = arith.constant 16 : i32
    %0 = arith.muli %arg1, %c16_i32 : i32
    %c2_i32 = arith.constant 2 : i32
    %1 = arith.subi %0, %c2_i32 : i32
    %c0 = arith.constant 0 : index
    %c0_0 = arith.constant 0 : index
    %c0_1 = arith.constant 0 : index
    %c0_2 = arith.constant 0 : index
    %2 = vector.load %arg3[%c0, %c0_0, %c0_1, %c0_2] : memref<1x1x4x32xbf16, #tpu.memory_space<vmem>>, vector<1x1x4x32xbf16>
    %3 = vector.shape_cast %2 : vector<1x1x4x32xbf16> to vector<4x32xbf16>
    %4 = arith.extf %3 : vector<4x32xbf16> to vector<4x32xf32>
    %c0_3 = arith.constant 0 : index
    %c0_4 = arith.constant 0 : index
    %c0_5 = arith.constant 0 : index
    %5 = vector.load %arg2[%c0_3, %c0_4, %c0_5] : memref<1x16x32xbf16, #tpu.memory_space<vmem>>, vector<1x16x32xbf16>
    %6 = vector.shape_cast %5 : vector<1x16x32xbf16> to vector<16x32xbf16>
    %7 = arith.extf %6 : vector<16x32xbf16> to vector<16x32xf32>
    %8 = vector.extract_strided_slice %4 {offsets = [0, 0], sizes = [2, 32], strides = [1, 1]} : vector<4x32xf32> to vector<2x32xf32>
    %cst = arith.constant 2.000000e-01 : f32
    %9 = vector.broadcast %cst : f32 to vector<2x32xf32>
    %10 = arith.mulf %9, %8 : vector<2x32xf32>
    %11 = arith.maximumf %8, %10 : vector<2x32xf32>
    %12 = tpu.iota {dimensions = array<i32: 0>} : vector<2x1xi32>
    %13 = vector.broadcast %1 : i32 to vector<2x1xi32>
    %14 = arith.addi %13, %12 : vector<2x1xi32>
    %c0_i32 = arith.constant 0 : i32
    %15 = vector.broadcast %c0_i32 : i32 to vector<2x1xi32>
    %16 = arith.cmpi sge, %14, %15 : vector<2x1xi32>
    %c16_i32_6 = arith.constant 16 : i32
    %17 = vector.broadcast %c16_i32_6 : i32 to vector<2x1xi32>
    %18 = arith.cmpi slt, %14, %17 : vector<2x1xi32>
    %19 = arith.andi %16, %18 : vector<2x1xi1>
    %cst_7 = arith.constant 0.000000e+00 : f32
    %20 = vector.shape_cast %19 : vector<2x1xi1> to vector<2x1xi1>
    %21 = vector.broadcast %20 : vector<2x1xi1> to vector<2x32xi1>
    %22 = vector.broadcast %cst_7 : f32 to vector<2x32xf32>
    %23 = arith.select %21, %11, %22 : vector<2x32xi1>, vector<2x32xf32>
    %c0_8 = arith.constant 0 : index
    %c0_9 = arith.constant 0 : index
    %24 = vector.load %arg8[%c0_8, %c0_9] : memref<20x32xf32, #tpu.memory_space<vmem>>, vector<2x32xf32>
    tpu.vector_store %arg8[%c0_8, %c0_9], %23 {strides = array<i32>} : memref<20x32xf32, #tpu.memory_space<vmem>>, vector<2x32xf32>,
    %cst_10 = arith.constant 2.000000e-01 : f32
    %25 = vector.broadcast %cst_10 : f32 to vector<16x32xf32>
    %26 = arith.mulf %25, %7 : vector<16x32xf32>
    %27 = arith.maximumf %7, %26 : vector<16x32xf32>
    %c2 = arith.constant 2 : index
    %c0_11 = arith.constant 0 : index
    %28 = vector.load %arg8[%c2, %c0_11] : memref<20x32xf32, #tpu.memory_space<vmem>>, vector<16x32xf32>
    tpu.vector_store %arg8[%c2, %c0_11], %27 {strides = array<i32>} : memref<20x32xf32, #tpu.memory_space<vmem>>, vector<16x32xf32>,
    %29 = vector.extract_strided_slice %4 {offsets = [2, 0], sizes = [2, 32], strides = [1, 1]} : vector<4x32xf32> to vector<2x32xf32>
    %c2_i32_12 = arith.constant 2 : i32
    %30 = arith.addi %1, %c2_i32_12 : i32
    %c16_i32_13 = arith.constant 16 : i32
    %31 = arith.addi %30, %c16_i32_13 : i32
    %cst_14 = arith.constant 2.000000e-01 : f32
    %32 = vector.broadcast %cst_14 : f32 to vector<2x32xf32>
    %33 = arith.mulf %32, %29 : vector<2x32xf32>
    %34 = arith.maximumf %29, %33 : vector<2x32xf32>
    %35 = tpu.iota {dimensions = array<i32: 0>} : vector<2x1xi32>
    %36 = vector.broadcast %31 : i32 to vector<2x1xi32>
    %37 = arith.addi %36, %35 : vector<2x1xi32>
    %c0_i32_15 = arith.constant 0 : i32
    %38 = vector.broadcast %c0_i32_15 : i32 to vector<2x1xi32>
    %39 = arith.cmpi sge, %37, %38 : vector<2x1xi32>
    %c16_i32_16 = arith.constant 16 : i32
    %40 = vector.broadcast %c16_i32_16 : i32 to vector<2x1xi32>
    %41 = arith.cmpi slt, %37, %40 : vector<2x1xi32>
    %42 = arith.andi %39, %41 : vector<2x1xi1>
    %cst_17 = arith.constant 0.000000e+00 : f32
    %43 = vector.shape_cast %42 : vector<2x1xi1> to vector<2x1xi1>
    %44 = vector.broadcast %43 : vector<2x1xi1> to vector<2x32xi1>
    %45 = vector.broadcast %cst_17 : f32 to vector<2x32xf32>
    %46 = arith.select %44, %34, %45 : vector<2x32xi1>, vector<2x32xf32>
    %c18 = arith.constant 18 : index
    %c0_18 = arith.constant 0 : index
    %47 = vector.load %arg8[%c18, %c0_18] : memref<20x32xf32, #tpu.memory_space<vmem>>, vector<2x32xf32>
    tpu.vector_store %arg8[%c18, %c0_18], %46 {strides = array<i32>} : memref<20x32xf32, #tpu.memory_space<vmem>>, vector<2x32xf32>,
    %c0_19 = arith.constant 0 : index
    %c0_20 = arith.constant 0 : index
    %48 = vector.load %arg8[%c0_19, %c0_20] : memref<20x32xf32, #tpu.memory_space<vmem>>, vector<16x32xf32>
    %49 = arith.truncf %48 : vector<16x32xf32> to vector<16x32xbf16>
    %c1 = arith.constant 1 : index
    %c0_21 = arith.constant 0 : index
    %50 = vector.load %arg8[%c1, %c0_21] : memref<20x32xf32, #tpu.memory_space<vmem>>, vector<16x32xf32>
    %51 = arith.truncf %50 : vector<16x32xf32> to vector<16x32xbf16>
    %c2_22 = arith.constant 2 : index
    %c0_23 = arith.constant 0 : index
    %52 = vector.load %arg8[%c2_22, %c0_23] : memref<20x32xf32, #tpu.memory_space<vmem>>, vector<16x32xf32>
    %53 = arith.truncf %52 : vector<16x32xf32> to vector<16x32xbf16>
    %c3 = arith.constant 3 : index
    %c0_24 = arith.constant 0 : index
    %54 = vector.load %arg8[%c3, %c0_24] : memref<20x32xf32, #tpu.memory_space<vmem>>, vector<16x32xf32>
    %55 = arith.truncf %54 : vector<16x32xf32> to vector<16x32xbf16>
    %c4 = arith.constant 4 : index
    %c0_25 = arith.constant 0 : index
    %56 = vector.load %arg8[%c4, %c0_25] : memref<20x32xf32, #tpu.memory_space<vmem>>, vector<16x32xf32>
    %57 = arith.truncf %56 : vector<16x32xf32> to vector<16x32xbf16>
    %58 = tpu.concatenate %49, %51, %53, %55, %57 in 1 : vector<16x32xbf16>, vector<16x32xbf16>, vector<16x32xbf16>, vector<16x32xbf16>, vector<16x32xbf16> -> vector<16x160xbf16>
    %c0_26 = arith.constant 0 : index
    %c0_27 = arith.constant 0 : index
    %59 = vector.load %arg4[%c0_26, %c0_27] : memref<160x16xbf16, #tpu.memory_space<vmem>>, vector<160x16xbf16>
    %cst_28 = arith.constant dense<0.000000e+00> : vector<16x16xf32>
    %60 = tpu.matmul %58, %59, %cst_28 {dimension_numbers = #tpu.dot_dimension_numbers<[1], [0], [0], [1], [0, 0, 1, 1], [], []>} : vector<16x160xbf16>, vector<160x16xbf16>, vector<16x16xf32> -> vector<16x16xf32>
    %c0_29 = arith.constant 0 : index
    %c0_30 = arith.constant 0 : index
    %c0_31 = arith.constant 0 : index
    %61 = vector.load %arg7[%c0_29, %c0_30, %c0_31] : memref<1x16x16xf32, #tpu.memory_space<vmem>>, vector<1x16x16xf32>
    %62 = vector.shape_cast %61 : vector<1x16x16xf32> to vector<16x16xf32>
    %63 = vector.shape_cast %60 : vector<16x16xf32> to vector<1x16x16xf32>
    tpu.vector_store %arg7[%c0_29, %c0_30, %c0_31], %63 {strides = array<i32>} : memref<1x16x16xf32, #tpu.memory_space<vmem>>, vector<1x16x16xf32>,
    return
  }
  func.func @transform_0(%arg0: i32, %arg1: i32) -> (i32, i32, i32) {
    %c0_i32 = arith.constant 0 : i32
    %c0_i32_0 = arith.constant 0 : i32
    return %arg0, %arg1, %c0_i32 : i32, i32, i32
  }
  func.func @transform_1(%arg0: i32, %arg1: i32) -> (i32, i32, i32, i32) {
    %c0_i32 = arith.constant 0 : i32
    %c0_i32_0 = arith.constant 0 : i32
    %c0_i32_1 = arith.constant 0 : i32
    return %arg0, %arg1, %c0_i32, %c0_i32_0 : i32, i32, i32, i32
  }
  func.func @transform_2(%arg0: i32, %arg1: i32) -> (i32, i32) {
    %c0_i32 = arith.constant 0 : i32
    %c0_i32_0 = arith.constant 0 : i32
    %c0_i32_1 = arith.constant 0 : i32
    return %c0_i32, %c0_i32_0 : i32, i32
  }
  func.func @transform_3(%arg0: i32, %arg1: i32) -> (i32, i32) {
    %c0_i32 = arith.constant 0 : i32
    %c0_i32_0 = arith.constant 0 : i32
    %c0_i32_1 = arith.constant 0 : i32
    return %c0_i32, %c0_i32_0 : i32, i32
  }
  func.func @transform_4(%arg0: i32, %arg1: i32) -> (i32, i32) {
    %c0_i32 = arith.constant 0 : i32
    %c0_i32_0 = arith.constant 0 : i32
    %c0_i32_1 = arith.constant 0 : i32
    return %c0_i32, %c0_i32_0 : i32, i32
  }
  func.func @transform_5(%arg0: i32, %arg1: i32) -> (i32, i32, i32) {
    %c0_i32 = arith.constant 0 : i32
    %c0_i32_0 = arith.constant 0 : i32
    return %arg0, %arg1, %c0_i32 : i32, i32, i32
  }
}

</mosaic_0001>

<llo_original>
// kernel: tile.23
$region0: #{tile.23}
  #allocation0 [shape = 's32[1]{0}', space=sflag, size = 0x4, scoped, tag = 'scoped memory for tile.23']
  %s0 = inlined_call_operand.vmem [shape: f32[8], index: 0, kind: input, shape index: {}]
  %s1 = inlined_call_operand.vmem [shape: f32[2,8], index: 1, kind: output, shape index: {}]
  // Predicated region
  $region2: #{tile.23} parent=0 // pred_check
    _
  $region3: #{tile.23} parent=0 // pred_check_branch
    %3 = sbr.rel (0) target = $region5
  $region4: #{tile.23} parent=0 // pred_region
    _
  $region5: #{tile.23} parent=0 // pred_fallthru
    _
  %v4 = vld [vmem:[%s0] ss:$0 sm:$0xff]
  %5 = vst [vmem:[%s1] sm:$0x3] %v4

// kernel: tile.28
$region0: #{tile.28}
  %s0 = inlined_call_operand.vmem [shape: f32[2,8], index: 0, kind: input, shape index: {}]
  %s1 = inlined_call_operand.vmem [shape: f32[1,16], index: 1, kind: output, shape index: {}]
  $region1: #{tile.28} parent=0
    #allocation0 [shape = 'u8[4096]{0}', space=vmem, size = 0x1000, scoped, tag = 'scoped mem for output reshape']
    #allocation1 [shape = 'u8[4096]{0}', space=vmem, size = 0x1000, scoped, tag = 'scoped mem for input reshape']
    %s3 = sshllo.u32 0, 2
    %v4 = vld [vmem:[%s0] sm:%s3]
    %5 = vst [vmem:[#allocation1] sm:%s3] %v4
    %v6 = vld [vmem:[#allocation1] sm:$0x1]
    %vm7 = vcmask 64512
    %8 = vst.msk [vmem:[#allocation0] sm:$0x1] %vm7, %v6
    %s9 = scalar_lea.vmem [#allocation1], 1
    %v10 = vld [vmem:[%s9] sm:$0x1]
    %11 = vrot.lane.b32.xlu0 %v10, 8
    %v12 = vpop.permute.xlu0 %11
    %vm13 = vcmask 130112
    %14 = vst.msk [vmem:[#allocation0] sm:$0x1] %vm13, %v12
    %s16 = sshllo.u32 0, 1
    %v18 = vld [vmem:[#allocation0] sm:%s16]
    %s19 = sshllo.u32 0, 1
    %20 = vst [vmem:[%s1] sm:%s19] %v18

// kernel: tile.33
$region0: #{tile.33}
  #allocation0 [shape = 's32[1]{0}', space=sflag, size = 0x4, scoped, tag = 'scoped memory for tile.33']
  %s0 = inlined_call_operand.vmem [shape: f32[16], index: 0, kind: input, shape index: {}]
  %s1 = inlined_call_operand.vmem [shape: f32[2,16], index: 1, kind: output, shape index: {}]
  // Predicated region
  $region2: #{tile.33} parent=0 // pred_check
    _
  $region3: #{tile.33} parent=0 // pred_check_branch
    %3 = sbr.rel (0) target = $region5
  $region4: #{tile.33} parent=0 // pred_region
    _
  $region5: #{tile.33} parent=0 // pred_fallthru
    _
  %v4 = vld [vmem:[%s0] ss:$0 sm:$0xff]
  %5 = vst [vmem:[%s1] sm:$0x3] %v4

// kernel: tile.38
$region0: #{tile.38}
  %s0 = inlined_call_operand.vmem [shape: f32[2,16], index: 0, kind: input, shape index: {}]
  %s1 = inlined_call_operand.vmem [shape: f32[1,32], index: 1, kind: output, shape index: {}]
  $region1: #{tile.38} parent=0
    #allocation0 [shape = 'u8[4096]{0}', space=vmem, size = 0x1000, scoped, tag = 'scoped mem for output reshape']
    #allocation1 [shape = 'u8[4096]{0}', space=vmem, size = 0x1000, scoped, tag = 'scoped mem for input reshape']
    %s3 = sshllo.u32 0, 2
    %v4 = vld [vmem:[%s0] sm:%s3]
    %5 = vst [vmem:[#allocation1] sm:%s3] %v4
    %v6 = vld [vmem:[#allocation1] sm:$0x1]
    %vm7 = vcmask 130048
    %8 = vst.msk [vmem:[#allocation0] sm:$0x1] %vm7, %v6
    %s9 = scalar_lea.vmem [#allocation1], 1
    %v10 = vld [vmem:[%s9] sm:$0x1]
    %11 = vrot.lane.b32.xlu0 %v10, 16
    %v12 = vpop.permute.xlu0 %11
    %vm13 = vcmask 261248
    %14 = vst.msk [vmem:[#allocation0] sm:$0x1] %vm13, %v12
    %s16 = sshllo.u32 0, 1
    %v18 = vld [vmem:[#allocation0] sm:%s16]
    %s19 = sshllo.u32 0, 1
    %20 = vst [vmem:[%s1] sm:%s19] %v18

// kernel: encoder_forward.4
$region0: #{encoder_forward.4}
  #allocation0 [shape = 'u32[]', space=smem, size = 0x4, offset = 0x4, fixed_abs, tag = 'smem constant byte address 0x4 - core index']
  #allocation1 [shape = 'u32[144,128]{1,0:T(1,128)}', space=vmem, size = 0x12000, scoped, tag = 'internal scratch']
  #allocation2 [shape = 'f32[22,4]{1,0:T(8,128)}', space=vmem, size = 0x3000, scoped, tag = 'scratch operand']
  %s0 = inlined_call_operand.vmem [shape: f32[2,64,4], index: 0, kind: input, shape index: {}]
  %s1 = inlined_call_operand.vmem [shape: f32[2,4,6,4], index: 1, kind: input, shape index: {}]
  %s2 = inlined_call_operand.vmem [shape: bf16[28,8], index: 2, kind: input, shape index: {}]
  %s3 = inlined_call_operand.vmem [shape: f32[1,4], index: 3, kind: input, shape index: {}]
  %s4 = inlined_call_operand.vmem [shape: f32[1,4], index: 4, kind: input, shape index: {}]
  %s5 = inlined_call_operand.vmem [shape: bf16[2,64,8], index: 5, kind: output, shape index: {0}]
  %s6 = inlined_call_operand.vmem [shape: f32[2,4,1,8], index: 6, kind: output, shape index: {1}]
  %s7 = inlined_call_operand.vmem [shape: f32[2,4,1,8], index: 7, kind: output, shape index: {2}]
  %8 = xla_tuple %s5, %s6, %s7
  %s9 = sld [smem:[#allocation0]]
  $region69: #{encoder_forward.4} parent=0
    _
  %s11 = ssub.s32 1, %s9
  %s12 = scalar_select 0, %s11, %s9
  loop: start=0, step=1, limit=10
  $region2: #{encoder_forward.4} parent=0 // loop_pre_header
    _
  $region3: #{encoder_forward.4} parent=0 // loop_header
    %s14 = sphi 0, %s18
    %p15 = scmp.ge.s32.totalorder %s14, 10
    %s21 = sphi 0, %s33
    %s22 = sphi 0, %s29
    %s23 = sphi 0, %s21
    %s24 = sphi 0, %s22
    %s25 = sphi 0, %s23
    %s26 = sphi 0, %s24
    %s38 = sphi 0, %s40
    %s41 = sphi 0, %s38
    %s42 = sphi 0, %s41
    %s58 = sphi 0, %s42
    %s66 = sphi 0, %s68
    %s69 = sphi 0, %s66
    %s70 = sphi 0, %s69
    %s86 = sphi 0, %s70
    %s90 = sphi 0, %s90
    %s92 = sphi 0, %s90
    %s93 = sphi 0, %s92
    %s107 = sphi 0, %s93
    %s111 = sphi 0, %s111
    %s113 = sphi 0, %s111
    %s114 = sphi 0, %s113
    %s128 = sphi 0, %s114
    %s132 = sphi 0, %s132
    %s134 = sphi 0, %s132
    %s135 = sphi 0, %s134
    %s149 = sphi 0, %s135
    %s157 = sphi 0, %s159
    %s160 = sphi 0, %s157
    %s161 = sphi 0, %s160
    %s177 = sphi 0, %s161
    %s185 = sphi 0, %s187
    %s188 = sphi 0, %s185
    %s189 = sphi 0, %s188
    %s205 = sphi 0, %s189
    %s213 = sphi 0, %s215
    %s216 = sphi 0, %s213
    %s217 = sphi 0, %s216
    %s233 = sphi 0, %s217
  $region4: #{encoder_forward.4} parent=0 // loop_header_branch
    %17 = sbr.rel (%p15) target = $region8
  $region5: #{encoder_forward.4} parent=0 // loop_body
    %s19 = ssub.s32 %s14, 1
    %s20 = ssub.s32 %s14, 2
    %s27 = sadd.s32 1, %s22
    %p28 = scmp.ge.s32.totalorder %s27, 4
    %s29 = scalar_select %p28, 0, %s27
    %s30 = sadd.s32 1, %s21
    %s31 = scalar_select %p28, %s30, %s21
    %p32 = scmp.ge.s32.totalorder %s31, 2
    %s33 = scalar_select %p32, 0, %s31
    %s34 = ssub.s32 %s21, %s33
    %s35 = ssub.s32 %s22, %s29
    %s36 = sor.u32 %s34, %s35
    %p37 = scmp.eq.s32.totalorder %s36, 0
    %s39 = sadd.s32 %s38, 1
    %s40 = scalar_select %p37, %s38, %s39
    %p43 = pneg %p37
    %p44 = scmp.eq.s32.totalorder %s14, 7
    %p45 = por %p43, %p44
    %p46 = scmp.ne.s32.totalorder %s38, %s41
    %p47 = scmp.eq.s32.totalorder %s14, 0
    %p48 = por %p46, %p47
    %p49 = scmp.ne.s32.totalorder %s38, %s41
    %p50 = scmp.eq.s32.totalorder %s19, 7
    %p51 = por %p49, %p50
    %p52 = scmp.ne.s32.totalorder %s41, %s42
    %p53 = scmp.eq.s32.totalorder %s19, 0
    %p54 = por %p52, %p53
    %p55 = scmp.ne.s32.totalorder %s41, %s42
    %p56 = scmp.eq.s32.totalorder %s20, 7
    %p57 = por %p55, %p56
    %p59 = scmp.ne.s32.totalorder %s42, %s58
    %p60 = scmp.eq.s32.totalorder %s20, 0
    %p61 = por %p59, %p60
    %s62 = ssub.s32 %s21, %s33
    %s63 = ssub.s32 %s22, %s29
    %s64 = sor.u32 %s62, %s63
    %p65 = scmp.eq.s32.totalorder %s64, 0
    %s67 = sadd.s32 %s66, 1
    %s68 = scalar_select %p65, %s66, %s67
    %p71 = pneg %p65
    %p72 = scmp.eq.s32.totalorder %s14, 7
    %p73 = por %p71, %p72
    %p74 = scmp.ne.s32.totalorder %s66, %s69
    %p75 = scmp.eq.s32.totalorder %s14, 0
    %p76 = por %p74, %p75
    %p77 = scmp.ne.s32.totalorder %s66, %s69
    %p78 = scmp.eq.s32.totalorder %s19, 7
    %p79 = por %p77, %p78
    %p80 = scmp.ne.s32.totalorder %s69, %s70
    %p81 = scmp.eq.s32.totalorder %s19, 0
    %p82 = por %p80, %p81
    %p83 = scmp.ne.s32.totalorder %s69, %s70
    %p84 = scmp.eq.s32.totalorder %s20, 7
    %p85 = por %p83, %p84
    %p87 = scmp.ne.s32.totalorder %s70, %s86
    %p88 = scmp.eq.s32.totalorder %s20, 0
    %p89 = por %p87, %p88
    %s91 = sadd.s32 %s90, 1
    %p94 = scmp.eq.s32.totalorder %s14, 7
    %p95 = scmp.ne.s32.totalorder %s90, %s92
    %p96 = scmp.eq.s32.totalorder %s14, 0
    %p97 = por %p95, %p96
    %p98 = scmp.ne.s32.totalorder %s90, %s92
    %p99 = scmp.eq.s32.totalorder %s19, 7
    %p100 = por %p98, %p99
    %p101 = scmp.ne.s32.totalorder %s92, %s93
    %p102 = scmp.eq.s32.totalorder %s19, 0
    %p103 = por %p101, %p102
    %p104 = scmp.ne.s32.totalorder %s92, %s93
    %p105 = scmp.eq.s32.totalorder %s20, 7
    %p106 = por %p104, %p105
    %p108 = scmp.ne.s32.totalorder %s93, %s107
    %p109 = scmp.eq.s32.totalorder %s20, 0
    %p110 = por %p108, %p109
    %s112 = sadd.s32 %s111, 1
    %p115 = scmp.eq.s32.totalorder %s14, 7
    %p116 = scmp.ne.s32.totalorder %s111, %s113
    %p117 = scmp.eq.s32.totalorder %s14, 0
    %p118 = por %p116, %p117
    %p119 = scmp.ne.s32.totalorder %s111, %s113
    %p120 = scmp.eq.s32.totalorder %s19, 7
    %p121 = por %p119, %p120
    %p122 = scmp.ne.s32.totalorder %s113, %s114
    %p123 = scmp.eq.s32.totalorder %s19, 0
    %p124 = por %p122, %p123
    %p125 = scmp.ne.s32.totalorder %s113, %s114
    %p126 = scmp.eq.s32.totalorder %s20, 7
    %p127 = por %p125, %p126
    %p129 = scmp.ne.s32.totalorder %s114, %s128
    %p130 = scmp.eq.s32.totalorder %s20, 0
    %p131 = por %p129, %p130
    %s133 = sadd.s32 %s132, 1
    %p136 = scmp.eq.s32.totalorder %s14, 7
    %p137 = scmp.ne.s32.totalorder %s132, %s134
    %p138 = scmp.eq.s32.totalorder %s14, 0
    %p139 = por %p137, %p138
    %p140 = scmp.ne.s32.totalorder %s132, %s134
    %p141 = scmp.eq.s32.totalorder %s19, 7
    %p142 = por %p140, %p141
    %p143 = scmp.ne.s32.totalorder %s134, %s135
    %p144 = scmp.eq.s32.totalorder %s19, 0
    %p145 = por %p143, %p144
    %p146 = scmp.ne.s32.totalorder %s134, %s135
    %p147 = scmp.eq.s32.totalorder %s20, 7
    %p148 = por %p146, %p147
    %p150 = scmp.ne.s32.totalorder %s135, %s149
    %p151 = scmp.eq.s32.totalorder %s20, 0
    %p152 = por %p150, %p151
    %s153 = ssub.s32 %s21, %s33
    %s154 = ssub.s32 %s22, %s29
    %s155 = sor.u32 %s153, %s154
    %p156 = scmp.eq.s32.totalorder %s155, 0
    %s158 = sadd.s32 %s157, 1
    %s159 = scalar_select %p156, %s157, %s158
    %p162 = pneg %p156
    %p163 = scmp.eq.s32.totalorder %s14, 7
    %p164 = por %p162, %p163
    %p165 = scmp.ne.s32.totalorder %s157, %s160
    %p166 = scmp.eq.s32.totalorder %s14, 0
    %p167 = por %p165, %p166
    %p168 = scmp.ne.s32.totalorder %s157, %s160
    %p169 = scmp.eq.s32.totalorder %s19, 7
    %p170 = por %p168, %p169
    %p171 = scmp.ne.s32.totalorder %s160, %s161
    %p172 = scmp.eq.s32.totalorder %s19, 0
    %p173 = por %p171, %p172
    %p174 = scmp.ne.s32.totalorder %s160, %s161
    %p175 = scmp.eq.s32.totalorder %s20, 7
    %p176 = por %p174, %p175
    %p178 = scmp.ne.s32.totalorder %s161, %s177
    %p179 = scmp.eq.s32.totalorder %s20, 0
    %p180 = por %p178, %p179
    %s181 = ssub.s32 %s21, %s33
    %s182 = ssub.s32 %s22, %s29
    %s183 = sor.u32 %s181, %s182
    %p184 = scmp.eq.s32.totalorder %s183, 0
    %s186 = sadd.s32 %s185, 1
    %s187 = scalar_select %p184, %s185, %s186
    %p190 = pneg %p184
    %p191 = scmp.eq.s32.totalorder %s14, 7
    %p192 = por %p190, %p191
    %p193 = scmp.ne.s32.totalorder %s185, %s188
    %p194 = scmp.eq.s32.totalorder %s14, 0
    %p195 = por %p193, %p194
    %p196 = scmp.ne.s32.totalorder %s185, %s188
    %p197 = scmp.eq.s32.totalorder %s19, 7
    %p198 = por %p196, %p197
    %p199 = scmp.ne.s32.totalorder %s188, %s189
    %p200 = scmp.eq.s32.totalorder %s19, 0
    %p201 = por %p199, %p200
    %p202 = scmp.ne.s32.totalorder %s188, %s189
    %p203 = scmp.eq.s32.totalorder %s20, 7
    %p204 = por %p202, %p203
    %p206 = scmp.ne.s32.totalorder %s189, %s205
    %p207 = scmp.eq.s32.totalorder %s20, 0
    %p208 = por %p206, %p207
    %s209 = ssub.s32 %s21, %s33
    %s210 = ssub.s32 %s22, %s29
    %s211 = sor.u32 %s209, %s210
    %p212 = scmp.eq.s32.totalorder %s211, 0
    %s214 = sadd.s32 %s213, 1
    %s215 = scalar_select %p212, %s213, %s214
    %p218 = pneg %p212
    %p219 = scmp.eq.s32.totalorder %s14, 7
    %p220 = por %p218, %p219
    %p221 = scmp.ne.s32.totalorder %s213, %s216
    %p222 = scmp.eq.s32.totalorder %s14, 0
    %p223 = por %p221, %p222
    %p224 = scmp.ne.s32.totalorder %s213, %s216
    %p225 = scmp.eq.s32.totalorder %s19, 7
    %p226 = por %p224, %p225
    %p227 = scmp.ne.s32.totalorder %s216, %s217
    %p228 = scmp.eq.s32.totalorder %s19, 0
    %p229 = por %p227, %p228
    %p230 = scmp.ne.s32.totalorder %s216, %s217
    %p231 = scmp.eq.s32.totalorder %s20, 7
    %p232 = por %p230, %p231
    %p234 = scmp.ne.s32.totalorder %s217, %s233
    %p235 = scmp.eq.s32.totalorder %s20, 0
    %p236 = por %p234, %p235
    %p237 = scmp.le.s32.totalorder 1, %s14
    %p238 = scmp.lt.s32.totalorder %s14, 9
    %p239 = pnand %p237, %p238
    %p240 = pneg %p239
    // Predicated region
    $region9: #{encoder_forward.4} parent=5 // pred_check
      _
    $region10: #{encoder_forward.4} parent=5 // pred_check_branch
      %242 = sbr.rel (%p239) target = $region12
    $region11: #{encoder_forward.4} parent=5 // pred_region
      %s243 = ssub.s32 %s14, 1
      // Predicated region
      $region13: #{encoder_forward.4} parent=11 // pred_check
        %p244 = pneg %p103
      $region14: #{encoder_forward.4} parent=11 // pred_check_branch
        %246 = sbr.rel (%p244) target = $region16
      $region15: #{encoder_forward.4} parent=11 // pred_region
        _
      $region16: #{encoder_forward.4} parent=11 // pred_fallthru
        _
      // Predicated region
      $region17: #{encoder_forward.4} parent=11 // pred_check
        %p247 = pneg %p124
      $region18: #{encoder_forward.4} parent=11 // pred_check_branch
        %249 = sbr.rel (%p247) target = $region20
      $region19: #{encoder_forward.4} parent=11 // pred_region
        _
      $region20: #{encoder_forward.4} parent=11 // pred_fallthru
        _
      // Predicated region
      $region21: #{encoder_forward.4} parent=11 // pred_check
        %p250 = pneg %p145
      $region22: #{encoder_forward.4} parent=11 // pred_check_branch
        %252 = sbr.rel (%p250) target = $region24
      $region23: #{encoder_forward.4} parent=11 // pred_region
        _
      $region24: #{encoder_forward.4} parent=11 // pred_fallthru
        _
    $region12: #{encoder_forward.4} parent=5 // pred_fallthru
      _
    %p253 = scmp.lt.s32.totalorder %s14, 8
    // Predicated region
    $region25: #{encoder_forward.4} parent=5 // pred_check
      %p254 = pneg %p253
    $region26: #{encoder_forward.4} parent=5 // pred_check_branch
      %256 = sbr.rel (%p254) target = $region28
    $region27: #{encoder_forward.4} parent=5 // pred_region
      // Predicated region
      $region29: #{encoder_forward.4} parent=27 // pred_check
        %p257 = pneg %p48
      $region30: #{encoder_forward.4} parent=27 // pred_check_branch
        %259 = sbr.rel (%p257) target = $region32
      $region31: #{encoder_forward.4} parent=27 // pred_region
        %s260 = smul.u32 2, %s22
        %p261 = scmp.lt.s32.totalorder %s21, 1
        %s262 = scalar_select %p261, %s21, 1
        %p263 = scmp.lt.s32.totalorder %s260, 7
        %s264 = scalar_select %p263, %s260, 7
        %s265 = smul.addr %s262, 8
        %s266 = sadd.s32 %s264, %s265
        %s267 = smul.addr %s266, 8
        %s268 = scalar_lea.vmem %s0, %s267
        %s269 = smul.u32 2, %s22
      $region32: #{encoder_forward.4} parent=27 // pred_fallthru
        _
      // Predicated region
      $region33: #{encoder_forward.4} parent=27 // pred_check
        %p270 = pneg %p76
      $region34: #{encoder_forward.4} parent=27 // pred_check_branch
        %272 = sbr.rel (%p270) target = $region36
      $region35: #{encoder_forward.4} parent=27 // pred_region
        %p273 = scmp.lt.s32.totalorder %s21, 1
        %s274 = scalar_select %p273, %s21, 1
        %p275 = scmp.lt.s32.totalorder %s22, 3
        %s276 = scalar_select %p275, %s22, 3
        %s277 = smul.addr %s274, 4
        %s278 = sadd.s32 %s276, %s277
        %s279 = smul.addr %s278, 8
        %s280 = scalar_lea.vmem %s1, %s279
      $region36: #{encoder_forward.4} parent=27 // pred_fallthru
        _
    $region28: #{encoder_forward.4} parent=5 // pred_fallthru
      _
    %p281 = scmp.le.s32.totalorder 1, %s14
    %p282 = scmp.lt.s32.totalorder %s14, 9
    %p283 = pnand %p281, %p282
    %p284 = pneg %p283
    // Predicated region
    $region37: #{encoder_forward.4} parent=5 // pred_check
      _
    $region38: #{encoder_forward.4} parent=5 // pred_check_branch
      %286 = sbr.rel (%p283) target = $region40
    $region39: #{encoder_forward.4} parent=5 // pred_region
      %s287 = ssub.s32 %s14, 1
      %s288 = smul.u32 2, %s24
      %p289 = scmp.lt.s32.totalorder %s23, 1
      %s290 = scalar_select %p289, %s23, 1
      %p291 = scmp.lt.s32.totalorder %s288, 7
      %s292 = scalar_select %p291, %s288, 7
      %s293 = smul.addr %s290, 8
      %s294 = sadd.s32 %s292, %s293
      %s295 = smul.addr %s294, 8
      %s296 = scalar_lea.vmem %s0, %s295
      %p297 = pneg %p54
      %p298 = pneg %p51
      %p299 = scmp.lt.s32.totalorder %s23, 1
      %s300 = scalar_select %p299, %s23, 1
      %p301 = scmp.lt.s32.totalorder %s24, 3
      %s302 = scalar_select %p301, %s24, 3
      %s303 = smul.addr %s300, 4
      %s304 = sadd.s32 %s302, %s303
      %s305 = smul.addr %s304, 8
      %s306 = scalar_lea.vmem %s1, %s305
      %p307 = pneg %p82
      %p308 = pneg %p79
      %p309 = pneg %p103
      %p310 = pneg %p100
      %p311 = pneg %p124
      %p312 = pneg %p121
      %p313 = pneg %p145
      %p314 = pneg %p142
      %p315 = pneg %p173
      %p316 = pneg %p170
      %s317 = smul.u32 2, %s24
      %p318 = scmp.lt.s32.totalorder %s23, 1
      %s319 = scalar_select %p318, %s23, 1
      %p320 = scmp.lt.s32.totalorder %s317, 7
      %s321 = scalar_select %p320, %s317, 7
      %s322 = smul.addr %s319, 8
      %s323 = sadd.s32 %s321, %s322
      %s324 = smul.addr %s323, 4
      %s325 = scalar_lea.vmem %s5, %s324
      %p326 = pneg %p201
      %p327 = pneg %p198
      %p328 = scmp.lt.s32.totalorder %s23, 1
      %s329 = scalar_select %p328, %s23, 1
      %p330 = scmp.lt.s32.totalorder %s24, 3
      %s331 = scalar_select %p330, %s24, 3
      %s332 = smul.addr %s329, 4
      %s333 = sadd.s32 %s331, %s332
      %s334 = scalar_lea.vmem %s6, %s333
      %p335 = pneg %p229
      %p336 = pneg %p226
      %p337 = scmp.lt.s32.totalorder %s23, 1
      %s338 = scalar_select %p337, %s23, 1
      %p339 = scmp.lt.s32.totalorder %s24, 3
      %s340 = scalar_select %p339, %s24, 3
      %s341 = smul.addr %s338, 4
      %s342 = sadd.s32 %s340, %s341
      %s343 = scalar_lea.vmem %s7, %s342
      %s344 = smul.u32 2, %s24
      %p345 = scmp.lt.s32.totalorder %s23, 1
      %s346 = scalar_select %p345, %s23, 1
      %p347 = scmp.lt.s32.totalorder %s344, 7
      %s348 = scalar_select %p347, %s344, 7
      %s349 = smul.addr %s346, 8
      %s350 = sadd.s32 %s348, %s349
      %s351 = smul.addr %s350, 8
      %s352 = scalar_lea.vmem %s0, %s351
      %s353 = smul.u32 2, %s24
      %p354 = scmp.lt.s32.totalorder %s23, 1
      %s355 = scalar_select %p354, %s23, 1
      %p356 = scmp.lt.s32.totalorder %s24, 3
      %s357 = scalar_select %p356, %s24, 3
      %s358 = smul.addr %s355, 4
      %s359 = sadd.s32 %s357, %s358
      %s360 = smul.addr %s359, 8
      %s361 = scalar_lea.vmem %s1, %s360
      %s362 = smul.u32 2, %s24
      %p363 = scmp.lt.s32.totalorder %s23, 1
      %s364 = scalar_select %p363, %s23, 1
      %p365 = scmp.lt.s32.totalorder %s362, 7
      %s366 = scalar_select %p365, %s362, 7
      %s367 = smul.addr %s364, 8
      %s368 = sadd.s32 %s366, %s367
      %s369 = smul.addr %s368, 4
      %s370 = scalar_lea.vmem %s5, %s369
      %s371 = smul.u32 2, %s24
      %p372 = scmp.lt.s32.totalorder %s23, 1
      %s373 = scalar_select %p372, %s23, 1
      %p374 = scmp.lt.s32.totalorder %s24, 3
      %s375 = scalar_select %p374, %s24, 3
      %s376 = smul.addr %s373, 4
      %s377 = sadd.s32 %s375, %s376
      %s378 = scalar_lea.vmem %s6, %s377
      %p379 = scmp.lt.s32.totalorder %s23, 1
      %s380 = scalar_select %p379, %s23, 1
      %p381 = scmp.lt.s32.totalorder %s24, 3
      %s382 = scalar_select %p381, %s24, 3
      %s383 = smul.addr %s380, 4
      %s384 = sadd.s32 %s382, %s383
      %s385 = scalar_lea.vmem %s7, %s384
      %s387 = smul.u32 %s24, 16
      %s388 = ssub.s32 %s387, 3
      %v389 = vld [vmem:[%s361] sm:$0x3f]
      %v390 = vld [vmem:[%s352] sm:$0xff]
      %v391 = vld [vmem:[%s352 + $0x8] sm:$0xff]
      %v392 = vlaneseq
      %v393 = vshrl.u32 %v392, 7
      %v394 = vstv %s388
      %v395 = vadd.s32 %v394, %v393
      %vm396 = vcmp.ge.s32.totalorder %v395, 0
      %vm397 = vcmp.lt.s32.totalorder %v395, 64
      %vm398 = vmand %vm396, %vm397
      %v399 = vsel %vm398, 1, 0
      %vm400 = vcmp.eq.s32.totalorder %v399, 1
      %v401 = vsel %vm400, %v389, 0.0
      %vm402 = vcmask 26624
      %403 = vst.msk [vmem:[#allocation2] sm:$0x7] %vm402, %v401
      %vm404 = vcmask 31744
      %405 = vst.msk [vmem:[#allocation2 + $0x3] sm:$0xff] %vm404, %v390
      %406 = vst.msk [vmem:[#allocation2 + $0xb] sm:$0xff] %vm404, %v391
      %s407 = sadd.s32 %s387, 16
      %v408 = vstv %s407
      %v409 = vadd.s32 %v408, %v393
      %vm410 = vcmp.ge.s32.totalorder %v409, 0
      %vm411 = vcmp.lt.s32.totalorder %v409, 64
      %vm412 = vmand %vm410, %vm411
      %v413 = vsel %vm412, 1, 0
      %vm414 = vcmp.eq.s32.totalorder %v413, 1
      %v416 = vrot.slane %v389, 3
      %v418 = vsel %vm414, %v416, 0.0
      %419 = vst.msk [vmem:[#allocation2 + $0x13] sm:$0x7] %vm402, %v418
      %v420 = vld [vmem:[#allocation2] sm:$0xff]
      %v421 = vld [vmem:[#allocation2 + $0x8] sm:$0xff]
      %v422 = vpack.c.bf16 %v421, %v420
      %v423 = vld [vmem:[#allocation2 + $0x1] sm:$0xff]
      %v424 = vld [vmem:[#allocation2 + $0x9] sm:$0xff]
      %v425 = vpack.c.bf16 %v424, %v423
      %v426 = vld [vmem:[#allocation2 + $0x2] sm:$0xff]
      %v427 = vld [vmem:[#allocation2 + $0xa] sm:$0xff]
      %v428 = vpack.c.bf16 %v427, %v426
      %v429 = vld [vmem:[#allocation2 + $0x3] sm:$0xff]
      %v430 = vld [vmem:[#allocation2 + $0xb] sm:$0xff]
      %v431 = vpack.c.bf16 %v430, %v429
      %v432 = vld [vmem:[#allocation2 + $0x4] sm:$0xff]
      %v433 = vld [vmem:[#allocation2 + $0xc] sm:$0xff]
      %v434 = vpack.c.bf16 %v433, %v432
      %v435 = vld [vmem:[#allocation2 + $0x5] sm:$0xff]
      %v436 = vld [vmem:[#allocation2 + $0xd] sm:$0xff]
      %v437 = vpack.c.bf16 %v436, %v435
      %v438 = vld [vmem:[#allocation2 + $0x6] sm:$0xff]
      %v439 = vld [vmem:[#allocation2 + $0xe] sm:$0xff]
      %v440 = vpack.c.bf16 %v439, %v438
      %442 = vrot.lane.b32.xlu0 %v425, 4
      %v443 = vpop.permute.xlu0 %442
      %445 = vrot.lane.b32.xlu0 %v428, 8
      %v446 = vpop.permute.xlu0 %445
      %448 = vrot.lane.b32.xlu0 %v431, 12
      %v449 = vpop.permute.xlu0 %448
      %451 = vrot.lane.b32.xlu0 %v434, 16
      %v452 = vpop.permute.xlu0 %451
      %454 = vrot.lane.b32.xlu0 %v437, 20
      %v455 = vpop.permute.xlu0 %454
      %457 = vrot.lane.b32.xlu0 %v440, 24
      %v458 = vpop.permute.xlu0 %457
      %v461 = vsel %vm404, %v422, %v443
      %vm462 = vcmask 64512
      %v464 = vsel %vm462, %v461, %v446
      %vm465 = vcmask 97280
      %v467 = vsel %vm465, %v464, %v449
      %vm468 = vcmask 130048
      %v470 = vsel %vm468, %v467, %v452
      %vm471 = vcmask 162816
      %v473 = vsel %vm471, %v470, %v455
      %vm474 = vcmask 195584
      %v476 = vsel %vm474, %v473, %v458
      %v477 = vld [vmem:[%s2] sm:$0xf]
      %v478 = vld [vmem:[%s2 + $0x4] sm:$0xf]
      %v479 = vld [vmem:[%s2 + $0x8] sm:$0xf]
      %v480 = vld [vmem:[%s2 + $0xc] sm:$0x3]
      %v485 = vunpack.c.l.b16 %v477
      %v486 = vunpack.c.l.b16 %v478
      %v487 = vunpack.c.l.b16 %v479
      %v488 = vunpack.c.l.b16 %v480
      %v489 = vpack.c.b16 %v486, %v485
      %v490 = vpack.c.b16 %v488, %v487
      %vm492 = vcmask 228352
      %v493 = vsel %vm492, %v476, 0
      %vm495 = vcmask 1045504
      %v497 = vsel %vm495, %v490, 0
      %499 = vmatprep.subr.bf16.mxu0 0
      %500 = vmatpush1.bf16.msra.mxu0 %v489
      %501 = vmatprep.subr.bf16.mxu0 0
      %502 = vmatpush1.bf16.msra.mxu0 %v497
      %503 = vmatprep.subr.bf16.mxu0 0
      %504 = vmatpush1.bf16.msra.mxu0 0
      %505 = vmatprep.subr.bf16.mxu0 0
      %506 = vmatpush1.bf16.msra.mxu0 0
      %507 = vmatprep.subr.bf16.mxu0 0
      %508 = vmatpush1.bf16.msra.mxu0 0
      %509 = vmatprep.subr.bf16.mxu0 0
      %510 = vmatpush1.bf16.msra.mxu0 0
      %511 = vmatprep.subr.bf16.mxu0 0
      %512 = vmatpush1.bf16.msra.mxu0 0
      %513 = vmatprep.subr.bf16.mxu0 0
      %514 = vmatpush1.bf16.msra.mxu0 0
      %515 = vmatprep.subr.bf16.mxu0 0
      %516 = vmatpush1.bf16.msra.mxu0 0
      %517 = vmatprep.subr.bf16.mxu0 0
      %518 = vmatpush1.bf16.msra.mxu0 0
      %519 = vmatprep.subr.bf16.mxu0 0
      %520 = vmatpush1.bf16.msra.mxu0 0
      %521 = vmatprep.subr.bf16.mxu0 0
      %522 = vmatpush1.bf16.msra.mxu0 0
      %523 = vmatprep.subr.bf16.mxu0 0
      %524 = vmatpush1.bf16.msra.mxu0 0
      %525 = vmatprep.subr.bf16.mxu0 0
      %526 = vmatpush1.bf16.msra.mxu0 0
      %527 = vmatprep.subr.bf16.mxu0 0
      %528 = vmatpush1.bf16.msra.mxu0 0
      %529 = vmatprep.subr.bf16.mxu0 0
      %530 = vmatpush1.bf16.msra.mxu0 0
      %531 = vmatprep.mubr.bf16.mxu0 0
      %532 = vmatmul.mubr.bf16.gmra.mrb[0].mxu0 %v493
      %v533 = vpop.f32.mrb[0].mxu0
      %v534 = vadd.f32 0.0, %v533
      %v535 = vpop.f32.mrb[0].mxu0
      %v536 = vpop.f32.mrb[0].mxu0
      %v537 = vadd.f32 0.0, %v536
      %v538 = vpop.f32.mrb[0].mxu0
      %539 = vdwg.mxu0
      %v540 = vpack.c.bf16 %v537, %v534
      %v542 = vunpack.c.l.b16 %v540
      %v543 = vunpack.c.h.b16 %v540
      %v544 = vpack.c.b16 %v542, %v542
      %v545 = vpack.c.b16 %v543, %v543
      %vm548 = vcmask 60416
      %549 = vst.msk [vmem:[%s370] sm:$0xf] %vm548, %v544
      %550 = vst.msk [vmem:[%s370 + $0x4] sm:$0xf] %vm548, %v545
      %v551 = vunpack.c.l.bf16 %v540
      %v552 = vunpack.c.h.bf16 %v540
      %v553 = vsel %vm462, %v551, 0.0
      %v554 = vsel %vm462, %v552, 0.0
      %v555 = vadd.f32 %v553, %v554
      %v556 = vrot.slane %v555, 4
      %v557 = vadd.f32 %v555, %v556
      %v558 = vrot.slane %v557, 2
      %v559 = vadd.f32 %v557, %v558
      %v560 = vrot.slane %v559, 1
      %v561 = vadd.f32 %v559, %v560
      %vm562 = vcmask 57344
      %563 = vst.msk [vmem:[%s378] sm:$0x1] %vm562, %v561
      %v564 = vmul.f32 %v551, %v551
      %v565 = vmul.f32 %v552, %v552
      %v566 = vsel %vm462, %v564, 0.0
      %v567 = vsel %vm462, %v565, 0.0
      %v568 = vadd.f32 %v566, %v567
      %v569 = vrot.slane %v568, 4
      %v570 = vadd.f32 %v568, %v569
      %v571 = vrot.slane %v570, 2
      %v572 = vadd.f32 %v570, %v571
      %v573 = vrot.slane %v572, 1
      %v574 = vadd.f32 %v572, %v573
      %575 = vst.msk [vmem:[%s385] sm:$0x1] %vm562, %v574
      %s576 = smul.u32 2, %s24
      %p577 = scmp.lt.s32.totalorder %s23, 1
      %s578 = scalar_select %p577, %s23, 1
      %p579 = scmp.lt.s32.totalorder %s576, 7
      %s580 = scalar_select %p579, %s576, 7
      %s581 = smul.addr %s578, 8
      %s582 = sadd.s32 %s580, %s581
      %s583 = smul.addr %s582, 4
      %s584 = scalar_lea.vmem %s5, %s583
      %p585 = scmp.lt.s32.totalorder %s23, 1
      %s586 = scalar_select %p585, %s23, 1
      %p587 = scmp.lt.s32.totalorder %s24, 3
      %s588 = scalar_select %p587, %s24, 3
      %s589 = smul.addr %s586, 4
      %s590 = sadd.s32 %s588, %s589
      %s591 = scalar_lea.vmem %s6, %s590
      %p592 = scmp.lt.s32.totalorder %s23, 1
      %s593 = scalar_select %p592, %s23, 1
      %p594 = scmp.lt.s32.totalorder %s24, 3
      %s595 = scalar_select %p594, %s24, 3
      %s596 = smul.addr %s593, 4
      %s597 = sadd.s32 %s595, %s596
      %s598 = scalar_lea.vmem %s7, %s597
      // Predicated region
      $region41: #{encoder_forward.4} parent=39 // pred_check
        %p599 = pneg %p170
      $region42: #{encoder_forward.4} parent=39 // pred_check_branch
        %601 = sbr.rel (%p599) target = $region44
      $region43: #{encoder_forward.4} parent=39 // pred_region
        %s602 = smul.u32 2, %s24
      $region44: #{encoder_forward.4} parent=39 // pred_fallthru
        _
      // Predicated region
      $region45: #{encoder_forward.4} parent=39 // pred_check
        %p603 = pneg %p198
      $region46: #{encoder_forward.4} parent=39 // pred_check_branch
        %605 = sbr.rel (%p603) target = $region48
      $region47: #{encoder_forward.4} parent=39 // pred_region
        _
      $region48: #{encoder_forward.4} parent=39 // pred_fallthru
        _
      // Predicated region
      $region49: #{encoder_forward.4} parent=39 // pred_check
        %p606 = pneg %p226
      $region50: #{encoder_forward.4} parent=39 // pred_check_branch
        %608 = sbr.rel (%p606) target = $region52
      $region51: #{encoder_forward.4} parent=39 // pred_region
        _
      $region52: #{encoder_forward.4} parent=39 // pred_fallthru
        _
    $region40: #{encoder_forward.4} parent=5 // pred_fallthru
      _
    %p609 = scmp.le.s32.totalorder 2, %s14
    // Predicated region
    $region53: #{encoder_forward.4} parent=5 // pred_check
      %p610 = pneg %p609
    $region54: #{encoder_forward.4} parent=5 // pred_check_branch
      %612 = sbr.rel (%p610) target = $region56
    $region55: #{encoder_forward.4} parent=5 // pred_region
      %s613 = ssub.s32 %s14, 2
      // Predicated region
      $region57: #{encoder_forward.4} parent=55 // pred_check
        %p614 = pneg %p176
      $region58: #{encoder_forward.4} parent=55 // pred_check_branch
        %616 = sbr.rel (%p614) target = $region60
      $region59: #{encoder_forward.4} parent=55 // pred_region
        %s617 = smul.u32 2, %s26
        %p618 = scmp.lt.s32.totalorder %s25, 1
        %s619 = scalar_select %p618, %s25, 1
        %p620 = scmp.lt.s32.totalorder %s617, 7
        %s621 = scalar_select %p620, %s617, 7
        %s622 = smul.addr %s619, 8
        %s623 = sadd.s32 %s621, %s622
        %s624 = smul.addr %s623, 4
        %s625 = scalar_lea.vmem %s5, %s624
      $region60: #{encoder_forward.4} parent=55 // pred_fallthru
        _
      // Predicated region
      $region61: #{encoder_forward.4} parent=55 // pred_check
        %p626 = pneg %p204
      $region62: #{encoder_forward.4} parent=55 // pred_check_branch
        %628 = sbr.rel (%p626) target = $region64
      $region63: #{encoder_forward.4} parent=55 // pred_region
        %p629 = scmp.lt.s32.totalorder %s25, 1
        %s630 = scalar_select %p629, %s25, 1
        %p631 = scmp.lt.s32.totalorder %s26, 3
        %s632 = scalar_select %p631, %s26, 3
        %s633 = smul.addr %s630, 4
        %s634 = sadd.s32 %s632, %s633
        %s635 = scalar_lea.vmem %s6, %s634
      $region64: #{encoder_forward.4} parent=55 // pred_fallthru
        _
      // Predicated region
      $region65: #{encoder_forward.4} parent=55 // pred_check
        %p636 = pneg %p232
      $region66: #{encoder_forward.4} parent=55 // pred_check_branch
        %638 = sbr.rel (%p636) target = $region68
      $region67: #{encoder_forward.4} parent=55 // pred_region
        %p639 = scmp.lt.s32.totalorder %s25, 1
        %s640 = scalar_select %p639, %s25, 1
        %p641 = scmp.lt.s32.totalorder %s26, 3
        %s642 = scalar_select %p641, %s26, 3
        %s643 = smul.addr %s640, 4
        %s644 = sadd.s32 %s642, %s643
        %s645 = scalar_lea.vmem %s7, %s644
      $region68: #{encoder_forward.4} parent=55 // pred_fallthru
        _
    $region56: #{encoder_forward.4} parent=5 // pred_fallthru
      _
  $region6: #{encoder_forward.4} parent=0 // loop_footer
    %s18 = sadd.s32 1, %s14
  $region7: #{encoder_forward.4} parent=0 // loop_footer_branch
    %13 = sbr.rel target = $region3
  $region8: #{encoder_forward.4} parent=0 // loop_exit
    _

// kernel: encoder_forward.5
$region0: #{encoder_forward.5}
  #allocation0 [shape = 'u32[]', space=smem, size = 0x4, offset = 0x4, fixed_abs, tag = 'smem constant byte address 0x4 - core index']
  #allocation1 [shape = 'u32[144,128]{1,0:T(1,128)}', space=vmem, size = 0x12000, scoped, tag = 'internal scratch']
  #allocation2 [shape = 'f32[18,16]{1,0:T(8,128)}', space=vmem, size = 0x3000, scoped, tag = 'scratch operand']
  %s0 = inlined_call_operand.vmem [shape: bf16[2,32,16], index: 0, kind: input, shape index: {}]
  %s1 = inlined_call_operand.vmem [shape: bf16[2,2,2,16], index: 1, kind: input, shape index: {}]
  %s2 = inlined_call_operand.vmem [shape: bf16[48,16], index: 2, kind: input, shape index: {}]
  %s3 = inlined_call_operand.vmem [shape: f32[1,16], index: 3, kind: input, shape index: {}]
  %s4 = inlined_call_operand.vmem [shape: f32[1,16], index: 4, kind: input, shape index: {}]
  %s5 = inlined_call_operand.vmem [shape: bf16[2,32,16], index: 5, kind: output, shape index: {0}]
  %s6 = inlined_call_operand.vmem [shape: f32[2,2,1,16], index: 6, kind: output, shape index: {1}]
  %s7 = inlined_call_operand.vmem [shape: f32[2,2,1,16], index: 7, kind: output, shape index: {2}]
  %8 = xla_tuple %s5, %s6, %s7
  %s9 = sld [smem:[#allocation0]]
  $region69: #{encoder_forward.5} parent=0
    _
  %s11 = ssub.s32 1, %s9
  %s12 = scalar_select 0, %s11, %s9
  loop: start=0, step=1, limit=6
  $region2: #{encoder_forward.5} parent=0 // loop_pre_header
    _
  $region3: #{encoder_forward.5} parent=0 // loop_header
    %s14 = sphi 0, %s18
    %p15 = scmp.ge.s32.totalorder %s14, 6
    %s21 = sphi 0, %s33
    %s22 = sphi 0, %s29
    %s23 = sphi 0, %s21
    %s24 = sphi 0, %s22
    %s25 = sphi 0, %s23
    %s26 = sphi 0, %s24
    %s38 = sphi 0, %s40
    %s41 = sphi 0, %s38
    %s42 = sphi 0, %s41
    %s58 = sphi 0, %s42
    %s66 = sphi 0, %s68
    %s69 = sphi 0, %s66
    %s70 = sphi 0, %s69
    %s86 = sphi 0, %s70
    %s90 = sphi 0, %s90
    %s92 = sphi 0, %s90
    %s93 = sphi 0, %s92
    %s107 = sphi 0, %s93
    %s111 = sphi 0, %s111
    %s113 = sphi 0, %s111
    %s114 = sphi 0, %s113
    %s128 = sphi 0, %s114
    %s132 = sphi 0, %s132
    %s134 = sphi 0, %s132
    %s135 = sphi 0, %s134
    %s149 = sphi 0, %s135
    %s157 = sphi 0, %s159
    %s160 = sphi 0, %s157
    %s161 = sphi 0, %s160
    %s177 = sphi 0, %s161
    %s185 = sphi 0, %s187
    %s188 = sphi 0, %s185
    %s189 = sphi 0, %s188
    %s205 = sphi 0, %s189
    %s213 = sphi 0, %s215
    %s216 = sphi 0, %s213
    %s217 = sphi 0, %s216
    %s233 = sphi 0, %s217
  $region4: #{encoder_forward.5} parent=0 // loop_header_branch
    %17 = sbr.rel (%p15) target = $region8
  $region5: #{encoder_forward.5} parent=0 // loop_body
    %s19 = ssub.s32 %s14, 1
    %s20 = ssub.s32 %s14, 2
    %s27 = sadd.s32 1, %s22
    %p28 = scmp.ge.s32.totalorder %s27, 2
    %s29 = scalar_select %p28, 0, %s27
    %s30 = sadd.s32 1, %s21
    %s31 = scalar_select %p28, %s30, %s21
    %p32 = scmp.ge.s32.totalorder %s31, 2
    %s33 = scalar_select %p32, 0, %s31
    %s34 = ssub.s32 %s21, %s33
    %s35 = ssub.s32 %s22, %s29
    %s36 = sor.u32 %s34, %s35
    %p37 = scmp.eq.s32.totalorder %s36, 0
    %s39 = sadd.s32 %s38, 1
    %s40 = scalar_select %p37, %s38, %s39
    %p43 = pneg %p37
    %p44 = scmp.eq.s32.totalorder %s14, 3
    %p45 = por %p43, %p44
    %p46 = scmp.ne.s32.totalorder %s38, %s41
    %p47 = scmp.eq.s32.totalorder %s14, 0
    %p48 = por %p46, %p47
    %p49 = scmp.ne.s32.totalorder %s38, %s41
    %p50 = scmp.eq.s32.totalorder %s19, 3
    %p51 = por %p49, %p50
    %p52 = scmp.ne.s32.totalorder %s41, %s42
    %p53 = scmp.eq.s32.totalorder %s19, 0
    %p54 = por %p52, %p53
    %p55 = scmp.ne.s32.totalorder %s41, %s42
    %p56 = scmp.eq.s32.totalorder %s20, 3
    %p57 = por %p55, %p56
    %p59 = scmp.ne.s32.totalorder %s42, %s58
    %p60 = scmp.eq.s32.totalorder %s20, 0
    %p61 = por %p59, %p60
    %s62 = ssub.s32 %s21, %s33
    %s63 = ssub.s32 %s22, %s29
    %s64 = sor.u32 %s62, %s63
    %p65 = scmp.eq.s32.totalorder %s64, 0
    %s67 = sadd.s32 %s66, 1
    %s68 = scalar_select %p65, %s66, %s67
    %p71 = pneg %p65
    %p72 = scmp.eq.s32.totalorder %s14, 3
    %p73 = por %p71, %p72
    %p74 = scmp.ne.s32.totalorder %s66, %s69
    %p75 = scmp.eq.s32.totalorder %s14, 0
    %p76 = por %p74, %p75
    %p77 = scmp.ne.s32.totalorder %s66, %s69
    %p78 = scmp.eq.s32.totalorder %s19, 3
    %p79 = por %p77, %p78
    %p80 = scmp.ne.s32.totalorder %s69, %s70
    %p81 = scmp.eq.s32.totalorder %s19, 0
    %p82 = por %p80, %p81
    %p83 = scmp.ne.s32.totalorder %s69, %s70
    %p84 = scmp.eq.s32.totalorder %s20, 3
    %p85 = por %p83, %p84
    %p87 = scmp.ne.s32.totalorder %s70, %s86
    %p88 = scmp.eq.s32.totalorder %s20, 0
    %p89 = por %p87, %p88
    %s91 = sadd.s32 %s90, 1
    %p94 = scmp.eq.s32.totalorder %s14, 3
    %p95 = scmp.ne.s32.totalorder %s90, %s92
    %p96 = scmp.eq.s32.totalorder %s14, 0
    %p97 = por %p95, %p96
    %p98 = scmp.ne.s32.totalorder %s90, %s92
    %p99 = scmp.eq.s32.totalorder %s19, 3
    %p100 = por %p98, %p99
    %p101 = scmp.ne.s32.totalorder %s92, %s93
    %p102 = scmp.eq.s32.totalorder %s19, 0
    %p103 = por %p101, %p102
    %p104 = scmp.ne.s32.totalorder %s92, %s93
    %p105 = scmp.eq.s32.totalorder %s20, 3
    %p106 = por %p104, %p105
    %p108 = scmp.ne.s32.totalorder %s93, %s107
    %p109 = scmp.eq.s32.totalorder %s20, 0
    %p110 = por %p108, %p109
    %s112 = sadd.s32 %s111, 1
    %p115 = scmp.eq.s32.totalorder %s14, 3
    %p116 = scmp.ne.s32.totalorder %s111, %s113
    %p117 = scmp.eq.s32.totalorder %s14, 0
    %p118 = por %p116, %p117
    %p119 = scmp.ne.s32.totalorder %s111, %s113
    %p120 = scmp.eq.s32.totalorder %s19, 3
    %p121 = por %p119, %p120
    %p122 = scmp.ne.s32.totalorder %s113, %s114
    %p123 = scmp.eq.s32.totalorder %s19, 0
    %p124 = por %p122, %p123
    %p125 = scmp.ne.s32.totalorder %s113, %s114
    %p126 = scmp.eq.s32.totalorder %s20, 3
    %p127 = por %p125, %p126
    %p129 = scmp.ne.s32.totalorder %s114, %s128
    %p130 = scmp.eq.s32.totalorder %s20, 0
    %p131 = por %p129, %p130
    %s133 = sadd.s32 %s132, 1
    %p136 = scmp.eq.s32.totalorder %s14, 3
    %p137 = scmp.ne.s32.totalorder %s132, %s134
    %p138 = scmp.eq.s32.totalorder %s14, 0
    %p139 = por %p137, %p138
    %p140 = scmp.ne.s32.totalorder %s132, %s134
    %p141 = scmp.eq.s32.totalorder %s19, 3
    %p142 = por %p140, %p141
    %p143 = scmp.ne.s32.totalorder %s134, %s135
    %p144 = scmp.eq.s32.totalorder %s19, 0
    %p145 = por %p143, %p144
    %p146 = scmp.ne.s32.totalorder %s134, %s135
    %p147 = scmp.eq.s32.totalorder %s20, 3
    %p148 = por %p146, %p147
    %p150 = scmp.ne.s32.totalorder %s135, %s149
    %p151 = scmp.eq.s32.totalorder %s20, 0
    %p152 = por %p150, %p151
    %s153 = ssub.s32 %s21, %s33
    %s154 = ssub.s32 %s22, %s29
    %s155 = sor.u32 %s153, %s154
    %p156 = scmp.eq.s32.totalorder %s155, 0
    %s158 = sadd.s32 %s157, 1
    %s159 = scalar_select %p156, %s157, %s158
    %p162 = pneg %p156
    %p163 = scmp.eq.s32.totalorder %s14, 3
    %p164 = por %p162, %p163
    %p165 = scmp.ne.s32.totalorder %s157, %s160
    %p166 = scmp.eq.s32.totalorder %s14, 0
    %p167 = por %p165, %p166
    %p168 = scmp.ne.s32.totalorder %s157, %s160
    %p169 = scmp.eq.s32.totalorder %s19, 3
    %p170 = por %p168, %p169
    %p171 = scmp.ne.s32.totalorder %s160, %s161
    %p172 = scmp.eq.s32.totalorder %s19, 0
    %p173 = por %p171, %p172
    %p174 = scmp.ne.s32.totalorder %s160, %s161
    %p175 = scmp.eq.s32.totalorder %s20, 3
    %p176 = por %p174, %p175
    %p178 = scmp.ne.s32.totalorder %s161, %s177
    %p179 = scmp.eq.s32.totalorder %s20, 0
    %p180 = por %p178, %p179
    %s181 = ssub.s32 %s21, %s33
    %s182 = ssub.s32 %s22, %s29
    %s183 = sor.u32 %s181, %s182
    %p184 = scmp.eq.s32.totalorder %s183, 0
    %s186 = sadd.s32 %s185, 1
    %s187 = scalar_select %p184, %s185, %s186
    %p190 = pneg %p184
    %p191 = scmp.eq.s32.totalorder %s14, 3
    %p192 = por %p190, %p191
    %p193 = scmp.ne.s32.totalorder %s185, %s188
    %p194 = scmp.eq.s32.totalorder %s14, 0
    %p195 = por %p193, %p194
    %p196 = scmp.ne.s32.totalorder %s185, %s188
    %p197 = scmp.eq.s32.totalorder %s19, 3
    %p198 = por %p196, %p197
    %p199 = scmp.ne.s32.totalorder %s188, %s189
    %p200 = scmp.eq.s32.totalorder %s19, 0
    %p201 = por %p199, %p200
    %p202 = scmp.ne.s32.totalorder %s188, %s189
    %p203 = scmp.eq.s32.totalorder %s20, 3
    %p204 = por %p202, %p203
    %p206 = scmp.ne.s32.totalorder %s189, %s205
    %p207 = scmp.eq.s32.totalorder %s20, 0
    %p208 = por %p206, %p207
    %s209 = ssub.s32 %s21, %s33
    %s210 = ssub.s32 %s22, %s29
    %s211 = sor.u32 %s209, %s210
    %p212 = scmp.eq.s32.totalorder %s211, 0
    %s214 = sadd.s32 %s213, 1
    %s215 = scalar_select %p212, %s213, %s214
    %p218 = pneg %p212
    %p219 = scmp.eq.s32.totalorder %s14, 3
    %p220 = por %p218, %p219
    %p221 = scmp.ne.s32.totalorder %s213, %s216
    %p222 = scmp.eq.s32.totalorder %s14, 0
    %p223 = por %p221, %p222
    %p224 = scmp.ne.s32.totalorder %s213, %s216
    %p225 = scmp.eq.s32.totalorder %s19, 3
    %p226 = por %p224, %p225
    %p227 = scmp.ne.s32.totalorder %s216, %s217
    %p228 = scmp.eq.s32.totalorder %s19, 0
    %p229 = por %p227, %p228
    %p230 = scmp.ne.s32.totalorder %s216, %s217
    %p231 = scmp.eq.s32.totalorder %s20, 3
    %p232 = por %p230, %p231
    %p234 = scmp.ne.s32.totalorder %s217, %s233
    %p235 = scmp.eq.s32.totalorder %s20, 0
    %p236 = por %p234, %p235
    %p237 = scmp.le.s32.totalorder 1, %s14
    %p238 = scmp.lt.s32.totalorder %s14, 5
    %p239 = pnand %p237, %p238
    %p240 = pneg %p239
    // Predicated region
    $region9: #{encoder_forward.5} parent=5 // pred_check
      _
    $region10: #{encoder_forward.5} parent=5 // pred_check_branch
      %242 = sbr.rel (%p239) target = $region12
    $region11: #{encoder_forward.5} parent=5 // pred_region
      %s243 = ssub.s32 %s14, 1
      // Predicated region
      $region13: #{encoder_forward.5} parent=11 // pred_check
        %p244 = pneg %p103
      $region14: #{encoder_forward.5} parent=11 // pred_check_branch
        %246 = sbr.rel (%p244) target = $region16
      $region15: #{encoder_forward.5} parent=11 // pred_region
        _
      $region16: #{encoder_forward.5} parent=11 // pred_fallthru
        _
      // Predicated region
      $region17: #{encoder_forward.5} parent=11 // pred_check
        %p247 = pneg %p124
      $region18: #{encoder_forward.5} parent=11 // pred_check_branch
        %249 = sbr.rel (%p247) target = $region20
      $region19: #{encoder_forward.5} parent=11 // pred_region
        _
      $region20: #{encoder_forward.5} parent=11 // pred_fallthru
        _
      // Predicated region
      $region21: #{encoder_forward.5} parent=11 // pred_check
        %p250 = pneg %p145
      $region22: #{encoder_forward.5} parent=11 // pred_check_branch
        %252 = sbr.rel (%p250) target = $region24
      $region23: #{encoder_forward.5} parent=11 // pred_region
        _
      $region24: #{encoder_forward.5} parent=11 // pred_fallthru
        _
    $region12: #{encoder_forward.5} parent=5 // pred_fallthru
      _
    %p253 = scmp.lt.s32.totalorder %s14, 4
    // Predicated region
    $region25: #{encoder_forward.5} parent=5 // pred_check
      %p254 = pneg %p253
    $region26: #{encoder_forward.5} parent=5 // pred_check_branch
      %256 = sbr.rel (%p254) target = $region28
    $region27: #{encoder_forward.5} parent=5 // pred_region
      // Predicated region
      $region29: #{encoder_forward.5} parent=27 // pred_check
        %p257 = pneg %p48
      $region30: #{encoder_forward.5} parent=27 // pred_check_branch
        %259 = sbr.rel (%p257) target = $region32
      $region31: #{encoder_forward.5} parent=27 // pred_region
        %s260 = smul.u32 2, %s22
        %p261 = scmp.lt.s32.totalorder %s21, 1
        %s262 = scalar_select %p261, %s21, 1
        %p263 = scmp.lt.s32.totalorder %s260, 3
        %s264 = scalar_select %p263, %s260, 3
        %s265 = smul.addr %s262, 4
        %s266 = sadd.s32 %s264, %s265
        %s267 = smul.addr %s266, 4
        %s268 = scalar_lea.vmem %s0, %s267
        %s269 = smul.u32 2, %s22
      $region32: #{encoder_forward.5} parent=27 // pred_fallthru
        _
      // Predicated region
      $region33: #{encoder_forward.5} parent=27 // pred_check
        %p270 = pneg %p76
      $region34: #{encoder_forward.5} parent=27 // pred_check_branch
        %272 = sbr.rel (%p270) target = $region36
      $region35: #{encoder_forward.5} parent=27 // pred_region
        %p273 = scmp.lt.s32.totalorder %s21, 1
        %s274 = scalar_select %p273, %s21, 1
        %p275 = scmp.lt.s32.totalorder %s22, 1
        %s276 = scalar_select %p275, %s22, 1
        %s277 = smul.addr %s274, 2
        %s278 = sadd.s32 %s276, %s277
        %s279 = scalar_lea.vmem %s1, %s278
      $region36: #{encoder_forward.5} parent=27 // pred_fallthru
        _
    $region28: #{encoder_forward.5} parent=5 // pred_fallthru
      _
    %p280 = scmp.le.s32.totalorder 1, %s14
    %p281 = scmp.lt.s32.totalorder %s14, 5
    %p282 = pnand %p280, %p281
    %p283 = pneg %p282
    // Predicated region
    $region37: #{encoder_forward.5} parent=5 // pred_check
      _
    $region38: #{encoder_forward.5} parent=5 // pred_check_branch
      %285 = sbr.rel (%p282) target = $region40
    $region39: #{encoder_forward.5} parent=5 // pred_region
      %s286 = ssub.s32 %s14, 1
      %s287 = smul.u32 2, %s24
      %p288 = scmp.lt.s32.totalorder %s23, 1
      %s289 = scalar_select %p288, %s23, 1
      %p290 = scmp.lt.s32.totalorder %s287, 3
      %s291 = scalar_select %p290, %s287, 3
      %s292 = smul.addr %s289, 4
      %s293 = sadd.s32 %s291, %s292
      %s294 = smul.addr %s293, 4
      %s295 = scalar_lea.vmem %s0, %s294
      %p296 = pneg %p54
      %p297 = pneg %p51
      %p298 = scmp.lt.s32.totalorder %s23, 1
      %s299 = scalar_select %p298, %s23, 1
      %p300 = scmp.lt.s32.totalorder %s24, 1
      %s301 = scalar_select %p300, %s24, 1
      %s302 = smul.addr %s299, 2
      %s303 = sadd.s32 %s301, %s302
      %s304 = scalar_lea.vmem %s1, %s303
      %p305 = pneg %p82
      %p306 = pneg %p79
      %p307 = pneg %p103
      %p308 = pneg %p100
      %p309 = pneg %p124
      %p310 = pneg %p121
      %p311 = pneg %p145
      %p312 = pneg %p142
      %p313 = pneg %p173
      %p314 = pneg %p170
      %s315 = smul.u32 2, %s24
      %p316 = scmp.lt.s32.totalorder %s23, 1
      %s317 = scalar_select %p316, %s23, 1
      %p318 = scmp.lt.s32.totalorder %s315, 3
      %s319 = scalar_select %p318, %s315, 3
      %s320 = smul.addr %s317, 4
      %s321 = sadd.s32 %s319, %s320
      %s322 = smul.addr %s321, 4
      %s323 = scalar_lea.vmem %s5, %s322
      %p324 = pneg %p201
      %p325 = pneg %p198
      %p326 = scmp.lt.s32.totalorder %s23, 1
      %s327 = scalar_select %p326, %s23, 1
      %p328 = scmp.lt.s32.totalorder %s24, 1
      %s329 = scalar_select %p328, %s24, 1
      %s330 = smul.addr %s327, 2
      %s331 = sadd.s32 %s329, %s330
      %s332 = scalar_lea.vmem %s6, %s331
      %p333 = pneg %p229
      %p334 = pneg %p226
      %p335 = scmp.lt.s32.totalorder %s23, 1
      %s336 = scalar_select %p335, %s23, 1
      %p337 = scmp.lt.s32.totalorder %s24, 1
      %s338 = scalar_select %p337, %s24, 1
      %s339 = smul.addr %s336, 2
      %s340 = sadd.s32 %s338, %s339
      %s341 = scalar_lea.vmem %s7, %s340
      %s342 = smul.u32 2, %s24
      %p343 = scmp.lt.s32.totalorder %s23, 1
      %s344 = scalar_select %p343, %s23, 1
      %p345 = scmp.lt.s32.totalorder %s342, 3
      %s346 = scalar_select %p345, %s342, 3
      %s347 = smul.addr %s344, 4
      %s348 = sadd.s32 %s346, %s347
      %s349 = smul.addr %s348, 4
      %s350 = scalar_lea.vmem %s0, %s349
      %s351 = smul.u32 2, %s24
      %p352 = scmp.lt.s32.totalorder %s23, 1
      %s353 = scalar_select %p352, %s23, 1
      %p354 = scmp.lt.s32.totalorder %s24, 1
      %s355 = scalar_select %p354, %s24, 1
      %s356 = smul.addr %s353, 2
      %s357 = sadd.s32 %s355, %s356
      %s358 = scalar_lea.vmem %s1, %s357
      %s359 = smul.u32 2, %s24
      %p360 = scmp.lt.s32.totalorder %s23, 1
      %s361 = scalar_select %p360, %s23, 1
      %p362 = scmp.lt.s32.totalorder %s359, 3
      %s363 = scalar_select %p362, %s359, 3
      %s364 = smul.addr %s361, 4
      %s365 = sadd.s32 %s363, %s364
      %s366 = smul.addr %s365, 4
      %s367 = scalar_lea.vmem %s5, %s366
      %s368 = smul.u32 2, %s24
      %p369 = scmp.lt.s32.totalorder %s23, 1
      %s370 = scalar_select %p369, %s23, 1
      %p371 = scmp.lt.s32.totalorder %s24, 1
      %s372 = scalar_select %p371, %s24, 1
      %s373 = smul.addr %s370, 2
      %s374 = sadd.s32 %s372, %s373
      %s375 = scalar_lea.vmem %s6, %s374
      %p376 = scmp.lt.s32.totalorder %s23, 1
      %s377 = scalar_select %p376, %s23, 1
      %p378 = scmp.lt.s32.totalorder %s24, 1
      %s379 = scalar_select %p378, %s24, 1
      %s380 = smul.addr %s377, 2
      %s381 = sadd.s32 %s379, %s380
      %s382 = scalar_lea.vmem %s7, %s381
      %s384 = smul.u32 %s24, 16
      %s385 = ssub.s32 %s384, 1
      %v386 = vld [vmem:[%s3] sm:$0x1]
      %v387 = vld [vmem:[%s4] sm:$0x1]
      %v388 = vld [vmem:[%s358] sm:$0x1]
      %v389 = vunpack.c.l.bf16 %v388
      %v390 = vld [vmem:[%s350] sm:$0xf]
      %v391 = vld [vmem:[%s350 + $0x4] sm:$0xf]
      %v392 = vunpack.c.l.bf16 %v390
      %v393 = vunpack.c.l.bf16 %v391
      %v394 = vmul.f32 %v389, %v386
      %v395 = vadd.f32 %v394, %v387
      %v396 = vmul.f32 %v395, 0.2
      %v397 = vmax.f32 %v395, %v396
      %v398 = vlaneseq
      %v399 = vshrl.u32 %v398, 7
      %v400 = vstv %s385
      %v401 = vadd.s32 %v400, %v399
      %vm402 = vcmp.ge.s32.totalorder %v401, 0
      %vm403 = vcmp.lt.s32.totalorder %v401, 32
      %vm404 = vmand %vm402, %vm403
      %v405 = vsel %vm404, 1, 0
      %vm406 = vcmp.eq.s32.totalorder %v405, 1
      %v407 = vsel %vm406, %v397, 0.0
      %vm408 = vcmask 122880
      %409 = vst.msk [vmem:[#allocation2] sm:$0x1] %vm408, %v407
      %v411 = vlaneseq
      %v412 = vshrl.u32 %v411, 7
      %v413 = vsub.s32 0, %v412
      %v414 = vrot.slane %v386, %v413
      %v416 = vmul.f32 %v392, %v414
      %v417 = vmul.f32 %v393, %v414
      %v419 = vlaneseq
      %v420 = vshrl.u32 %v419, 7
      %v421 = vsub.s32 0, %v420
      %v422 = vrot.slane %v387, %v421
      %v424 = vadd.f32 %v416, %v422
      %v425 = vadd.f32 %v417, %v422
      %v426 = vmul.f32 %v424, 0.2
      %v427 = vmul.f32 %v425, 0.2
      %v428 = vmax.f32 %v424, %v426
      %v429 = vmax.f32 %v425, %v427
      %vm430 = vcmask 130048
      %431 = vst.msk [vmem:[#allocation2 + $0x1] sm:$0xff] %vm430, %v428
      %432 = vst.msk [vmem:[#allocation2 + $0x9] sm:$0xff] %vm430, %v429
      %s433 = sadd.s32 %s384, 16
      %v435 = vunpack.c.l.s4 857870592
      %v436 = vunpack.c.0.s8 %v435
      %v437 = vlaneseq
      %v438 = vshrl.u32 %v437, 7
      %v439 = vsub.s32 %v436, %v438
      %v440 = vrot.slane %v386, %v439
      %v442 = vmul.f32 %v389, %v440
      %v444 = vunpack.c.l.s4 857870592
      %v445 = vunpack.c.0.s8 %v444
      %v446 = vlaneseq
      %v447 = vshrl.u32 %v446, 7
      %v448 = vsub.s32 %v445, %v447
      %v449 = vrot.slane %v387, %v448
      %v451 = vadd.f32 %v442, %v449
      %v452 = vmul.f32 %v451, 0.2
      %v453 = vmax.f32 %v451, %v452
      %v454 = vstv %s433
      %v455 = vadd.s32 %v454, %v399
      %vm456 = vcmp.ge.s32.totalorder %v455, 0
      %vm457 = vcmp.lt.s32.totalorder %v455, 32
      %vm458 = vmand %vm456, %vm457
      %v459 = vsel %vm458, 1, 0
      %vm460 = vcmp.eq.s32.totalorder %v459, 1
      %v462 = vlaneseq
      %v463 = vshrl.u32 %v462, 7
      %v464 = vsub.s32 1, %v463
      %v465 = vrot.slane %v453, %v464
      %v467 = vsel %vm460, %v465, 0.0
      %468 = vst.msk [vmem:[#allocation2 + $0x11] sm:$0x1] %vm408, %v467
      %v469 = vld [vmem:[#allocation2] sm:$0xff]
      %v470 = vld [vmem:[#allocation2 + $0x8] sm:$0xff]
      %v471 = vpack.c.bf16 %v470, %v469
      %v472 = vld [vmem:[#allocation2 + $0x1] sm:$0xff]
      %v473 = vld [vmem:[#allocation2 + $0x9] sm:$0xff]
      %v474 = vpack.c.bf16 %v473, %v472
      %v475 = vld [vmem:[#allocation2 + $0x2] sm:$0xff]
      %v476 = vld [vmem:[#allocation2 + $0xa] sm:$0xff]
      %v477 = vpack.c.bf16 %v476, %v475
      %479 = vrot.lane.b32.xlu0 %v474, 16
      %v480 = vpop.permute.xlu0 %479
      %482 = vrot.lane.b32.xlu0 %v477, 32
      %v483 = vpop.permute.xlu0 %482
      %v486 = vsel %vm430, %v471, %v480
      %vm487 = vcmask 261120
      %v489 = vsel %vm487, %v486, %v483
      %v490 = vld [vmem:[%s2] sm:$0xf]
      %v491 = vld [vmem:[%s2 + $0x4] sm:$0xf]
      %v492 = vld [vmem:[%s2 + $0x8] sm:$0xf]
      %v493 = vld [vmem:[%s2 + $0xc] sm:$0xf]
      %v494 = vld [vmem:[%s2 + $0x10] sm:$0xf]
      %v495 = vld [vmem:[%s2 + $0x14] sm:$0xf]
      %v502 = vunpack.c.l.b16 %v490
      %v503 = vunpack.c.l.b16 %v491
      %v504 = vunpack.c.l.b16 %v492
      %v505 = vunpack.c.l.b16 %v493
      %v506 = vunpack.c.l.b16 %v494
      %v507 = vunpack.c.l.b16 %v495
      %v508 = vpack.c.b16 %v503, %v502
      %v509 = vpack.c.b16 %v505, %v504
      %v510 = vpack.c.b16 %v507, %v506
      %vm514 = vcmask 392192
      %v515 = vsel %vm514, %v489, 0
      %517 = vmatprep.subr.bf16.mxu0 0
      %518 = vmatpush1.bf16.msra.mxu0 %v508
      %519 = vmatprep.subr.bf16.mxu0 0
      %520 = vmatpush1.bf16.msra.mxu0 %v509
      %521 = vmatprep.subr.bf16.mxu0 0
      %522 = vmatpush1.bf16.msra.mxu0 %v510
      %523 = vmatprep.subr.bf16.mxu0 0
      %524 = vmatpush1.bf16.msra.mxu0 0
      %525 = vmatprep.subr.bf16.mxu0 0
      %526 = vmatpush1.bf16.msra.mxu0 0
      %527 = vmatprep.subr.bf16.mxu0 0
      %528 = vmatpush1.bf16.msra.mxu0 0
      %529 = vmatprep.subr.bf16.mxu0 0
      %530 = vmatpush1.bf16.msra.mxu0 0
      %531 = vmatprep.subr.bf16.mxu0 0
      %532 = vmatpush1.bf16.msra.mxu0 0
      %533 = vmatprep.subr.bf16.mxu0 0
      %534 = vmatpush1.bf16.msra.mxu0 0
      %535 = vmatprep.subr.bf16.mxu0 0
      %536 = vmatpush1.bf16.msra.mxu0 0
      %537 = vmatprep.subr.bf16.mxu0 0
      %538 = vmatpush1.bf16.msra.mxu0 0
      %539 = vmatprep.subr.bf16.mxu0 0
      %540 = vmatpush1.bf16.msra.mxu0 0
      %541 = vmatprep.subr.bf16.mxu0 0
      %542 = vmatpush1.bf16.msra.mxu0 0
      %543 = vmatprep.subr.bf16.mxu0 0
      %544 = vmatpush1.bf16.msra.mxu0 0
      %545 = vmatprep.subr.bf16.mxu0 0
      %546 = vmatpush1.bf16.msra.mxu0 0
      %547 = vmatprep.subr.bf16.mxu0 0
      %548 = vmatpush1.bf16.msra.mxu0 0
      %549 = vmatprep.mubr.bf16.mxu0 0
      %550 = vmatmul.mubr.bf16.gmra.mrb[0].mxu0 %v515
      %v551 = vpop.f32.mrb[0].mxu0
      %v552 = vadd.f32 0.0, %v551
      %v553 = vpop.f32.mrb[0].mxu0
      %v554 = vpop.f32.mrb[0].mxu0
      %v555 = vadd.f32 0.0, %v554
      %v556 = vpop.f32.mrb[0].mxu0
      %557 = vdwg.mxu0
      %v558 = vpack.c.bf16 %v555, %v552
      %v560 = vunpack.c.l.b16 %v558
      %v561 = vunpack.c.h.b16 %v558
      %v562 = vpack.c.b16 %v560, %v560
      %v563 = vpack.c.b16 %v561, %v561
      %vm566 = vcmask 125952
      %567 = vst.msk [vmem:[%s367] sm:$0xf] %vm566, %v562
      %568 = vst.msk [vmem:[%s367 + $0x4] sm:$0xf] %vm566, %v563
      %v569 = vunpack.c.l.bf16 %v558
      %v570 = vunpack.c.h.bf16 %v558
      %v571 = vsel %vm430, %v569, 0.0
      %v572 = vsel %vm430, %v570, 0.0
      %v573 = vadd.f32 %v571, %v572
      %v574 = vrot.slane %v573, 4
      %v575 = vadd.f32 %v573, %v574
      %v576 = vrot.slane %v575, 2
      %v577 = vadd.f32 %v575, %v576
      %v578 = vrot.slane %v577, 1
      %v579 = vadd.f32 %v577, %v578
      %580 = vst.msk [vmem:[%s375] sm:$0x1] %vm408, %v579
      %v581 = vmul.f32 %v569, %v569
      %v582 = vmul.f32 %v570, %v570
      %v583 = vsel %vm430, %v581, 0.0
      %v584 = vsel %vm430, %v582, 0.0
      %v585 = vadd.f32 %v583, %v584
      %v586 = vrot.slane %v585, 4
      %v587 = vadd.f32 %v585, %v586
      %v588 = vrot.slane %v587, 2
      %v589 = vadd.f32 %v587, %v588
      %v590 = vrot.slane %v589, 1
      %v591 = vadd.f32 %v589, %v590
      %592 = vst.msk [vmem:[%s382] sm:$0x1] %vm408, %v591
      %s593 = smul.u32 2, %s24
      %p594 = scmp.lt.s32.totalorder %s23, 1
      %s595 = scalar_select %p594, %s23, 1
      %p596 = scmp.lt.s32.totalorder %s593, 3
      %s597 = scalar_select %p596, %s593, 3
      %s598 = smul.addr %s595, 4
      %s599 = sadd.s32 %s597, %s598
      %s600 = smul.addr %s599, 4
      %s601 = scalar_lea.vmem %s5, %s600
      %p602 = scmp.lt.s32.totalorder %s23, 1
      %s603 = scalar_select %p602, %s23, 1
      %p604 = scmp.lt.s32.totalorder %s24, 1
      %s605 = scalar_select %p604, %s24, 1
      %s606 = smul.addr %s603, 2
      %s607 = sadd.s32 %s605, %s606
      %s608 = scalar_lea.vmem %s6, %s607
      %p609 = scmp.lt.s32.totalorder %s23, 1
      %s610 = scalar_select %p609, %s23, 1
      %p611 = scmp.lt.s32.totalorder %s24, 1
      %s612 = scalar_select %p611, %s24, 1
      %s613 = smul.addr %s610, 2
      %s614 = sadd.s32 %s612, %s613
      %s615 = scalar_lea.vmem %s7, %s614
      // Predicated region
      $region41: #{encoder_forward.5} parent=39 // pred_check
        %p616 = pneg %p170
      $region42: #{encoder_forward.5} parent=39 // pred_check_branch
        %618 = sbr.rel (%p616) target = $region44
      $region43: #{encoder_forward.5} parent=39 // pred_region
        %s619 = smul.u32 2, %s24
      $region44: #{encoder_forward.5} parent=39 // pred_fallthru
        _
      // Predicated region
      $region45: #{encoder_forward.5} parent=39 // pred_check
        %p620 = pneg %p198
      $region46: #{encoder_forward.5} parent=39 // pred_check_branch
        %622 = sbr.rel (%p620) target = $region48
      $region47: #{encoder_forward.5} parent=39 // pred_region
        _
      $region48: #{encoder_forward.5} parent=39 // pred_fallthru
        _
      // Predicated region
      $region49: #{encoder_forward.5} parent=39 // pred_check
        %p623 = pneg %p226
      $region50: #{encoder_forward.5} parent=39 // pred_check_branch
        %625 = sbr.rel (%p623) target = $region52
      $region51: #{encoder_forward.5} parent=39 // pred_region
        _
      $region52: #{encoder_forward.5} parent=39 // pred_fallthru
        _
    $region40: #{encoder_forward.5} parent=5 // pred_fallthru
      _
    %p626 = scmp.le.s32.totalorder 2, %s14
    // Predicated region
    $region53: #{encoder_forward.5} parent=5 // pred_check
      %p627 = pneg %p626
    $region54: #{encoder_forward.5} parent=5 // pred_check_branch
      %629 = sbr.rel (%p627) target = $region56
    $region55: #{encoder_forward.5} parent=5 // pred_region
      %s630 = ssub.s32 %s14, 2
      // Predicated region
      $region57: #{encoder_forward.5} parent=55 // pred_check
        %p631 = pneg %p176
      $region58: #{encoder_forward.5} parent=55 // pred_check_branch
        %633 = sbr.rel (%p631) target = $region60
      $region59: #{encoder_forward.5} parent=55 // pred_region
        %s634 = smul.u32 2, %s26
        %p635 = scmp.lt.s32.totalorder %s25, 1
        %s636 = scalar_select %p635, %s25, 1
        %p637 = scmp.lt.s32.totalorder %s634, 3
        %s638 = scalar_select %p637, %s634, 3
        %s639 = smul.addr %s636, 4
        %s640 = sadd.s32 %s638, %s639
        %s641 = smul.addr %s640, 4
        %s642 = scalar_lea.vmem %s5, %s641
      $region60: #{encoder_forward.5} parent=55 // pred_fallthru
        _
      // Predicated region
      $region61: #{encoder_forward.5} parent=55 // pred_check
        %p643 = pneg %p204
      $region62: #{encoder_forward.5} parent=55 // pred_check_branch
        %645 = sbr.rel (%p643) target = $region64
      $region63: #{encoder_forward.5} parent=55 // pred_region
        %p646 = scmp.lt.s32.totalorder %s25, 1
        %s647 = scalar_select %p646, %s25, 1
        %p648 = scmp.lt.s32.totalorder %s26, 1
        %s649 = scalar_select %p648, %s26, 1
        %s650 = smul.addr %s647, 2
        %s651 = sadd.s32 %s649, %s650
        %s652 = scalar_lea.vmem %s6, %s651
      $region64: #{encoder_forward.5} parent=55 // pred_fallthru
        _
      // Predicated region
      $region65: #{encoder_forward.5} parent=55 // pred_check
        %p653 = pneg %p232
      $region66: #{encoder_forward.5} parent=55 // pred_check_branch
        %655 = sbr.rel (%p653) target = $region68
      $region67: #{encoder_forward.5} parent=55 // pred_region
        %p656 = scmp.lt.s32.totalorder %s25, 1
        %s657 = scalar_select %p656, %s25, 1
        %p658 = scmp.lt.s32.totalorder %s26, 1
        %s659 = scalar_select %p658, %s26, 1
        %s660 = smul.addr %s657, 2
        %s661 = sadd.s32 %s659, %s660
        %s662 = scalar_lea.vmem %s7, %s661
      $region68: #{encoder_forward.5} parent=55 // pred_fallthru
        _
    $region56: #{encoder_forward.5} parent=5 // pred_fallthru
      _
  $region6: #{encoder_forward.5} parent=0 // loop_footer
    %s18 = sadd.s32 1, %s14
  $region7: #{encoder_forward.5} parent=0 // loop_footer_branch
    %13 = sbr.rel target = $region3
  $region8: #{encoder_forward.5} parent=0 // loop_exit
    _

// kernel: encoder_forward.6
$region0: #{encoder_forward.6}
  #allocation0 [shape = 'u32[]', space=smem, size = 0x4, offset = 0x4, fixed_abs, tag = 'smem constant byte address 0x4 - core index']
  #allocation1 [shape = 'u32[144,128]{1,0:T(1,128)}', space=vmem, size = 0x12000, scoped, tag = 'internal scratch']
  #allocation2 [shape = 'f32[18,32]{1,0:T(8,128)}', space=vmem, size = 0x3000, scoped, tag = 'scratch operand']
  %s0 = inlined_call_operand.vmem [shape: bf16[2,16,32], index: 0, kind: input, shape index: {}]
  %s1 = inlined_call_operand.vmem [shape: bf16[2,1,2,32], index: 1, kind: input, shape index: {}]
  %s2 = inlined_call_operand.vmem [shape: bf16[96,32], index: 2, kind: input, shape index: {}]
  %s3 = inlined_call_operand.vmem [shape: f32[1,32], index: 3, kind: input, shape index: {}]
  %s4 = inlined_call_operand.vmem [shape: f32[1,32], index: 4, kind: input, shape index: {}]
  %s5 = inlined_call_operand.vmem [shape: bf16[2,16,32], index: 5, kind: output, shape index: {}]
  %s6 = sld [smem:[#allocation0]]
  $region53: #{encoder_forward.6} parent=0
    _
  %s8 = ssub.s32 1, %s6
  %s9 = scalar_select 0, %s8, %s6
  loop: start=0, step=1, limit=4
  $region2: #{encoder_forward.6} parent=0 // loop_pre_header
    _
  $region3: #{encoder_forward.6} parent=0 // loop_header
    %s11 = sphi 0, %s15
    %p12 = scmp.ge.s32.totalorder %s11, 4
    %s18 = sphi 0, %s30
    %s19 = sphi 0, %s26
    %s20 = sphi 0, %s18
    %s21 = sphi 0, %s19
    %s22 = sphi 0, %s20
    %s23 = sphi 0, %s21
    %s35 = sphi 0, %s37
    %s38 = sphi 0, %s35
    %s39 = sphi 0, %s38
    %s55 = sphi 0, %s39
    %s63 = sphi 0, %s65
    %s66 = sphi 0, %s63
    %s67 = sphi 0, %s66
    %s83 = sphi 0, %s67
    %s87 = sphi 0, %s87
    %s89 = sphi 0, %s87
    %s90 = sphi 0, %s89
    %s104 = sphi 0, %s90
    %s108 = sphi 0, %s108
    %s110 = sphi 0, %s108
    %s111 = sphi 0, %s110
    %s125 = sphi 0, %s111
    %s129 = sphi 0, %s129
    %s131 = sphi 0, %s129
    %s132 = sphi 0, %s131
    %s146 = sphi 0, %s132
    %s154 = sphi 0, %s156
    %s157 = sphi 0, %s154
    %s158 = sphi 0, %s157
    %s174 = sphi 0, %s158
  $region4: #{encoder_forward.6} parent=0 // loop_header_branch
    %14 = sbr.rel (%p12) target = $region8
  $region5: #{encoder_forward.6} parent=0 // loop_body
    %s16 = ssub.s32 %s11, 1
    %s17 = ssub.s32 %s11, 2
    %s24 = sadd.s32 1, %s19
    %p25 = scmp.ge.s32.totalorder %s24, 1
    %s26 = scalar_select %p25, 0, %s24
    %s27 = sadd.s32 1, %s18
    %s28 = scalar_select %p25, %s27, %s18
    %p29 = scmp.ge.s32.totalorder %s28, 2
    %s30 = scalar_select %p29, 0, %s28
    %s31 = ssub.s32 %s18, %s30
    %s32 = ssub.s32 %s19, %s26
    %s33 = sor.u32 %s31, %s32
    %p34 = scmp.eq.s32.totalorder %s33, 0
    %s36 = sadd.s32 %s35, 1
    %s37 = scalar_select %p34, %s35, %s36
    %p40 = pneg %p34
    %p41 = scmp.eq.s32.totalorder %s11, 1
    %p42 = por %p40, %p41
    %p43 = scmp.ne.s32.totalorder %s35, %s38
    %p44 = scmp.eq.s32.totalorder %s11, 0
    %p45 = por %p43, %p44
    %p46 = scmp.ne.s32.totalorder %s35, %s38
    %p47 = scmp.eq.s32.totalorder %s16, 1
    %p48 = por %p46, %p47
    %p49 = scmp.ne.s32.totalorder %s38, %s39
    %p50 = scmp.eq.s32.totalorder %s16, 0
    %p51 = por %p49, %p50
    %p52 = scmp.ne.s32.totalorder %s38, %s39
    %p53 = scmp.eq.s32.totalorder %s17, 1
    %p54 = por %p52, %p53
    %p56 = scmp.ne.s32.totalorder %s39, %s55
    %p57 = scmp.eq.s32.totalorder %s17, 0
    %p58 = por %p56, %p57
    %s59 = ssub.s32 %s18, %s30
    %s60 = ssub.s32 %s19, %s26
    %s61 = sor.u32 %s59, %s60
    %p62 = scmp.eq.s32.totalorder %s61, 0
    %s64 = sadd.s32 %s63, 1
    %s65 = scalar_select %p62, %s63, %s64
    %p68 = pneg %p62
    %p69 = scmp.eq.s32.totalorder %s11, 1
    %p70 = por %p68, %p69
    %p71 = scmp.ne.s32.totalorder %s63, %s66
    %p72 = scmp.eq.s32.totalorder %s11, 0
    %p73 = por %p71, %p72
    %p74 = scmp.ne.s32.totalorder %s63, %s66
    %p75 = scmp.eq.s32.totalorder %s16, 1
    %p76 = por %p74, %p75
    %p77 = scmp.ne.s32.totalorder %s66, %s67
    %p78 = scmp.eq.s32.totalorder %s16, 0
    %p79 = por %p77, %p78
    %p80 = scmp.ne.s32.totalorder %s66, %s67
    %p81 = scmp.eq.s32.totalorder %s17, 1
    %p82 = por %p80, %p81
    %p84 = scmp.ne.s32.totalorder %s67, %s83
    %p85 = scmp.eq.s32.totalorder %s17, 0
    %p86 = por %p84, %p85
    %s88 = sadd.s32 %s87, 1
    %p91 = scmp.eq.s32.totalorder %s11, 1
    %p92 = scmp.ne.s32.totalorder %s87, %s89
    %p93 = scmp.eq.s32.totalorder %s11, 0
    %p94 = por %p92, %p93
    %p95 = scmp.ne.s32.totalorder %s87, %s89
    %p96 = scmp.eq.s32.totalorder %s16, 1
    %p97 = por %p95, %p96
    %p98 = scmp.ne.s32.totalorder %s89, %s90
    %p99 = scmp.eq.s32.totalorder %s16, 0
    %p100 = por %p98, %p99
    %p101 = scmp.ne.s32.totalorder %s89, %s90
    %p102 = scmp.eq.s32.totalorder %s17, 1
    %p103 = por %p101, %p102
    %p105 = scmp.ne.s32.totalorder %s90, %s104
    %p106 = scmp.eq.s32.totalorder %s17, 0
    %p107 = por %p105, %p106
    %s109 = sadd.s32 %s108, 1
    %p112 = scmp.eq.s32.totalorder %s11, 1
    %p113 = scmp.ne.s32.totalorder %s108, %s110
    %p114 = scmp.eq.s32.totalorder %s11, 0
    %p115 = por %p113, %p114
    %p116 = scmp.ne.s32.totalorder %s108, %s110
    %p117 = scmp.eq.s32.totalorder %s16, 1
    %p118 = por %p116, %p117
    %p119 = scmp.ne.s32.totalorder %s110, %s111
    %p120 = scmp.eq.s32.totalorder %s16, 0
    %p121 = por %p119, %p120
    %p122 = scmp.ne.s32.totalorder %s110, %s111
    %p123 = scmp.eq.s32.totalorder %s17, 1
    %p124 = por %p122, %p123
    %p126 = scmp.ne.s32.totalorder %s111, %s125
    %p127 = scmp.eq.s32.totalorder %s17, 0
    %p128 = por %p126, %p127
    %s130 = sadd.s32 %s129, 1
    %p133 = scmp.eq.s32.totalorder %s11, 1
    %p134 = scmp.ne.s32.totalorder %s129, %s131
    %p135 = scmp.eq.s32.totalorder %s11, 0
    %p136 = por %p134, %p135
    %p137 = scmp.ne.s32.totalorder %s129, %s131
    %p138 = scmp.eq.s32.totalorder %s16, 1
    %p139 = por %p137, %p138
    %p140 = scmp.ne.s32.totalorder %s131, %s132
    %p141 = scmp.eq.s32.totalorder %s16, 0
    %p142 = por %p140, %p141
    %p143 = scmp.ne.s32.totalorder %s131, %s132
    %p144 = scmp.eq.s32.totalorder %s17, 1
    %p145 = por %p143, %p144
    %p147 = scmp.ne.s32.totalorder %s132, %s146
    %p148 = scmp.eq.s32.totalorder %s17, 0
    %p149 = por %p147, %p148
    %s150 = ssub.s32 %s18, %s30
    %s151 = ssub.s32 %s19, %s26
    %s152 = sor.u32 %s150, %s151
    %p153 = scmp.eq.s32.totalorder %s152, 0
    %s155 = sadd.s32 %s154, 1
    %s156 = scalar_select %p153, %s154, %s155
    %p159 = pneg %p153
    %p160 = scmp.eq.s32.totalorder %s11, 1
    %p161 = por %p159, %p160
    %p162 = scmp.ne.s32.totalorder %s154, %s157
    %p163 = scmp.eq.s32.totalorder %s11, 0
    %p164 = por %p162, %p163
    %p165 = scmp.ne.s32.totalorder %s154, %s157
    %p166 = scmp.eq.s32.totalorder %s16, 1
    %p167 = por %p165, %p166
    %p168 = scmp.ne.s32.totalorder %s157, %s158
    %p169 = scmp.eq.s32.totalorder %s16, 0
    %p170 = por %p168, %p169
    %p171 = scmp.ne.s32.totalorder %s157, %s158
    %p172 = scmp.eq.s32.totalorder %s17, 1
    %p173 = por %p171, %p172
    %p175 = scmp.ne.s32.totalorder %s158, %s174
    %p176 = scmp.eq.s32.totalorder %s17, 0
    %p177 = por %p175, %p176
    %p178 = scmp.le.s32.totalorder 1, %s11
    %p179 = scmp.lt.s32.totalorder %s11, 3
    %p180 = pnand %p178, %p179
    %p181 = pneg %p180
    // Predicated region
    $region9: #{encoder_forward.6} parent=5 // pred_check
      _
    $region10: #{encoder_forward.6} parent=5 // pred_check_branch
      %183 = sbr.rel (%p180) target = $region12
    $region11: #{encoder_forward.6} parent=5 // pred_region
      %s184 = ssub.s32 %s11, 1
      // Predicated region
      $region13: #{encoder_forward.6} parent=11 // pred_check
        %p185 = pneg %p100
      $region14: #{encoder_forward.6} parent=11 // pred_check_branch
        %187 = sbr.rel (%p185) target = $region16
      $region15: #{encoder_forward.6} parent=11 // pred_region
        _
      $region16: #{encoder_forward.6} parent=11 // pred_fallthru
        _
      // Predicated region
      $region17: #{encoder_forward.6} parent=11 // pred_check
        %p188 = pneg %p121
      $region18: #{encoder_forward.6} parent=11 // pred_check_branch
        %190 = sbr.rel (%p188) target = $region20
      $region19: #{encoder_forward.6} parent=11 // pred_region
        _
      $region20: #{encoder_forward.6} parent=11 // pred_fallthru
        _
      // Predicated region
      $region21: #{encoder_forward.6} parent=11 // pred_check
        %p191 = pneg %p142
      $region22: #{encoder_forward.6} parent=11 // pred_check_branch
        %193 = sbr.rel (%p191) target = $region24
      $region23: #{encoder_forward.6} parent=11 // pred_region
        _
      $region24: #{encoder_forward.6} parent=11 // pred_fallthru
        _
    $region12: #{encoder_forward.6} parent=5 // pred_fallthru
      _
    %p194 = scmp.lt.s32.totalorder %s11, 2
    // Predicated region
    $region25: #{encoder_forward.6} parent=5 // pred_check
      %p195 = pneg %p194
    $region26: #{encoder_forward.6} parent=5 // pred_check_branch
      %197 = sbr.rel (%p195) target = $region28
    $region27: #{encoder_forward.6} parent=5 // pred_region
      // Predicated region
      $region29: #{encoder_forward.6} parent=27 // pred_check
        %p198 = pneg %p45
      $region30: #{encoder_forward.6} parent=27 // pred_check_branch
        %200 = sbr.rel (%p198) target = $region32
      $region31: #{encoder_forward.6} parent=27 // pred_region
        %s201 = smul.u32 2, %s19
        %p202 = scmp.lt.s32.totalorder %s18, 1
        %s203 = scalar_select %p202, %s18, 1
        %p204 = scmp.lt.s32.totalorder %s201, 1
        %s205 = scalar_select %p204, %s201, 1
        %s206 = smul.addr %s203, 2
        %s207 = sadd.s32 %s205, %s206
        %s208 = smul.addr %s207, 4
        %s209 = scalar_lea.vmem %s0, %s208
        %s210 = smul.u32 2, %s19
      $region32: #{encoder_forward.6} parent=27 // pred_fallthru
        _
      // Predicated region
      $region33: #{encoder_forward.6} parent=27 // pred_check
        %p211 = pneg %p73
      $region34: #{encoder_forward.6} parent=27 // pred_check_branch
        %213 = sbr.rel (%p211) target = $region36
      $region35: #{encoder_forward.6} parent=27 // pred_region
        %p214 = scmp.lt.s32.totalorder %s18, 1
        %s215 = scalar_select %p214, %s18, 1
        %p216 = scmp.lt.s32.totalorder %s19, 0
        %s217 = scalar_select %p216, %s19, 0
        %s218 = sadd.s32 %s217, %s215
        %s219 = scalar_lea.vmem %s1, %s218
      $region36: #{encoder_forward.6} parent=27 // pred_fallthru
        _
    $region28: #{encoder_forward.6} parent=5 // pred_fallthru
      _
    %p220 = scmp.le.s32.totalorder 1, %s11
    %p221 = scmp.lt.s32.totalorder %s11, 3
    %p222 = pnand %p220, %p221
    %p223 = pneg %p222
    // Predicated region
    $region37: #{encoder_forward.6} parent=5 // pred_check
      _
    $region38: #{encoder_forward.6} parent=5 // pred_check_branch
      %225 = sbr.rel (%p222) target = $region40
    $region39: #{encoder_forward.6} parent=5 // pred_region
      %s226 = ssub.s32 %s11, 1
      %s227 = smul.u32 2, %s21
      %p228 = scmp.lt.s32.totalorder %s20, 1
      %s229 = scalar_select %p228, %s20, 1
      %p230 = scmp.lt.s32.totalorder %s227, 1
      %s231 = scalar_select %p230, %s227, 1
      %s232 = smul.addr %s229, 2
      %s233 = sadd.s32 %s231, %s232
      %s234 = smul.addr %s233, 4
      %s235 = scalar_lea.vmem %s0, %s234
      %p236 = pneg %p51
      %p237 = pneg %p48
      %p238 = scmp.lt.s32.totalorder %s20, 1
      %s239 = scalar_select %p238, %s20, 1
      %p240 = scmp.lt.s32.totalorder %s21, 0
      %s241 = scalar_select %p240, %s21, 0
      %s242 = sadd.s32 %s241, %s239
      %s243 = scalar_lea.vmem %s1, %s242
      %p244 = pneg %p79
      %p245 = pneg %p76
      %p246 = pneg %p100
      %p247 = pneg %p97
      %p248 = pneg %p121
      %p249 = pneg %p118
      %p250 = pneg %p142
      %p251 = pneg %p139
      %p252 = pneg %p170
      %p253 = pneg %p167
      %s254 = smul.u32 2, %s21
      %p255 = scmp.lt.s32.totalorder %s20, 1
      %s256 = scalar_select %p255, %s20, 1
      %p257 = scmp.lt.s32.totalorder %s254, 1
      %s258 = scalar_select %p257, %s254, 1
      %s259 = smul.addr %s256, 2
      %s260 = sadd.s32 %s258, %s259
      %s261 = smul.addr %s260, 4
      %s262 = scalar_lea.vmem %s5, %s261
      %s263 = smul.u32 2, %s21
      %p264 = scmp.lt.s32.totalorder %s20, 1
      %s265 = scalar_select %p264, %s20, 1
      %p266 = scmp.lt.s32.totalorder %s263, 1
      %s267 = scalar_select %p266, %s263, 1
      %s268 = smul.addr %s265, 2
      %s269 = sadd.s32 %s267, %s268
      %s270 = smul.addr %s269, 4
      %s271 = scalar_lea.vmem %s0, %s270
      %s272 = smul.u32 2, %s21
      %p273 = scmp.lt.s32.totalorder %s20, 1
      %s274 = scalar_select %p273, %s20, 1
      %p275 = scmp.lt.s32.totalorder %s21, 0
      %s276 = scalar_select %p275, %s21, 0
      %s277 = sadd.s32 %s276, %s274
      %s278 = scalar_lea.vmem %s1, %s277
      %s279 = smul.u32 2, %s21
      %p280 = scmp.lt.s32.totalorder %s20, 1
      %s281 = scalar_select %p280, %s20, 1
      %p282 = scmp.lt.s32.totalorder %s279, 1
      %s283 = scalar_select %p282, %s279, 1
      %s284 = smul.addr %s281, 2
      %s285 = sadd.s32 %s283, %s284
      %s286 = smul.addr %s285, 4
      %s287 = scalar_lea.vmem %s5, %s286
      %s288 = smul.u32 2, %s21
      %s290 = smul.u32 %s21, 16
      %s291 = ssub.s32 %s290, 1
      %v292 = vld [vmem:[%s3] sm:$0x1]
      %v293 = vld [vmem:[%s4] sm:$0x1]
      %v294 = vld [vmem:[%s278] sm:$0x1]
      %v295 = vunpack.c.l.bf16 %v294
      %v296 = vld [vmem:[%s271] sm:$0xf]
      %v297 = vld [vmem:[%s271 + $0x4] sm:$0xf]
      %v298 = vunpack.c.l.bf16 %v296
      %v299 = vunpack.c.l.bf16 %v297
      %v300 = vmul.f32 %v295, %v292
      %v301 = vadd.f32 %v300, %v293
      %v302 = vmul.f32 %v301, 0.2
      %v303 = vmax.f32 %v301, %v302
      %v304 = vlaneseq
      %v305 = vshrl.u32 %v304, 7
      %v306 = vstv %s291
      %v307 = vadd.s32 %v306, %v305
      %vm308 = vcmp.ge.s32.totalorder %v307, 0
      %vm309 = vcmp.lt.s32.totalorder %v307, 16
      %vm310 = vmand %vm308, %vm309
      %v311 = vsel %vm310, 1, 0
      %vm312 = vcmp.eq.s32.totalorder %v311, 1
      %v313 = vsel %vm312, %v303, 0.0
      %vm314 = vcmask 253952
      %315 = vst.msk [vmem:[#allocation2] sm:$0x1] %vm314, %v313
      %v317 = vlaneseq
      %v318 = vshrl.u32 %v317, 7
      %v319 = vsub.s32 0, %v318
      %v320 = vrot.slane %v292, %v319
      %v322 = vmul.f32 %v298, %v320
      %v323 = vmul.f32 %v299, %v320
      %v325 = vlaneseq
      %v326 = vshrl.u32 %v325, 7
      %v327 = vsub.s32 0, %v326
      %v328 = vrot.slane %v293, %v327
      %v330 = vadd.f32 %v322, %v328
      %v331 = vadd.f32 %v323, %v328
      %v332 = vmul.f32 %v330, 0.2
      %v333 = vmul.f32 %v331, 0.2
      %v334 = vmax.f32 %v330, %v332
      %v335 = vmax.f32 %v331, %v333
      %vm336 = vcmask 261120
      %337 = vst.msk [vmem:[#allocation2 + $0x1] sm:$0xff] %vm336, %v334
      %338 = vst.msk [vmem:[#allocation2 + $0x9] sm:$0xff] %vm336, %v335
      %s339 = sadd.s32 %s290, 16
      %v341 = vunpack.c.l.s4 857870592
      %v342 = vunpack.c.0.s8 %v341
      %v343 = vlaneseq
      %v344 = vshrl.u32 %v343, 7
      %v345 = vsub.s32 %v342, %v344
      %v346 = vrot.slane %v292, %v345
      %v348 = vmul.f32 %v295, %v346
      %v350 = vunpack.c.l.s4 857870592
      %v351 = vunpack.c.0.s8 %v350
      %v352 = vlaneseq
      %v353 = vshrl.u32 %v352, 7
      %v354 = vsub.s32 %v351, %v353
      %v355 = vrot.slane %v293, %v354
      %v357 = vadd.f32 %v348, %v355
      %v358 = vmul.f32 %v357, 0.2
      %v359 = vmax.f32 %v357, %v358
      %v360 = vstv %s339
      %v361 = vadd.s32 %v360, %v305
      %vm362 = vcmp.ge.s32.totalorder %v361, 0
      %vm363 = vcmp.lt.s32.totalorder %v361, 16
      %vm364 = vmand %vm362, %vm363
      %v365 = vsel %vm364, 1, 0
      %vm366 = vcmp.eq.s32.totalorder %v365, 1
      %v368 = vlaneseq
      %v369 = vshrl.u32 %v368, 7
      %v370 = vsub.s32 1, %v369
      %v371 = vrot.slane %v359, %v370
      %v373 = vsel %vm366, %v371, 0.0
      %374 = vst.msk [vmem:[#allocation2 + $0x11] sm:$0x1] %vm314, %v373
      %v375 = vld [vmem:[#allocation2] sm:$0xff]
      %v376 = vld [vmem:[#allocation2 + $0x8] sm:$0xff]
      %v377 = vpack.c.bf16 %v376, %v375
      %v378 = vld [vmem:[#allocation2 + $0x1] sm:$0xff]
      %v379 = vld [vmem:[#allocation2 + $0x9] sm:$0xff]
      %v380 = vpack.c.bf16 %v379, %v378
      %v381 = vld [vmem:[#allocation2 + $0x2] sm:$0xff]
      %v382 = vld [vmem:[#allocation2 + $0xa] sm:$0xff]
      %v383 = vpack.c.bf16 %v382, %v381
      %385 = vrot.lane.b32.xlu0 %v380, 32
      %v386 = vpop.permute.xlu0 %385
      %388 = vrot.lane.b32.xlu0 %v383, 64
      %v389 = vpop.permute.xlu0 %388
      %v392 = vsel %vm336, %v377, %v386
      %vm393 = vcmask 523264
      %v395 = vsel %vm393, %v392, %v389
      %v396 = vld [vmem:[%s2] sm:$0xf]
      %v397 = vld [vmem:[%s2 + $0x4] sm:$0xf]
      %v398 = vld [vmem:[%s2 + $0x8] sm:$0xf]
      %v399 = vld [vmem:[%s2 + $0xc] sm:$0xf]
      %v400 = vld [vmem:[%s2 + $0x10] sm:$0xf]
      %v401 = vld [vmem:[%s2 + $0x14] sm:$0xf]
      %v402 = vld [vmem:[%s2 + $0x18] sm:$0xf]
      %v403 = vld [vmem:[%s2 + $0x1c] sm:$0xf]
      %v404 = vld [vmem:[%s2 + $0x20] sm:$0xf]
      %v405 = vld [vmem:[%s2 + $0x24] sm:$0xf]
      %v406 = vld [vmem:[%s2 + $0x28] sm:$0xf]
      %v407 = vld [vmem:[%s2 + $0x2c] sm:$0xf]
      %v420 = vunpack.c.l.b16 %v396
      %v421 = vunpack.c.l.b16 %v397
      %v422 = vunpack.c.l.b16 %v398
      %v423 = vunpack.c.l.b16 %v399
      %v424 = vunpack.c.l.b16 %v400
      %v425 = vunpack.c.l.b16 %v401
      %v426 = vunpack.c.l.b16 %v402
      %v427 = vunpack.c.l.b16 %v403
      %v428 = vunpack.c.l.b16 %v404
      %v429 = vunpack.c.l.b16 %v405
      %v430 = vunpack.c.l.b16 %v406
      %v431 = vunpack.c.l.b16 %v407
      %v432 = vpack.c.b16 %v421, %v420
      %v433 = vpack.c.b16 %v423, %v422
      %v434 = vpack.c.b16 %v425, %v424
      %v435 = vpack.c.b16 %v427, %v426
      %v436 = vpack.c.b16 %v429, %v428
      %v437 = vpack.c.b16 %v431, %v430
      %vm444 = vcmask 785408
      %v445 = vsel %vm444, %v395, 0
      %447 = vmatprep.subr.bf16.mxu0 0
      %448 = vmatpush1.bf16.msra.mxu0 %v432
      %449 = vmatprep.subr.bf16.mxu0 0
      %450 = vmatpush1.bf16.msra.mxu0 %v433
      %451 = vmatprep.subr.bf16.mxu0 0
      %452 = vmatpush1.bf16.msra.mxu0 %v434
      %453 = vmatprep.subr.bf16.mxu0 0
      %454 = vmatpush1.bf16.msra.mxu0 %v435
      %455 = vmatprep.subr.bf16.mxu0 0
      %456 = vmatpush1.bf16.msra.mxu0 %v436
      %457 = vmatprep.subr.bf16.mxu0 0
      %458 = vmatpush1.bf16.msra.mxu0 %v437
      %459 = vmatprep.subr.bf16.mxu0 0
      %460 = vmatpush1.bf16.msra.mxu0 0
      %461 = vmatprep.subr.bf16.mxu0 0
      %462 = vmatpush1.bf16.msra.mxu0 0
      %463 = vmatprep.subr.bf16.mxu0 0
      %464 = vmatpush1.bf16.msra.mxu0 0
      %465 = vmatprep.subr.bf16.mxu0 0
      %466 = vmatpush1.bf16.msra.mxu0 0
      %467 = vmatprep.subr.bf16.mxu0 0
      %468 = vmatpush1.bf16.msra.mxu0 0
      %469 = vmatprep.subr.bf16.mxu0 0
      %470 = vmatpush1.bf16.msra.mxu0 0
      %471 = vmatprep.subr.bf16.mxu0 0
      %472 = vmatpush1.bf16.msra.mxu0 0
      %473 = vmatprep.subr.bf16.mxu0 0
      %474 = vmatpush1.bf16.msra.mxu0 0
      %475 = vmatprep.subr.bf16.mxu0 0
      %476 = vmatpush1.bf16.msra.mxu0 0
      %477 = vmatprep.subr.bf16.mxu0 0
      %478 = vmatpush1.bf16.msra.mxu0 0
      %479 = vmatprep.mubr.bf16.mxu0 0
      %480 = vmatmul.mubr.bf16.gmra.mrb[0].mxu0 %v445
      %v481 = vpop.f32.mrb[0].mxu0
      %v482 = vadd.f32 0.0, %v481
      %v483 = vpop.f32.mrb[0].mxu0
      %v484 = vpop.f32.mrb[0].mxu0
      %v485 = vadd.f32 0.0, %v484
      %v486 = vpop.f32.mrb[0].mxu0
      %487 = vdwg.mxu0
      %v488 = vpack.c.bf16 %v485, %v482
      %v490 = vunpack.c.l.b16 %v488
      %v491 = vunpack.c.h.b16 %v488
      %v492 = vpack.c.b16 %v490, %v490
      %v493 = vpack.c.b16 %v491, %v491
      %vm496 = vcmask 257024
      %497 = vst.msk [vmem:[%s287] sm:$0xf] %vm496, %v492
      %498 = vst.msk [vmem:[%s287 + $0x4] sm:$0xf] %vm496, %v493
      %s499 = smul.u32 2, %s21
      %p500 = scmp.lt.s32.totalorder %s20, 1
      %s501 = scalar_select %p500, %s20, 1
      %p502 = scmp.lt.s32.totalorder %s499, 1
      %s503 = scalar_select %p502, %s499, 1
      %s504 = smul.addr %s501, 2
      %s505 = sadd.s32 %s503, %s504
      %s506 = smul.addr %s505, 4
      %s507 = scalar_lea.vmem %s5, %s506
      // Predicated region
      $region41: #{encoder_forward.6} parent=39 // pred_check
        %p508 = pneg %p167
      $region42: #{encoder_forward.6} parent=39 // pred_check_branch
        %510 = sbr.rel (%p508) target = $region44
      $region43: #{encoder_forward.6} parent=39 // pred_region
        %s511 = smul.u32 2, %s21
      $region44: #{encoder_forward.6} parent=39 // pred_fallthru
        _
    $region40: #{encoder_forward.6} parent=5 // pred_fallthru
      _
    %p512 = scmp.le.s32.totalorder 2, %s11
    // Predicated region
    $region45: #{encoder_forward.6} parent=5 // pred_check
      %p513 = pneg %p512
    $region46: #{encoder_forward.6} parent=5 // pred_check_branch
      %515 = sbr.rel (%p513) target = $region48
    $region47: #{encoder_forward.6} parent=5 // pred_region
      %s516 = ssub.s32 %s11, 2
      // Predicated region
      $region49: #{encoder_forward.6} parent=47 // pred_check
        %p517 = pneg %p173
      $region50: #{encoder_forward.6} parent=47 // pred_check_branch
        %519 = sbr.rel (%p517) target = $region52
      $region51: #{encoder_forward.6} parent=47 // pred_region
        %s520 = smul.u32 2, %s23
        %p521 = scmp.lt.s32.totalorder %s22, 1
        %s522 = scalar_select %p521, %s22, 1
        %p523 = scmp.lt.s32.totalorder %s520, 1
        %s524 = scalar_select %p523, %s520, 1
        %s525 = smul.addr %s522, 2
        %s526 = sadd.s32 %s524, %s525
        %s527 = smul.addr %s526, 4
        %s528 = scalar_lea.vmem %s5, %s527
      $region52: #{encoder_forward.6} parent=47 // pred_fallthru
        _
    $region48: #{encoder_forward.6} parent=5 // pred_fallthru
      _
  $region6: #{encoder_forward.6} parent=0 // loop_footer
    %s15 = sadd.s32 1, %s11
  $region7: #{encoder_forward.6} parent=0 // loop_footer_branch
    %10 = sbr.rel target = $region3
  $region8: #{encoder_forward.6} parent=0 // loop_exit
    _

// kernel: encoder_forward.7
$region0: #{encoder_forward.7}
  #allocation0 [shape = 'u32[]', space=smem, size = 0x4, offset = 0x4, fixed_abs, tag = 'smem constant byte address 0x4 - core index']
  #allocation1 [shape = 'u32[144,128]{1,0:T(1,128)}', space=vmem, size = 0x12000, scoped, tag = 'internal scratch']
  #allocation2 [shape = 'f32[20,32]{1,0:T(8,128)}', space=vmem, size = 0x3000, scoped, tag = 'scratch operand']
  %s0 = inlined_call_operand.vmem [shape: bf16[2,16,32], index: 0, kind: input, shape index: {}]
  %s1 = inlined_call_operand.vmem [shape: bf16[2,1,4,32], index: 1, kind: input, shape index: {}]
  %s2 = inlined_call_operand.vmem [shape: bf16[160,16], index: 2, kind: input, shape index: {}]
  %s3 = inlined_call_operand.vmem [shape: f32[1,32], index: 3, kind: input, shape index: {}]
  %s4 = inlined_call_operand.vmem [shape: f32[1,32], index: 4, kind: input, shape index: {}]
  %s5 = inlined_call_operand.vmem [shape: f32[2,16,16], index: 5, kind: output, shape index: {}]
  %s6 = sld [smem:[#allocation0]]
  $region53: #{encoder_forward.7} parent=0
    _
  %s8 = ssub.s32 1, %s6
  %s9 = scalar_select 0, %s8, %s6
  loop: start=0, step=1, limit=4
  $region2: #{encoder_forward.7} parent=0 // loop_pre_header
    _
  $region3: #{encoder_forward.7} parent=0 // loop_header
    %s11 = sphi 0, %s15
    %p12 = scmp.ge.s32.totalorder %s11, 4
    %s18 = sphi 0, %s30
    %s19 = sphi 0, %s26
    %s20 = sphi 0, %s18
    %s21 = sphi 0, %s19
    %s22 = sphi 0, %s20
    %s23 = sphi 0, %s21
    %s35 = sphi 0, %s37
    %s38 = sphi 0, %s35
    %s39 = sphi 0, %s38
    %s55 = sphi 0, %s39
    %s63 = sphi 0, %s65
    %s66 = sphi 0, %s63
    %s67 = sphi 0, %s66
    %s83 = sphi 0, %s67
    %s87 = sphi 0, %s87
    %s89 = sphi 0, %s87
    %s90 = sphi 0, %s89
    %s104 = sphi 0, %s90
    %s108 = sphi 0, %s108
    %s110 = sphi 0, %s108
    %s111 = sphi 0, %s110
    %s125 = sphi 0, %s111
    %s129 = sphi 0, %s129
    %s131 = sphi 0, %s129
    %s132 = sphi 0, %s131
    %s146 = sphi 0, %s132
    %s154 = sphi 0, %s156
    %s157 = sphi 0, %s154
    %s158 = sphi 0, %s157
    %s174 = sphi 0, %s158
  $region4: #{encoder_forward.7} parent=0 // loop_header_branch
    %14 = sbr.rel (%p12) target = $region8
  $region5: #{encoder_forward.7} parent=0 // loop_body
    %s16 = ssub.s32 %s11, 1
    %s17 = ssub.s32 %s11, 2
    %s24 = sadd.s32 1, %s19
    %p25 = scmp.ge.s32.totalorder %s24, 1
    %s26 = scalar_select %p25, 0, %s24
    %s27 = sadd.s32 1, %s18
    %s28 = scalar_select %p25, %s27, %s18
    %p29 = scmp.ge.s32.totalorder %s28, 2
    %s30 = scalar_select %p29, 0, %s28
    %s31 = ssub.s32 %s18, %s30
    %s32 = ssub.s32 %s19, %s26
    %s33 = sor.u32 %s31, %s32
    %p34 = scmp.eq.s32.totalorder %s33, 0
    %s36 = sadd.s32 %s35, 1
    %s37 = scalar_select %p34, %s35, %s36
    %p40 = pneg %p34
    %p41 = scmp.eq.s32.totalorder %s11, 1
    %p42 = por %p40, %p41
    %p43 = scmp.ne.s32.totalorder %s35, %s38
    %p44 = scmp.eq.s32.totalorder %s11, 0
    %p45 = por %p43, %p44
    %p46 = scmp.ne.s32.totalorder %s35, %s38
    %p47 = scmp.eq.s32.totalorder %s16, 1
    %p48 = por %p46, %p47
    %p49 = scmp.ne.s32.totalorder %s38, %s39
    %p50 = scmp.eq.s32.totalorder %s16, 0
    %p51 = por %p49, %p50
    %p52 = scmp.ne.s32.totalorder %s38, %s39
    %p53 = scmp.eq.s32.totalorder %s17, 1
    %p54 = por %p52, %p53
    %p56 = scmp.ne.s32.totalorder %s39, %s55
    %p57 = scmp.eq.s32.totalorder %s17, 0
    %p58 = por %p56, %p57
    %s59 = ssub.s32 %s18, %s30
    %s60 = ssub.s32 %s19, %s26
    %s61 = sor.u32 %s59, %s60
    %p62 = scmp.eq.s32.totalorder %s61, 0
    %s64 = sadd.s32 %s63, 1
    %s65 = scalar_select %p62, %s63, %s64
    %p68 = pneg %p62
    %p69 = scmp.eq.s32.totalorder %s11, 1
    %p70 = por %p68, %p69
    %p71 = scmp.ne.s32.totalorder %s63, %s66
    %p72 = scmp.eq.s32.totalorder %s11, 0
    %p73 = por %p71, %p72
    %p74 = scmp.ne.s32.totalorder %s63, %s66
    %p75 = scmp.eq.s32.totalorder %s16, 1
    %p76 = por %p74, %p75
    %p77 = scmp.ne.s32.totalorder %s66, %s67
    %p78 = scmp.eq.s32.totalorder %s16, 0
    %p79 = por %p77, %p78
    %p80 = scmp.ne.s32.totalorder %s66, %s67
    %p81 = scmp.eq.s32.totalorder %s17, 1
    %p82 = por %p80, %p81
    %p84 = scmp.ne.s32.totalorder %s67, %s83
    %p85 = scmp.eq.s32.totalorder %s17, 0
    %p86 = por %p84, %p85
    %s88 = sadd.s32 %s87, 1
    %p91 = scmp.eq.s32.totalorder %s11, 1
    %p92 = scmp.ne.s32.totalorder %s87, %s89
    %p93 = scmp.eq.s32.totalorder %s11, 0
    %p94 = por %p92, %p93
    %p95 = scmp.ne.s32.totalorder %s87, %s89
    %p96 = scmp.eq.s32.totalorder %s16, 1
    %p97 = por %p95, %p96
    %p98 = scmp.ne.s32.totalorder %s89, %s90
    %p99 = scmp.eq.s32.totalorder %s16, 0
    %p100 = por %p98, %p99
    %p101 = scmp.ne.s32.totalorder %s89, %s90
    %p102 = scmp.eq.s32.totalorder %s17, 1
    %p103 = por %p101, %p102
    %p105 = scmp.ne.s32.totalorder %s90, %s104
    %p106 = scmp.eq.s32.totalorder %s17, 0
    %p107 = por %p105, %p106
    %s109 = sadd.s32 %s108, 1
    %p112 = scmp.eq.s32.totalorder %s11, 1
    %p113 = scmp.ne.s32.totalorder %s108, %s110
    %p114 = scmp.eq.s32.totalorder %s11, 0
    %p115 = por %p113, %p114
    %p116 = scmp.ne.s32.totalorder %s108, %s110
    %p117 = scmp.eq.s32.totalorder %s16, 1
    %p118 = por %p116, %p117
    %p119 = scmp.ne.s32.totalorder %s110, %s111
    %p120 = scmp.eq.s32.totalorder %s16, 0
    %p121 = por %p119, %p120
    %p122 = scmp.ne.s32.totalorder %s110, %s111
    %p123 = scmp.eq.s32.totalorder %s17, 1
    %p124 = por %p122, %p123
    %p126 = scmp.ne.s32.totalorder %s111, %s125
    %p127 = scmp.eq.s32.totalorder %s17, 0
    %p128 = por %p126, %p127
    %s130 = sadd.s32 %s129, 1
    %p133 = scmp.eq.s32.totalorder %s11, 1
    %p134 = scmp.ne.s32.totalorder %s129, %s131
    %p135 = scmp.eq.s32.totalorder %s11, 0
    %p136 = por %p134, %p135
    %p137 = scmp.ne.s32.totalorder %s129, %s131
    %p138 = scmp.eq.s32.totalorder %s16, 1
    %p139 = por %p137, %p138
    %p140 = scmp.ne.s32.totalorder %s131, %s132
    %p141 = scmp.eq.s32.totalorder %s16, 0
    %p142 = por %p140, %p141
    %p143 = scmp.ne.s32.totalorder %s131, %s132
    %p144 = scmp.eq.s32.totalorder %s17, 1
    %p145 = por %p143, %p144
    %p147 = scmp.ne.s32.totalorder %s132, %s146
    %p148 = scmp.eq.s32.totalorder %s17, 0
    %p149 = por %p147, %p148
    %s150 = ssub.s32 %s18, %s30
    %s151 = ssub.s32 %s19, %s26
    %s152 = sor.u32 %s150, %s151
    %p153 = scmp.eq.s32.totalorder %s152, 0
    %s155 = sadd.s32 %s154, 1
    %s156 = scalar_select %p153, %s154, %s155
    %p159 = pneg %p153
    %p160 = scmp.eq.s32.totalorder %s11, 1
    %p161 = por %p159, %p160
    %p162 = scmp.ne.s32.totalorder %s154, %s157
    %p163 = scmp.eq.s32.totalorder %s11, 0
    %p164 = por %p162, %p163
    %p165 = scmp.ne.s32.totalorder %s154, %s157
    %p166 = scmp.eq.s32.totalorder %s16, 1
    %p167 = por %p165, %p166
    %p168 = scmp.ne.s32.totalorder %s157, %s158
    %p169 = scmp.eq.s32.totalorder %s16, 0
    %p170 = por %p168, %p169
    %p171 = scmp.ne.s32.totalorder %s157, %s158
    %p172 = scmp.eq.s32.totalorder %s17, 1
    %p173 = por %p171, %p172
    %p175 = scmp.ne.s32.totalorder %s158, %s174
    %p176 = scmp.eq.s32.totalorder %s17, 0
    %p177 = por %p175, %p176
    %p178 = scmp.le.s32.totalorder 1, %s11
    %p179 = scmp.lt.s32.totalorder %s11, 3
    %p180 = pnand %p178, %p179
    %p181 = pneg %p180
    // Predicated region
    $region9: #{encoder_forward.7} parent=5 // pred_check
      _
    $region10: #{encoder_forward.7} parent=5 // pred_check_branch
      %183 = sbr.rel (%p180) target = $region12
    $region11: #{encoder_forward.7} parent=5 // pred_region
      %s184 = ssub.s32 %s11, 1
      // Predicated region
      $region13: #{encoder_forward.7} parent=11 // pred_check
        %p185 = pneg %p100
      $region14: #{encoder_forward.7} parent=11 // pred_check_branch
        %187 = sbr.rel (%p185) target = $region16
      $region15: #{encoder_forward.7} parent=11 // pred_region
        _
      $region16: #{encoder_forward.7} parent=11 // pred_fallthru
        _
      // Predicated region
      $region17: #{encoder_forward.7} parent=11 // pred_check
        %p188 = pneg %p121
      $region18: #{encoder_forward.7} parent=11 // pred_check_branch
        %190 = sbr.rel (%p188) target = $region20
      $region19: #{encoder_forward.7} parent=11 // pred_region
        _
      $region20: #{encoder_forward.7} parent=11 // pred_fallthru
        _
      // Predicated region
      $region21: #{encoder_forward.7} parent=11 // pred_check
        %p191 = pneg %p142
      $region22: #{encoder_forward.7} parent=11 // pred_check_branch
        %193 = sbr.rel (%p191) target = $region24
      $region23: #{encoder_forward.7} parent=11 // pred_region
        _
      $region24: #{encoder_forward.7} parent=11 // pred_fallthru
        _
    $region12: #{encoder_forward.7} parent=5 // pred_fallthru
      _
    %p194 = scmp.lt.s32.totalorder %s11, 2
    // Predicated region
    $region25: #{encoder_forward.7} parent=5 // pred_check
      %p195 = pneg %p194
    $region26: #{encoder_forward.7} parent=5 // pred_check_branch
      %197 = sbr.rel (%p195) target = $region28
    $region27: #{encoder_forward.7} parent=5 // pred_region
      // Predicated region
      $region29: #{encoder_forward.7} parent=27 // pred_check
        %p198 = pneg %p45
      $region30: #{encoder_forward.7} parent=27 // pred_check_branch
        %200 = sbr.rel (%p198) target = $region32
      $region31: #{encoder_forward.7} parent=27 // pred_region
        %s201 = smul.u32 2, %s19
        %p202 = scmp.lt.s32.totalorder %s18, 1
        %s203 = scalar_select %p202, %s18, 1
        %p204 = scmp.lt.s32.totalorder %s201, 1
        %s205 = scalar_select %p204, %s201, 1
        %s206 = smul.addr %s203, 2
        %s207 = sadd.s32 %s205, %s206
        %s208 = smul.addr %s207, 4
        %s209 = scalar_lea.vmem %s0, %s208
        %s210 = smul.u32 2, %s19
      $region32: #{encoder_forward.7} parent=27 // pred_fallthru
        _
      // Predicated region
      $region33: #{encoder_forward.7} parent=27 // pred_check
        %p211 = pneg %p73
      $region34: #{encoder_forward.7} parent=27 // pred_check_branch
        %213 = sbr.rel (%p211) target = $region36
      $region35: #{encoder_forward.7} parent=27 // pred_region
        %p214 = scmp.lt.s32.totalorder %s18, 1
        %s215 = scalar_select %p214, %s18, 1
        %p216 = scmp.lt.s32.totalorder %s19, 0
        %s217 = scalar_select %p216, %s19, 0
        %s218 = sadd.s32 %s217, %s215
        %s219 = smul.addr %s218, 2
        %s220 = scalar_lea.vmem %s1, %s219
      $region36: #{encoder_forward.7} parent=27 // pred_fallthru
        _
    $region28: #{encoder_forward.7} parent=5 // pred_fallthru
      _
    %p221 = scmp.le.s32.totalorder 1, %s11
    %p222 = scmp.lt.s32.totalorder %s11, 3
    %p223 = pnand %p221, %p222
    %p224 = pneg %p223
    // Predicated region
    $region37: #{encoder_forward.7} parent=5 // pred_check
      _
    $region38: #{encoder_forward.7} parent=5 // pred_check_branch
      %226 = sbr.rel (%p223) target = $region40
    $region39: #{encoder_forward.7} parent=5 // pred_region
      %s227 = ssub.s32 %s11, 1
      %s228 = smul.u32 2, %s21
      %p229 = scmp.lt.s32.totalorder %s20, 1
      %s230 = scalar_select %p229, %s20, 1
      %p231 = scmp.lt.s32.totalorder %s228, 1
      %s232 = scalar_select %p231, %s228, 1
      %s233 = smul.addr %s230, 2
      %s234 = sadd.s32 %s232, %s233
      %s235 = smul.addr %s234, 4
      %s236 = scalar_lea.vmem %s0, %s235
      %p237 = pneg %p51
      %p238 = pneg %p48
      %p239 = scmp.lt.s32.totalorder %s20, 1
      %s240 = scalar_select %p239, %s20, 1
      %p241 = scmp.lt.s32.totalorder %s21, 0
      %s242 = scalar_select %p241, %s21, 0
      %s243 = sadd.s32 %s242, %s240
      %s244 = smul.addr %s243, 2
      %s245 = scalar_lea.vmem %s1, %s244
      %p246 = pneg %p79
      %p247 = pneg %p76
      %p248 = pneg %p100
      %p249 = pneg %p97
      %p250 = pneg %p121
      %p251 = pneg %p118
      %p252 = pneg %p142
      %p253 = pneg %p139
      %p254 = pneg %p170
      %p255 = pneg %p167
      %s256 = smul.u32 2, %s21
      %p257 = scmp.lt.s32.totalorder %s20, 1
      %s258 = scalar_select %p257, %s20, 1
      %p259 = scmp.lt.s32.totalorder %s256, 1
      %s260 = scalar_select %p259, %s256, 1
      %s261 = smul.addr %s258, 2
      %s262 = sadd.s32 %s260, %s261
      %s263 = smul.addr %s262, 8
      %s264 = scalar_lea.vmem %s5, %s263
      %s265 = smul.u32 2, %s21
      %p266 = scmp.lt.s32.totalorder %s20, 1
      %s267 = scalar_select %p266, %s20, 1
      %p268 = scmp.lt.s32.totalorder %s265, 1
      %s269 = scalar_select %p268, %s265, 1
      %s270 = smul.addr %s267, 2
      %s271 = sadd.s32 %s269, %s270
      %s272 = smul.addr %s271, 4
      %s273 = scalar_lea.vmem %s0, %s272
      %s274 = smul.u32 2, %s21
      %p275 = scmp.lt.s32.totalorder %s20, 1
      %s276 = scalar_select %p275, %s20, 1
      %p277 = scmp.lt.s32.totalorder %s21, 0
      %s278 = scalar_select %p277, %s21, 0
      %s279 = sadd.s32 %s278, %s276
      %s280 = smul.addr %s279, 2
      %s281 = scalar_lea.vmem %s1, %s280
      %s282 = smul.u32 2, %s21
      %p283 = scmp.lt.s32.totalorder %s20, 1
      %s284 = scalar_select %p283, %s20, 1
      %p285 = scmp.lt.s32.totalorder %s282, 1
      %s286 = scalar_select %p285, %s282, 1
      %s287 = smul.addr %s284, 2
      %s288 = sadd.s32 %s286, %s287
      %s289 = smul.addr %s288, 8
      %s290 = scalar_lea.vmem %s5, %s289
      %s291 = smul.u32 2, %s21
      %s293 = smul.u32 %s21, 16
      %s294 = ssub.s32 %s293, 2
      %v295 = vld [vmem:[%s281] sm:$0x3]
      %v296 = vunpack.c.l.bf16 %v295
      %v297 = vld [vmem:[%s273] sm:$0xf]
      %v298 = vld [vmem:[%s273 + $0x4] sm:$0xf]
      %v299 = vunpack.c.l.bf16 %v297
      %v300 = vunpack.c.l.bf16 %v298
      %v301 = vmul.f32 %v296, 0.2
      %v302 = vmax.f32 %v296, %v301
      %v303 = vlaneseq
      %v304 = vshrl.u32 %v303, 7
      %v305 = vstv %s294
      %v306 = vadd.s32 %v305, %v304
      %vm307 = vcmp.ge.s32.totalorder %v306, 0
      %vm308 = vcmp.lt.s32.totalorder %v306, 16
      %vm309 = vmand %vm307, %vm308
      %v310 = vsel %vm309, 1, 0
      %vm311 = vcmp.eq.s32.totalorder %v310, 1
      %v312 = vsel %vm311, %v302, 0.0
      %vm313 = vcmask 254976
      %314 = vst.msk [vmem:[#allocation2] sm:$0x3] %vm313, %v312
      %v315 = vmul.f32 %v299, 0.2
      %v316 = vmul.f32 %v300, 0.2
      %v317 = vmax.f32 %v299, %v315
      %v318 = vmax.f32 %v300, %v316
      %vm319 = vcmask 261120
      %320 = vst.msk [vmem:[#allocation2 + $0x2] sm:$0xff] %vm319, %v317
      %321 = vst.msk [vmem:[#allocation2 + $0xa] sm:$0xff] %vm319, %v318
      %s322 = sadd.s32 %s293, 16
      %v323 = vstv %s322
      %v324 = vadd.s32 %v323, %v304
      %vm325 = vcmp.ge.s32.totalorder %v324, 0
      %vm326 = vcmp.lt.s32.totalorder %v324, 16
      %vm327 = vmand %vm325, %vm326
      %v328 = vsel %vm327, 1, 0
      %vm329 = vcmp.eq.s32.totalorder %v328, 1
      %v331 = vrot.slane %v302, 2
      %v333 = vsel %vm329, %v331, 0.0
      %334 = vst.msk [vmem:[#allocation2 + $0x12] sm:$0x3] %vm313, %v333
      %v335 = vld [vmem:[#allocation2] sm:$0xff]
      %v336 = vld [vmem:[#allocation2 + $0x8] sm:$0xff]
      %v337 = vpack.c.bf16 %v336, %v335
      %v338 = vld [vmem:[#allocation2 + $0x1] sm:$0xff]
      %v339 = vld [vmem:[#allocation2 + $0x9] sm:$0xff]
      %v340 = vpack.c.bf16 %v339, %v338
      %v341 = vld [vmem:[#allocation2 + $0x2] sm:$0xff]
      %v342 = vld [vmem:[#allocation2 + $0xa] sm:$0xff]
      %v343 = vpack.c.bf16 %v342, %v341
      %v344 = vld [vmem:[#allocation2 + $0x3] sm:$0xff]
      %v345 = vld [vmem:[#allocation2 + $0xb] sm:$0xff]
      %v346 = vpack.c.bf16 %v345, %v344
      %v347 = vld [vmem:[#allocation2 + $0x4] sm:$0xff]
      %v348 = vld [vmem:[#allocation2 + $0xc] sm:$0xff]
      %v349 = vpack.c.bf16 %v348, %v347
      %351 = vrot.lane.b32.xlu0 %v340, 32
      %v352 = vpop.permute.xlu0 %351
      %354 = vrot.lane.b32.xlu0 %v343, 64
      %v355 = vpop.permute.xlu0 %354
      %357 = vrot.lane.b32.xlu0 %v346, 96
      %v358 = vpop.permute.xlu0 %357
      %v361 = vsel %vm319, %v337, %v352
      %vm362 = vcmask 523264
      %v364 = vsel %vm362, %v361, %v355
      %vm365 = vcmask 785408
      %v367 = vsel %vm365, %v364, %v358
      %v369 = vld [vmem:[%s2] sm:$0xf]
      %v370 = vld [vmem:[%s2 + $0x4] sm:$0xf]
      %v371 = vld [vmem:[%s2 + $0x8] sm:$0xf]
      %v372 = vld [vmem:[%s2 + $0xc] sm:$0xf]
      %v373 = vld [vmem:[%s2 + $0x10] sm:$0xf]
      %v374 = vld [vmem:[%s2 + $0x14] sm:$0xf]
      %v375 = vld [vmem:[%s2 + $0x18] sm:$0xf]
      %v376 = vld [vmem:[%s2 + $0x1c] sm:$0xf]
      %v377 = vld [vmem:[%s2 + $0x20] sm:$0xf]
      %v378 = vld [vmem:[%s2 + $0x24] sm:$0xf]
      %v379 = vld [vmem:[%s2 + $0x28] sm:$0xf]
      %v380 = vld [vmem:[%s2 + $0x2c] sm:$0xf]
      %v381 = vld [vmem:[%s2 + $0x30] sm:$0xf]
      %v382 = vld [vmem:[%s2 + $0x34] sm:$0xf]
      %v383 = vld [vmem:[%s2 + $0x38] sm:$0xf]
      %v384 = vld [vmem:[%s2 + $0x3c] sm:$0xf]
      %v385 = vld [vmem:[%s2 + $0x40] sm:$0xf]
      %v386 = vld [vmem:[%s2 + $0x44] sm:$0xf]
      %v387 = vld [vmem:[%s2 + $0x48] sm:$0xf]
      %v388 = vld [vmem:[%s2 + $0x4c] sm:$0xf]
      %v409 = vunpack.c.l.b16 %v369
      %v410 = vunpack.c.l.b16 %v370
      %v411 = vunpack.c.l.b16 %v371
      %v412 = vunpack.c.l.b16 %v372
      %v413 = vunpack.c.l.b16 %v373
      %v414 = vunpack.c.l.b16 %v374
      %v415 = vunpack.c.l.b16 %v375
      %v416 = vunpack.c.l.b16 %v376
      %v417 = vunpack.c.l.b16 %v377
      %v418 = vunpack.c.l.b16 %v378
      %v419 = vunpack.c.l.b16 %v379
      %v420 = vunpack.c.l.b16 %v380
      %v421 = vunpack.c.l.b16 %v381
      %v422 = vunpack.c.l.b16 %v382
      %v423 = vunpack.c.l.b16 %v383
      %v424 = vunpack.c.l.b16 %v384
      %v425 = vunpack.c.l.b16 %v385
      %v426 = vunpack.c.l.b16 %v386
      %v427 = vunpack.c.l.b16 %v387
      %v428 = vunpack.c.l.b16 %v388
      %v429 = vpack.c.b16 %v410, %v409
      %v430 = vpack.c.b16 %v412, %v411
      %v431 = vpack.c.b16 %v414, %v413
      %v432 = vpack.c.b16 %v416, %v415
      %v433 = vpack.c.b16 %v418, %v417
      %v434 = vpack.c.b16 %v420, %v419
      %v435 = vpack.c.b16 %v422, %v421
      %v436 = vpack.c.b16 %v424, %v423
      %v437 = vpack.c.b16 %v426, %v425
      %v438 = vpack.c.b16 %v428, %v427
      %v450 = vsel %vm319, %v349, 0
      %452 = vmatprep.subr.bf16.mxu0 0
      %453 = vmatpush1.bf16.msra.mxu0 %v429
      %454 = vmatprep.subr.bf16.mxu0 0
      %455 = vmatpush1.bf16.msra.mxu0 %v430
      %456 = vmatprep.subr.bf16.mxu0 0
      %457 = vmatpush1.bf16.msra.mxu0 %v431
      %458 = vmatprep.subr.bf16.mxu0 0
      %459 = vmatpush1.bf16.msra.mxu0 %v432
      %460 = vmatprep.subr.bf16.mxu0 0
      %461 = vmatpush1.bf16.msra.mxu0 %v433
      %462 = vmatprep.subr.bf16.mxu0 0
      %463 = vmatpush1.bf16.msra.mxu0 %v434
      %464 = vmatprep.subr.bf16.mxu0 0
      %465 = vmatpush1.bf16.msra.mxu0 %v435
      %466 = vmatprep.subr.bf16.mxu0 0
      %467 = vmatpush1.bf16.msra.mxu0 %v436
      %468 = vmatprep.subr.bf16.mxu0 0
      %469 = vmatpush1.bf16.msra.mxu0 %v437
      %470 = vmatprep.subr.bf16.mxu0 0
      %471 = vmatpush1.bf16.msra.mxu0 %v438
      %472 = vmatprep.subr.bf16.mxu0 0
      %473 = vmatpush1.bf16.msra.mxu0 0
      %474 = vmatprep.subr.bf16.mxu0 0
      %475 = vmatpush1.bf16.msra.mxu0 0
      %476 = vmatprep.subr.bf16.mxu0 0
      %477 = vmatpush1.bf16.msra.mxu0 0
      %478 = vmatprep.subr.bf16.mxu0 0
      %479 = vmatpush1.bf16.msra.mxu0 0
      %480 = vmatprep.subr.bf16.mxu0 0
      %481 = vmatpush1.bf16.msra.mxu0 0
      %482 = vmatprep.subr.bf16.mxu0 0
      %483 = vmatpush1.bf16.msra.mxu0 0
      %484 = vmatprep.mubr.bf16.mxu0 %v450
      %485 = vmatmul.mubr.bf16.gmra.mrb[0].mxu0 %v367
      %v486 = vpop.f32.mrb[0].mxu0
      %v487 = vadd.f32 0.0, %v486
      %v488 = vpop.f32.mrb[0].mxu0
      %v489 = vpop.f32.mrb[0].mxu0
      %v490 = vadd.f32 0.0, %v489
      %v491 = vpop.f32.mrb[0].mxu0
      %492 = vdwg.mxu0
      %vm493 = vcmask 130048
      %494 = vst.msk [vmem:[%s290] sm:$0xff] %vm493, %v487
      %495 = vst.msk [vmem:[%s290 + $0x8] sm:$0xff] %vm493, %v490
      %s496 = smul.u32 2, %s21
      %p497 = scmp.lt.s32.totalorder %s20, 1
      %s498 = scalar_select %p497, %s20, 1
      %p499 = scmp.lt.s32.totalorder %s496, 1
      %s500 = scalar_select %p499, %s496, 1
      %s501 = smul.addr %s498, 2
      %s502 = sadd.s32 %s500, %s501
      %s503 = smul.addr %s502, 8
      %s504 = scalar_lea.vmem %s5, %s503
      // Predicated region
      $region41: #{encoder_forward.7} parent=39 // pred_check
        %p505 = pneg %p167
      $region42: #{encoder_forward.7} parent=39 // pred_check_branch
        %507 = sbr.rel (%p505) target = $region44
      $region43: #{encoder_forward.7} parent=39 // pred_region
        %s508 = smul.u32 2, %s21
      $region44: #{encoder_forward.7} parent=39 // pred_fallthru
        _
    $region40: #{encoder_forward.7} parent=5 // pred_fallthru
      _
    %p509 = scmp.le.s32.totalorder 2, %s11
    // Predicated region
    $region45: #{encoder_forward.7} parent=5 // pred_check
      %p510 = pneg %p509
    $region46: #{encoder_forward.7} parent=5 // pred_check_branch
      %512 = sbr.rel (%p510) target = $region48
    $region47: #{encoder_forward.7} parent=5 // pred_region
      %s513 = ssub.s32 %s11, 2
      // Predicated region
      $region49: #{encoder_forward.7} parent=47 // pred_check
        %p514 = pneg %p173
      $region50: #{encoder_forward.7} parent=47 // pred_check_branch
        %516 = sbr.rel (%p514) target = $region52
      $region51: #{encoder_forward.7} parent=47 // pred_region
        %s517 = smul.u32 2, %s23
        %p518 = scmp.lt.s32.totalorder %s22, 1
        %s519 = scalar_select %p518, %s22, 1
        %p520 = scmp.lt.s32.totalorder %s517, 1
        %s521 = scalar_select %p520, %s517, 1
        %s522 = smul.addr %s519, 2
        %s523 = sadd.s32 %s521, %s522
        %s524 = smul.addr %s523, 8
        %s525 = scalar_lea.vmem %s5, %s524
      $region52: #{encoder_forward.7} parent=47 // pred_fallthru
        _
    $region48: #{encoder_forward.7} parent=5 // pred_fallthru
      _
  $region6: #{encoder_forward.7} parent=0 // loop_footer
    %s15 = sadd.s32 1, %s11
  $region7: #{encoder_forward.7} parent=0 // loop_footer_branch
    %10 = sbr.rel target = $region3
  $region8: #{encoder_forward.7} parent=0 // loop_exit
    _

</llo_original>
